<compile_context>
chip_gen: v5e
topology: v5e:2x2
jax: 0.10.0
libtpu: 0.0.40
codegen_flags: <defaults>
</compile_context>

<pallas_src>
import functools
import math

import jax
import jax.numpy as jnp
from jax.experimental import pallas as pl
from jax.experimental.pallas import tpu as pltpu


# ----------------------------------------------------------------------------
# helpers
# ----------------------------------------------------------------------------
def _round_up(x, m):
    return ((x + m - 1) // m) * m


def _pad_to(a, shape):
    pads = [(0, t - s) for s, t in zip(a.shape, shape)]
    if all(p == (0, 0) for p in pads):
        return a
    return jnp.pad(a, pads)


def _pick_tile(dim, pref):
    """Full-dim block when small (valid via full-dim exception), else pref."""
    return dim if dim <= pref else pref


def _row_tile(M, tm_pref):
    """Row tile: big, but with >=2 blocks when cheaply possible (dual-TC)."""
    tm = _pick_tile(M, tm_pref)
    if M // tm < 2 and M >= 16 and M % 16 == 0:
        tm = M // 2
    return tm


# ----------------------------------------------------------------------------
# fused [LayerNorm] -> matmul (+bias) [-> GELU] [-> +residual]  kernel
# ----------------------------------------------------------------------------
def fused_dense(x, w, b, *, ln_g=None, ln_beta=None, residual=None,
                activation=None, eps=1e-5, tm_pref=256, tn_pref=512,
                out_dtype=jnp.bfloat16):
    """y = [res +] act( LN?(x) @ w + b );  x:(M,K) bf16, w:(K,N) bf16, b:(N,)."""
    M, K = x.shape
    N = w.shape[1]
    has_ln = ln_g is not None
    has_res = residual is not None

    tm = _row_tile(M, tm_pref)
    tn = _pick_tile(N, tn_pref)
    M_pad = _round_up(M, tm)
    N_pad = _round_up(N, tn)

    xp = _pad_to(x.astype(jnp.bfloat16), (M_pad, K))
    wp = _pad_to(w.astype(jnp.bfloat16), (K, N_pad))
    bp = _pad_to(b.astype(jnp.float32).reshape(1, N), (1, N_pad))

    in_specs = [pl.BlockSpec((tm, K), lambda i, j: (i, 0))]
    args = [xp]
    if has_ln:
        in_specs += [pl.BlockSpec((1, K), lambda i, j: (0, 0)),
                     pl.BlockSpec((1, K), lambda i, j: (0, 0))]
        args += [ln_g.astype(jnp.float32).reshape(1, K),
                 ln_beta.astype(jnp.float32).reshape(1, K)]
    in_specs += [pl.BlockSpec((K, tn), lambda i, j: (0, j)),
                 pl.BlockSpec((1, tn), lambda i, j: (0, j))]
    args += [wp, bp]
    if has_res:
        in_specs.append(pl.BlockSpec((tm, tn), lambda i, j: (i, j)))
        args.append(_pad_to(residual.astype(jnp.bfloat16), (M_pad, N_pad)))

    def kernel(*refs):
        it = iter(refs)
        x_ref = next(it)
        if has_ln:
            g_ref = next(it)
            bt_ref = next(it)
        w_ref = next(it)
        b_ref = next(it)
        res_ref = next(it) if has_res else None
        o_ref = next(it)
        xn_scr = next(it) if has_ln else None

        if has_ln:
            # LN once per row tile; cached bf16 in VMEM and reused for every
            # output-column tile (j axis is sequential / "arbitrary").
            @pl.when(pl.program_id(1) == 0)
            def _():
                xv = x_ref[...].astype(jnp.float32)
                mu = jnp.mean(xv, axis=-1, keepdims=True)
                var = jnp.mean(jnp.square(xv - mu), axis=-1, keepdims=True)
                xn = (xv - mu) * jax.lax.rsqrt(var + eps)
                xn = xn * g_ref[...] + bt_ref[...]
                xn_scr[...] = xn.astype(xn_scr.dtype)
            lhs = xn_scr[...]
        else:
            lhs = x_ref[...].astype(jnp.bfloat16)

        # bf16 MXU inputs, f32 accumulation
        y = jnp.dot(lhs, w_ref[...], preferred_element_type=jnp.float32)
        y = y + b_ref[...]
        if activation == "gelu_new":
            c = math.sqrt(2.0 / math.pi)
            y = 0.5 * y * (1.0 + jnp.tanh(c * (y + 0.044715 * y * y * y)))
        if has_res:
            y = y + res_ref[...].astype(jnp.float32)
        o_ref[...] = y.astype(o_ref.dtype)

    out = pl.pallas_call(
        kernel,
        out_shape=jax.ShapeDtypeStruct((M_pad, N_pad), out_dtype),
        grid=(M_pad // tm, N_pad // tn),
        in_specs=in_specs,
        out_specs=pl.BlockSpec((tm, tn), lambda i, j: (i, j)),
        scratch_shapes=([pltpu.VMEM((tm, K), jnp.bfloat16)] if has_ln else []),
        compiler_params=pltpu.CompilerParams(
            dimension_semantics=(("parallel", "arbitrary") if has_ln
                                 else ("parallel", "parallel")),
            vmem_limit_bytes=64 * 1024 * 1024),
    )(*args)
    if M_pad != M or N_pad != N:
        out = out[:M, :N]
    return out


# ----------------------------------------------------------------------------
# causal self-attention: all heads of one batch element per grid step,
# reading heads straight from the (B, S, 3D) qkv block (no HBM transposes).
# ----------------------------------------------------------------------------
def _attn_kernel(qkv_ref, o_ref, *, n_head, dh, d):
    x = qkv_ref[0]                                         # (S, 3D) bf16
    S = x.shape[0]
    row = jax.lax.broadcasted_iota(jnp.int32, (S, S), 0)
    col = jax.lax.broadcasted_iota(jnp.int32, (S, S), 1)
    causal = col <= row
    outs = []
    for h in range(n_head):                                # static, unrolled
        q = x[:, h * dh:(h + 1) * dh]                      # (S, Dh) bf16
        k = x[:, d + h * dh:d + (h + 1) * dh]
        v = x[:, 2 * d + h * dh:2 * d + (h + 1) * dh]
        # 1/sqrt(Dh) is pre-folded into the Q projection weights/bias.
        s = jnp.einsum('qd,kd->qk', q, k,
                       preferred_element_type=jnp.float32)  # (S, S) f32
        s = jnp.where(causal, s, jnp.float32(-1e30))
        s = s - jnp.max(s, axis=-1, keepdims=True)
        p = jnp.exp(s)
        p = p * pl.reciprocal(jnp.sum(p, axis=-1, keepdims=True), approx=True)
        outs.append(jnp.dot(p.astype(jnp.bfloat16), v,
                            preferred_element_type=jnp.float32))
    # merged-heads (S, D) lane-dense store, already in (B, S, H*Dh) layout
    o_ref[0] = jnp.concatenate(outs, axis=-1).astype(o_ref.dtype)


def causal_attention(qkv, B, S, D, n_head):
    """qkv: (B*S, 3D) bf16 (GPT2 c_attn layout) -> (B*S, D) bf16, heads merged."""
    dh = D // n_head
    qkv3 = qkv.reshape(B, S, 3 * D)                        # free reshape
    out = pl.pallas_call(
        functools.partial(_attn_kernel, n_head=n_head, dh=dh, d=D),
        out_shape=jax.ShapeDtypeStruct((B, S, D), jnp.bfloat16),
        grid=(B,),
        in_specs=[pl.BlockSpec((1, S, 3 * D), lambda b: (b, 0, 0))],
        out_specs=pl.BlockSpec((1, S, D), lambda b: (b, 0, 0)),
        compiler_params=pltpu.CompilerParams(
            dimension_semantics=("parallel",)),
    )(qkv3)
    # TODO(synk): flash-style (Sq, Sk) KV tiling + online softmax for long S
    #             (keeps VMEM flat in S; required for v7x's 64 MiB VMEM).
    return out.reshape(B * S, D)


# ----------------------------------------------------------------------------
# fused ln_f -> lm_head -> masked CE (online logsumexp over vocab tiles)
# ----------------------------------------------------------------------------
def _lmhead_ce_kernel(x_ref, g_ref, bt_ref, w_ref, lab_ref,
                      logit_ref, nll_ref,
                      xn_scr, m_scr, l_scr, t_scr, *, V, tv, eps):
    j = pl.program_id(1)

    @pl.when(j == 0)
    def _():
        x = x_ref[...].astype(jnp.float32)
        mu = jnp.mean(x, axis=-1, keepdims=True)
        var = jnp.mean(jnp.square(x - mu), axis=-1, keepdims=True)
        xn = (x - mu) * jax.lax.rsqrt(var + eps) * g_ref[...] + bt_ref[...]
        xn_scr[...] = xn.astype(xn_scr.dtype)
        m_scr[...] = jnp.full(m_scr.shape, -1e30, jnp.float32)
        l_scr[...] = jnp.zeros(l_scr.shape, jnp.float32)
        t_scr[...] = jnp.zeros(t_scr.shape, jnp.float32)

    logits = jnp.dot(xn_scr[...], w_ref[...],
                     preferred_element_type=jnp.float32)              # (tm, tv)
    logit_ref[...] = logits.astype(logit_ref.dtype)

    col = jax.lax.broadcasted_iota(jnp.int32, logits.shape, 1) + j * tv
    s = jnp.where(col < V, logits, jnp.float32(-1e30))                # mask pad cols
    m_prev = m_scr[...]
    m_new = jnp.maximum(m_prev, jnp.max(s, axis=-1, keepdims=True))
    alpha = jnp.exp(m_prev - m_new)
    l_scr[...] = l_scr[...] * alpha + jnp.sum(jnp.exp(s - m_new), axis=-1,
                                              keepdims=True)
    m_scr[...] = m_new
    lab = lab_ref[...]                                                # (tm, 1) int32
    t_scr[...] = t_scr[...] + jnp.sum(jnp.where(col == lab, logits, 0.0),
                                      axis=-1, keepdims=True)

    @pl.when(j == pl.num_programs(1) - 1)
    def _():
        lse = m_scr[...] + jnp.log(l_scr[...])
        nll_ref[...] = (lse - t_scr[...]).astype(nll_ref.dtype)


def lm_head_ce(x, lnf_g, lnf_b, w, labels, *, eps=1e-5, tm_pref=256,
               tv_pref=512, logits_dtype=jnp.float32):
    """Returns (logits (M,V), per-row nll (M,) f32)."""
    M, D = x.shape
    V = w.shape[1]
    tm = _row_tile(M, tm_pref)       # >=2 row blocks when possible -> both TCs
    tv = _pick_tile(V, tv_pref)
    M_pad = _round_up(M, tm)
    V_pad = _round_up(V, tv)

    xp = _pad_to(x.astype(jnp.bfloat16), (M_pad, D))
    wp = _pad_to(w.astype(jnp.bfloat16), (D, V_pad))
    labp = _pad_to(labels.reshape(M, 1).astype(jnp.int32), (M_pad, 1))

    logits, nll = pl.pallas_call(
        functools.partial(_lmhead_ce_kernel, V=V, tv=tv, eps=eps),
        out_shape=(jax.ShapeDtypeStruct((M_pad, V_pad), logits_dtype),
                   jax.ShapeDtypeStruct((M_pad, 1), jnp.float32)),
        grid=(M_pad // tm, V_pad // tv),
        in_specs=[
            pl.BlockSpec((tm, D), lambda i, j: (i, 0)),
            pl.BlockSpec((1, D), lambda i, j: (0, 0)),
            pl.BlockSpec((1, D), lambda i, j: (0, 0)),
            pl.BlockSpec((D, tv), lambda i, j: (0, j)),
            pl.BlockSpec((tm, 1), lambda i, j: (i, 0)),
        ],
        out_specs=(
            pl.BlockSpec((tm, tv), lambda i, j: (i, j)),
            pl.BlockSpec((tm, 1), lambda i, j: (i, 0)),
        ),
        scratch_shapes=[
            pltpu.VMEM((tm, D), jnp.bfloat16),    # cached normalized x (bf16)
            pltpu.VMEM((tm, 1), jnp.float32),     # running max
            pltpu.VMEM((tm, 1), jnp.float32),     # running sum
            pltpu.VMEM((tm, 1), jnp.float32),     # target logit
        ],
        compiler_params=pltpu.CompilerParams(
            dimension_semantics=("parallel", "arbitrary"),
            vmem_limit_bytes=64 * 1024 * 1024),
    )(xp, lnf_g.astype(jnp.float32).reshape(1, D),
      lnf_b.astype(jnp.float32).reshape(1, D), wp, labp)
    if M_pad != M or V_pad != V:
        logits = logits[:M, :V]
        nll = nll[:M]
    return logits, nll[:, 0]


# ----------------------------------------------------------------------------
# Model (GPT2Model + lm_head + masked LM loss)
# ----------------------------------------------------------------------------
def init_params(key, vocab_size, n_positions, n_embd, n_layer, n_head):
    std = 0.02
    keys = jax.random.split(key, 3 + n_layer)
    q_scale = 1.0 / math.sqrt(n_embd // n_head)

    def nrm(k, shape):
        return jax.random.normal(k, shape, jnp.float32) * std

    p = {
        "wte": nrm(keys[0], (vocab_size, n_embd)),
        "wpe": nrm(keys[1], (n_positions, n_embd)),
        "lnf_g": jnp.ones((n_embd,), jnp.float32),
        "lnf_b": jnp.zeros((n_embd,), jnp.float32),
        # nn.Linear(n_embd, vocab, bias=False), stored transposed (n_embd, vocab)
        # for x @ W; transpose PyTorch weights when porting a checkpoint.
        "lm_head_w": nrm(keys[2], (n_embd, vocab_size)).astype(jnp.bfloat16),
        "layers": [],
    }
    n_inner = 4 * n_embd
    for l in range(n_layer):
        kk = jax.random.split(keys[3 + l], 8)
        attn_w = nrm(kk[0], (n_embd, 3 * n_embd))
        attn_b = nrm(kk[1], (3 * n_embd,))
        # fold the 1/sqrt(Dh) softmax scale into the Q projection once
        # (apply the same transform when porting a PyTorch checkpoint).
        attn_w = attn_w.at[:, :n_embd].multiply(q_scale)
        attn_b = attn_b.at[:n_embd].multiply(q_scale)
        p["layers"].append({
            "ln1_g": jnp.ones((n_embd,), jnp.float32),
            "ln1_b": jnp.zeros((n_embd,), jnp.float32),
            "attn_w": attn_w.astype(jnp.bfloat16),
            "attn_b": attn_b,
            "attn_proj_w": nrm(kk[2], (n_embd, n_embd)).astype(jnp.bfloat16),
            "attn_proj_b": nrm(kk[3], (n_embd,)),
            "ln2_g": jnp.ones((n_embd,), jnp.float32),
            "ln2_b": jnp.zeros((n_embd,), jnp.float32),
            "fc_w": nrm(kk[4], (n_embd, n_inner)).astype(jnp.bfloat16),
            "fc_b": nrm(kk[5], (n_inner,)),
            "proj_w": nrm(kk[6], (n_inner, n_embd)).astype(jnp.bfloat16),
            "proj_b": nrm(kk[7], (n_embd,)),
        })
    return p


def model_forward(params, input_ids, token_type_ids, label_mask, n_head):
    B, S = input_ids.shape
    D = params["wte"].shape[1]
    V = params["lm_head_w"].shape[1]
    M = B * S

    # --- embeddings: wte[input] + wpe[pos] + wte[token_type]  (plain-JAX gather)
    pos_ids = jnp.arange(S, dtype=jnp.int32)
    h = (params["wte"][input_ids] + params["wpe"][pos_ids][None, :, :]
         + params["wte"][token_type_ids])
    x = h.reshape(M, D).astype(jnp.bfloat16)          # bf16 residual stream

    for layer in params["layers"]:
        # --- attention block (pre-LN), LN fused into the QKV projection ---
        qkv = fused_dense(x, layer["attn_w"], layer["attn_b"],
                          ln_g=layer["ln1_g"], ln_beta=layer["ln1_b"])  # (M,3D) bf16
        attn = causal_attention(qkv, B, S, D, n_head)                   # (M, D) bf16
        # projection with fused residual add
        x = fused_dense(attn, layer["attn_proj_w"], layer["attn_proj_b"],
                        residual=x)

        # --- MLP block: LN fused into fc, residual fused into proj ---
        h1 = fused_dense(x, layer["fc_w"], layer["fc_b"],
                         ln_g=layer["ln2_g"], ln_beta=layer["ln2_b"],
                         activation="gelu_new")
        x = fused_dense(h1, layer["proj_w"], layer["proj_b"], residual=x)

    # --- fused ln_f + lm_head + masked shifted cross-entropy ---
    if label_mask is None:
        shift_labels = jnp.zeros((M,), jnp.int32)
    else:
        labels = input_ids * label_mask
        shift_labels = jnp.concatenate(
            [labels[:, 1:], jnp.zeros((B, 1), labels.dtype)], axis=1).reshape(M)

    logits_flat, nll = lm_head_ce(x, params["lnf_g"], params["lnf_b"],
                                  params["lm_head_w"], shift_labels)
    lm_logits = logits_flat.reshape(B, S, V)

    if label_mask is None:
        loss = None
    else:
        valid = (shift_labels != 0).astype(jnp.float32)          # ignore_index=0
        num = jnp.sum(valid)
        loss = jnp.sum(nll * valid) / jnp.maximum(num, 1.0)      # guard num==0

    return {"loss": loss, "lm_logits": lm_logits}


# ----------------------------------------------------------------------------
# Driver
# ----------------------------------------------------------------------------
if __name__ == "__main__":
    # small GPT2Config-like hyperparameters (D multiple of 128 keeps all
    # blocks lane-aligned and pad-free)
    VOCAB = 256
    N_POS = 16
    N_EMBD = 128
    N_LAYER = 2
    N_HEAD = 4
    B, S = 2, 8

    key = jax.random.PRNGKey(0)
    kp, ki, km = jax.random.split(key, 3)

    params = init_params(kp, VOCAB, N_POS, N_EMBD, N_LAYER, N_HEAD)

    input_ids = jax.random.randint(ki, (B, S), 1, VOCAB, dtype=jnp.int32)
    token_type_ids = jnp.zeros((B, S), jnp.int32)
    # label_mask: 1 where the token participates in the LM loss, 0 otherwise
    label_mask = (jax.random.uniform(km, (B, S)) > 0.3).astype(jnp.int32)

    fwd = jax.jit(functools.partial(model_forward, n_head=N_HEAD))
    out = fwd(params, input_ids, token_type_ids, label_mask)
    jax.block_until_ready(out)

    assert out["lm_logits"].shape == (B, S, VOCAB)
    assert jnp.isfinite(out["loss"]).item()
    assert bool(jnp.all(jnp.isfinite(out["lm_logits"])))
    print("KERNEL_OK")
</pallas_src>

<mosaic_0001>
module attributes {stable_mosaic.version = 11 : i64} {
  func.func @kernel(%arg0: i32, %arg1: i32, %arg2: memref<8x128xbf16, #tpu.memory_space<vmem>>, %arg3: memref<1x128xf32, #tpu.memory_space<vmem>>, %arg4: memref<1x128xf32, #tpu.memory_space<vmem>>, %arg5: memref<128x512xbf16, #tpu.memory_space<vmem>>, %arg6: memref<1x512xf32, #tpu.memory_space<vmem>>, %arg7: memref<8x512xbf16, #tpu.memory_space<vmem>>, %arg8: memref<8x128xbf16, #tpu.memory_space<vmem>>) attributes {dimension_semantics = [#tpu.dimension_semantics<parallel>, #tpu.dimension_semantics<arbitrary>], iteration_bounds = array<i64: 2, 1>, scalar_prefetch = 0 : i64, scratch_operands = 1 : i64, tpu.core_type = #tpu.core_type<tc>, window_params = [{transform_indices = @transform_0, window_bounds = array<i64: 8, 128>}, {pipeline_mode = #tpu.pipeline_mode<synchronous>, transform_indices = @transform_1, window_bounds = array<i64: 1, 128>}, {pipeline_mode = #tpu.pipeline_mode<synchronous>, transform_indices = @transform_2, window_bounds = array<i64: 1, 128>}, {transform_indices = @transform_3, window_bounds = array<i64: 128, 512>}, {transform_indices = @transform_4, window_bounds = array<i64: 1, 512>}, {transform_indices = @transform_5, window_bounds = array<i64: 8, 512>}]} {
    %c0_i32 = arith.constant 0 : i32
    %0 = arith.cmpi eq, %arg1, %c0_i32 : i32
    %1 = arith.extui %0 : i1 to i32
    %c0_i32_0 = arith.constant 0 : i32
    %2 = arith.cmpi ne, %1, %c0_i32_0 : i32
    scf.if %2 {
      %c0_12 = arith.constant 0 : index
      %c0_13 = arith.constant 0 : index
      %24 = vector.load %arg2[%c0_12, %c0_13] : memref<8x128xbf16, #tpu.memory_space<vmem>>, vector<8x128xbf16>
      %25 = arith.extf %24 : vector<8x128xbf16> to vector<8x128xf32>
      %cst_14 = arith.constant dense<0.000000e+00> : vector<8xf32>
      %26 = vector.multi_reduction <add>, %25, %cst_14 [1] : vector<8x128xf32> to vector<8xf32>
      %27 = vector.shape_cast %26 : vector<8xf32> to vector<8x1xf32>
      %cst_15 = arith.constant 1.280000e+02 : f32
      %28 = vector.broadcast %cst_15 : f32 to vector<8x1xf32>
      %29 = arith.divf %27, %28 : vector<8x1xf32>
      %30 = vector.broadcast %29 : vector<8x1xf32> to vector<8x128xf32>
      %31 = arith.subf %25, %30 : vector<8x128xf32>
      %32 = arith.mulf %31, %31 : vector<8x128xf32>
      %cst_16 = arith.constant dense<0.000000e+00> : vector<8xf32>
      %33 = vector.multi_reduction <add>, %32, %cst_16 [1] : vector<8x128xf32> to vector<8xf32>
      %34 = vector.shape_cast %33 : vector<8xf32> to vector<8x1xf32>
      %cst_17 = arith.constant 1.280000e+02 : f32
      %35 = vector.broadcast %cst_17 : f32 to vector<8x1xf32>
      %36 = arith.divf %34, %35 : vector<8x1xf32>
      %37 = vector.broadcast %29 : vector<8x1xf32> to vector<8x128xf32>
      %38 = arith.subf %25, %37 : vector<8x128xf32>
      %cst_18 = arith.constant 9.99999974E-6 : f32
      %39 = vector.broadcast %cst_18 : f32 to vector<8x1xf32>
      %40 = arith.addf %36, %39 : vector<8x1xf32>
      %41 = math.rsqrt %40 : vector<8x1xf32>
      %42 = vector.broadcast %41 : vector<8x1xf32> to vector<8x128xf32>
      %43 = arith.mulf %38, %42 : vector<8x128xf32>
      %c0_19 = arith.constant 0 : index
      %c0_20 = arith.constant 0 : index
      %44 = vector.load %arg3[%c0_19, %c0_20] : memref<1x128xf32, #tpu.memory_space<vmem>>, vector<1x128xf32>
      %45 = vector.broadcast %44 : vector<1x128xf32> to vector<8x128xf32>
      %46 = arith.mulf %43, %45 : vector<8x128xf32>
      %c0_21 = arith.constant 0 : index
      %c0_22 = arith.constant 0 : index
      %47 = vector.load %arg4[%c0_21, %c0_22] : memref<1x128xf32, #tpu.memory_space<vmem>>, vector<1x128xf32>
      %48 = vector.broadcast %47 : vector<1x128xf32> to vector<8x128xf32>
      %49 = arith.addf %46, %48 : vector<8x128xf32>
      %50 = arith.truncf %49 : vector<8x128xf32> to vector<8x128xbf16>
      %c0_23 = arith.constant 0 : index
      %c0_24 = arith.constant 0 : index
      %51 = vector.load %arg8[%c0_23, %c0_24] : memref<8x128xbf16, #tpu.memory_space<vmem>>, vector<8x128xbf16>
      tpu.vector_store %arg8[%c0_23, %c0_24], %50 {strides = array<i32>} : memref<8x128xbf16, #tpu.memory_space<vmem>>, vector<8x128xbf16>,
    } else {
    }
    %c0 = arith.constant 0 : index
    %c0_1 = arith.constant 0 : index
    %3 = vector.load %arg8[%c0, %c0_1] : memref<8x128xbf16, #tpu.memory_space<vmem>>, vector<8x128xbf16>
    %c0_2 = arith.constant 0 : index
    %c0_3 = arith.constant 0 : index
    %4 = vector.load %arg5[%c0_2, %c0_3] : memref<128x512xbf16, #tpu.memory_space<vmem>>, vector<128x512xbf16>
    %cst = arith.constant dense<0.000000e+00> : vector<8x512xf32>
    %5 = tpu.matmul %3, %4, %cst {dimension_numbers = #tpu.dot_dimension_numbers<[1], [0], [0], [1], [0, 0, 1, 1], [], []>} : vector<8x128xbf16>, vector<128x512xbf16>, vector<8x512xf32> -> vector<8x512xf32>
    %c0_4 = arith.constant 0 : index
    %c0_5 = arith.constant 0 : index
    %6 = vector.load %arg6[%c0_4, %c0_5] : memref<1x512xf32, #tpu.memory_space<vmem>>, vector<1x512xf32>
    %7 = vector.broadcast %6 : vector<1x512xf32> to vector<8x512xf32>
    %8 = arith.addf %5, %7 : vector<8x512xf32>
    %cst_6 = arith.constant 5.000000e-01 : f32
    %9 = vector.broadcast %cst_6 : f32 to vector<8x512xf32>
    %10 = arith.mulf %9, %8 : vector<8x512xf32>
    %cst_7 = arith.constant 4.471500e-02 : f32
    %11 = vector.broadcast %cst_7 : f32 to vector<8x512xf32>
    %12 = arith.mulf %11, %8 : vector<8x512xf32>
    %13 = arith.mulf %12, %8 : vector<8x512xf32>
    %14 = arith.mulf %13, %8 : vector<8x512xf32>
    %15 = arith.addf %8, %14 : vector<8x512xf32>
    %cst_8 = arith.constant 0.797884583 : f32
    %16 = vector.broadcast %cst_8 : f32 to vector<8x512xf32>
    %17 = arith.mulf %16, %15 : vector<8x512xf32>
    %18 = math.tanh %17 : vector<8x512xf32>
    %cst_9 = arith.constant 1.000000e+00 : f32
    %19 = vector.broadcast %cst_9 : f32 to vector<8x512xf32>
    %20 = arith.addf %19, %18 : vector<8x512xf32>
    %21 = arith.mulf %10, %20 : vector<8x512xf32>
    %22 = arith.truncf %21 : vector<8x512xf32> to vector<8x512xbf16>
    %c0_10 = arith.constant 0 : index
    %c0_11 = arith.constant 0 : index
    %23 = vector.load %arg7[%c0_10, %c0_11] : memref<8x512xbf16, #tpu.memory_space<vmem>>, vector<8x512xbf16>
    tpu.vector_store %arg7[%c0_10, %c0_11], %22 {strides = array<i32>} : memref<8x512xbf16, #tpu.memory_space<vmem>>, vector<8x512xbf16>,
    return
  }
  func.func @transform_0(%arg0: i32, %arg1: i32) -> (i32, i32) {
    %c0_i32 = arith.constant 0 : i32
    %c0_i32_0 = arith.constant 0 : i32
    return %arg0, %c0_i32 : i32, i32
  }
  func.func @transform_1(%arg0: i32, %arg1: i32) -> (i32, i32) {
    %c0_i32 = arith.constant 0 : i32
    %c0_i32_0 = arith.constant 0 : i32
    %c0_i32_1 = arith.constant 0 : i32
    return %c0_i32, %c0_i32_0 : i32, i32
  }
  func.func @transform_2(%arg0: i32, %arg1: i32) -> (i32, i32) {
    %c0_i32 = arith.constant 0 : i32
    %c0_i32_0 = arith.constant 0 : i32
    %c0_i32_1 = arith.constant 0 : i32
    return %c0_i32, %c0_i32_0 : i32, i32
  }
  func.func @transform_3(%arg0: i32, %arg1: i32) -> (i32, i32) {
    %c0_i32 = arith.constant 0 : i32
    %c0_i32_0 = arith.constant 0 : i32
    return %c0_i32, %arg1 : i32, i32
  }
  func.func @transform_4(%arg0: i32, %arg1: i32) -> (i32, i32) {
    %c0_i32 = arith.constant 0 : i32
    %c0_i32_0 = arith.constant 0 : i32
    return %c0_i32, %arg1 : i32, i32
  }
  func.func @transform_5(%arg0: i32, %arg1: i32) -> (i32, i32) {
    %c0_i32 = arith.constant 0 : i32
    return %arg0, %arg1 : i32, i32
  }
}

module attributes {stable_mosaic.version = 11 : i64} {
  func.func @kernel(%arg0: i32, %arg1: i32, %arg2: memref<8x128xbf16, #tpu.memory_space<vmem>>, %arg3: memref<128x128xbf16, #tpu.memory_space<vmem>>, %arg4: memref<1x128xf32, #tpu.memory_space<vmem>>, %arg5: memref<8x128xbf16, #tpu.memory_space<vmem>>, %arg6: memref<8x128xbf16, #tpu.memory_space<vmem>>) attributes {dimension_semantics = [#tpu.dimension_semantics<parallel>, #tpu.dimension_semantics<parallel>], iteration_bounds = array<i64: 2, 1>, scalar_prefetch = 0 : i64, scratch_operands = 0 : i64, tpu.core_type = #tpu.core_type<tc>, window_params = [{transform_indices = @transform_0, window_bounds = array<i64: 8, 128>}, {transform_indices = @transform_1, window_bounds = array<i64: 128, 128>}, {transform_indices = @transform_2, window_bounds = array<i64: 1, 128>}, {transform_indices = @transform_3, window_bounds = array<i64: 8, 128>}, {transform_indices = @transform_4, window_bounds = array<i64: 8, 128>}]} {
    %c0 = arith.constant 0 : index
    %c0_0 = arith.constant 0 : index
    %0 = vector.load %arg2[%c0, %c0_0] : memref<8x128xbf16, #tpu.memory_space<vmem>>, vector<8x128xbf16>
    %c0_1 = arith.constant 0 : index
    %c0_2 = arith.constant 0 : index
    %1 = vector.load %arg3[%c0_1, %c0_2] : memref<128x128xbf16, #tpu.memory_space<vmem>>, vector<128x128xbf16>
    %cst = arith.constant dense<0.000000e+00> : vector<8x128xf32>
    %2 = tpu.matmul %0, %1, %cst {dimension_numbers = #tpu.dot_dimension_numbers<[1], [0], [0], [1], [0, 0, 1, 1], [], []>} : vector<8x128xbf16>, vector<128x128xbf16>, vector<8x128xf32> -> vector<8x128xf32>
    %c0_3 = arith.constant 0 : index
    %c0_4 = arith.constant 0 : index
    %3 = vector.load %arg4[%c0_3, %c0_4] : memref<1x128xf32, #tpu.memory_space<vmem>>, vector<1x128xf32>
    %4 = vector.broadcast %3 : vector<1x128xf32> to vector<8x128xf32>
    %5 = arith.addf %2, %4 : vector<8x128xf32>
    %c0_5 = arith.constant 0 : index
    %c0_6 = arith.constant 0 : index
    %6 = vector.load %arg5[%c0_5, %c0_6] : memref<8x128xbf16, #tpu.memory_space<vmem>>, vector<8x128xbf16>
    %7 = arith.extf %6 : vector<8x128xbf16> to vector<8x128xf32>
    %8 = arith.addf %5, %7 : vector<8x128xf32>
    %9 = arith.truncf %8 : vector<8x128xf32> to vector<8x128xbf16>
    %c0_7 = arith.constant 0 : index
    %c0_8 = arith.constant 0 : index
    %10 = vector.load %arg6[%c0_7, %c0_8] : memref<8x128xbf16, #tpu.memory_space<vmem>>, vector<8x128xbf16>
    tpu.vector_store %arg6[%c0_7, %c0_8], %9 {strides = array<i32>} : memref<8x128xbf16, #tpu.memory_space<vmem>>, vector<8x128xbf16>,
    return
  }
  func.func @transform_0(%arg0: i32, %arg1: i32) -> (i32, i32) {
    %c0_i32 = arith.constant 0 : i32
    %c0_i32_0 = arith.constant 0 : i32
    return %arg0, %c0_i32 : i32, i32
  }
  func.func @transform_1(%arg0: i32, %arg1: i32) -> (i32, i32) {
    %c0_i32 = arith.constant 0 : i32
    %c0_i32_0 = arith.constant 0 : i32
    return %c0_i32, %arg1 : i32, i32
  }
  func.func @transform_2(%arg0: i32, %arg1: i32) -> (i32, i32) {
    %c0_i32 = arith.constant 0 : i32
    %c0_i32_0 = arith.constant 0 : i32
    return %c0_i32, %arg1 : i32, i32
  }
  func.func @transform_3(%arg0: i32, %arg1: i32) -> (i32, i32) {
    %c0_i32 = arith.constant 0 : i32
    return %arg0, %arg1 : i32, i32
  }
  func.func @transform_4(%arg0: i32, %arg1: i32) -> (i32, i32) {
    %c0_i32 = arith.constant 0 : i32
    return %arg0, %arg1 : i32, i32
  }
}

module attributes {stable_mosaic.version = 11 : i64} {
  func.func @_attn_kernel(%arg0: i32, %arg1: memref<1x8x384xbf16, #tpu.memory_space<vmem>>, %arg2: memref<1x8x128xbf16, #tpu.memory_space<vmem>>) attributes {dimension_semantics = [#tpu.dimension_semantics<parallel>], iteration_bounds = array<i64: 2>, scalar_prefetch = 0 : i64, scratch_operands = 0 : i64, tpu.core_type = #tpu.core_type<tc>, window_params = [{transform_indices = @transform_0, window_bounds = array<i64: 1, 8, 384>}, {transform_indices = @transform_1, window_bounds = array<i64: 1, 8, 128>}]} {
    %c0 = arith.constant 0 : index
    %c0_0 = arith.constant 0 : index
    %c0_1 = arith.constant 0 : index
    %0 = vector.load %arg1[%c0, %c0_0, %c0_1] : memref<1x8x384xbf16, #tpu.memory_space<vmem>>, vector<1x8x384xbf16>
    %1 = vector.shape_cast %0 : vector<1x8x384xbf16> to vector<8x384xbf16>
    %2 = tpu.iota {dimensions = array<i32: 0>} : vector<8x8xi32>
    %3 = tpu.iota {dimensions = array<i32: 1>} : vector<8x8xi32>
    %4 = arith.cmpi sle, %3, %2 : vector<8x8xi32>
    %5 = vector.extract_strided_slice %1 {offsets = [0, 0], sizes = [8, 32], strides = [1, 1]} : vector<8x384xbf16> to vector<8x32xbf16>
    %6 = vector.extract_strided_slice %1 {offsets = [0, 128], sizes = [8, 32], strides = [1, 1]} : vector<8x384xbf16> to vector<8x32xbf16>
    %7 = vector.extract_strided_slice %1 {offsets = [0, 256], sizes = [8, 32], strides = [1, 1]} : vector<8x384xbf16> to vector<8x32xbf16>
    "tpu.trace_start"() <{level = 10 : i32, message = "qd,kd->qk"}> : () -> ()
    %cst = arith.constant dense<0.000000e+00> : vector<8x8xf32>
    %8 = tpu.matmul %5, %6, %cst {dimension_numbers = #tpu.dot_dimension_numbers<[1], [1], [0], [0], [0, 0, 1, 0], [], []>} : vector<8x32xbf16>, vector<8x32xbf16>, vector<8x8xf32> -> vector<8x8xf32>
    %cst_2 = arith.constant -1.000000e+30 : f32
    "tpu.trace_stop"() : () -> ()
    %9 = vector.broadcast %cst_2 : f32 to vector<8x8xf32>
    %10 = arith.select %4, %8, %9 : vector<8x8xi1>, vector<8x8xf32>
    %cst_3 = arith.constant dense<0xFF800000> : vector<8xf32>
    %11 = vector.multi_reduction <maximumf>, %10, %cst_3 [1] : vector<8x8xf32> to vector<8xf32>
    %12 = vector.shape_cast %11 : vector<8xf32> to vector<8x1xf32>
    %13 = vector.broadcast %12 : vector<8x1xf32> to vector<8x8xf32>
    %14 = arith.subf %10, %13 : vector<8x8xf32>
    %15 = math.exp %14 : vector<8x8xf32>
    %cst_4 = arith.constant dense<0.000000e+00> : vector<8xf32>
    %16 = vector.multi_reduction <add>, %15, %cst_4 [1] : vector<8x8xf32> to vector<8xf32>
    %17 = vector.shape_cast %16 : vector<8xf32> to vector<8x1xf32>
    %18 = tpu.reciprocal %17 {approx = true} : vector<8x1xf32> -> vector<8x1xf32>
    %19 = vector.broadcast %18 : vector<8x1xf32> to vector<8x8xf32>
    %20 = arith.mulf %15, %19 : vector<8x8xf32>
    %21 = arith.truncf %20 : vector<8x8xf32> to vector<8x8xbf16>
    %cst_5 = arith.constant dense<0.000000e+00> : vector<8x32xf32>
    %22 = tpu.matmul %21, %7, %cst_5 {dimension_numbers = #tpu.dot_dimension_numbers<[1], [0], [0], [1], [0, 0, 1, 1], [], []>} : vector<8x8xbf16>, vector<8x32xbf16>, vector<8x32xf32> -> vector<8x32xf32>
    %23 = vector.extract_strided_slice %1 {offsets = [0, 32], sizes = [8, 32], strides = [1, 1]} : vector<8x384xbf16> to vector<8x32xbf16>
    %24 = vector.extract_strided_slice %1 {offsets = [0, 160], sizes = [8, 32], strides = [1, 1]} : vector<8x384xbf16> to vector<8x32xbf16>
    %25 = vector.extract_strided_slice %1 {offsets = [0, 288], sizes = [8, 32], strides = [1, 1]} : vector<8x384xbf16> to vector<8x32xbf16>
    "tpu.trace_start"() <{level = 10 : i32, message = "qd,kd->qk"}> : () -> ()
    %cst_6 = arith.constant dense<0.000000e+00> : vector<8x8xf32>
    %26 = tpu.matmul %23, %24, %cst_6 {dimension_numbers = #tpu.dot_dimension_numbers<[1], [1], [0], [0], [0, 0, 1, 0], [], []>} : vector<8x32xbf16>, vector<8x32xbf16>, vector<8x8xf32> -> vector<8x8xf32>
    %cst_7 = arith.constant -1.000000e+30 : f32
    "tpu.trace_stop"() : () -> ()
    %27 = vector.broadcast %cst_7 : f32 to vector<8x8xf32>
    %28 = arith.select %4, %26, %27 : vector<8x8xi1>, vector<8x8xf32>
    %cst_8 = arith.constant dense<0xFF800000> : vector<8xf32>
    %29 = vector.multi_reduction <maximumf>, %28, %cst_8 [1] : vector<8x8xf32> to vector<8xf32>
    %30 = vector.shape_cast %29 : vector<8xf32> to vector<8x1xf32>
    %31 = vector.broadcast %30 : vector<8x1xf32> to vector<8x8xf32>
    %32 = arith.subf %28, %31 : vector<8x8xf32>
    %33 = math.exp %32 : vector<8x8xf32>
    %cst_9 = arith.constant dense<0.000000e+00> : vector<8xf32>
    %34 = vector.multi_reduction <add>, %33, %cst_9 [1] : vector<8x8xf32> to vector<8xf32>
    %35 = vector.shape_cast %34 : vector<8xf32> to vector<8x1xf32>
    %36 = tpu.reciprocal %35 {approx = true} : vector<8x1xf32> -> vector<8x1xf32>
    %37 = vector.broadcast %36 : vector<8x1xf32> to vector<8x8xf32>
    %38 = arith.mulf %33, %37 : vector<8x8xf32>
    %39 = arith.truncf %38 : vector<8x8xf32> to vector<8x8xbf16>
    %cst_10 = arith.constant dense<0.000000e+00> : vector<8x32xf32>
    %40 = tpu.matmul %39, %25, %cst_10 {dimension_numbers = #tpu.dot_dimension_numbers<[1], [0], [0], [1], [0, 0, 1, 1], [], []>} : vector<8x8xbf16>, vector<8x32xbf16>, vector<8x32xf32> -> vector<8x32xf32>
    %41 = vector.extract_strided_slice %1 {offsets = [0, 64], sizes = [8, 32], strides = [1, 1]} : vector<8x384xbf16> to vector<8x32xbf16>
    %42 = vector.extract_strided_slice %1 {offsets = [0, 192], sizes = [8, 32], strides = [1, 1]} : vector<8x384xbf16> to vector<8x32xbf16>
    %43 = vector.extract_strided_slice %1 {offsets = [0, 320], sizes = [8, 32], strides = [1, 1]} : vector<8x384xbf16> to vector<8x32xbf16>
    "tpu.trace_start"() <{level = 10 : i32, message = "qd,kd->qk"}> : () -> ()
    %cst_11 = arith.constant dense<0.000000e+00> : vector<8x8xf32>
    %44 = tpu.matmul %41, %42, %cst_11 {dimension_numbers = #tpu.dot_dimension_numbers<[1], [1], [0], [0], [0, 0, 1, 0], [], []>} : vector<8x32xbf16>, vector<8x32xbf16>, vector<8x8xf32> -> vector<8x8xf32>
    %cst_12 = arith.constant -1.000000e+30 : f32
    "tpu.trace_stop"() : () -> ()
    %45 = vector.broadcast %cst_12 : f32 to vector<8x8xf32>
    %46 = arith.select %4, %44, %45 : vector<8x8xi1>, vector<8x8xf32>
    %cst_13 = arith.constant dense<0xFF800000> : vector<8xf32>
    %47 = vector.multi_reduction <maximumf>, %46, %cst_13 [1] : vector<8x8xf32> to vector<8xf32>
    %48 = vector.shape_cast %47 : vector<8xf32> to vector<8x1xf32>
    %49 = vector.broadcast %48 : vector<8x1xf32> to vector<8x8xf32>
    %50 = arith.subf %46, %49 : vector<8x8xf32>
    %51 = math.exp %50 : vector<8x8xf32>
    %cst_14 = arith.constant dense<0.000000e+00> : vector<8xf32>
    %52 = vector.multi_reduction <add>, %51, %cst_14 [1] : vector<8x8xf32> to vector<8xf32>
    %53 = vector.shape_cast %52 : vector<8xf32> to vector<8x1xf32>
    %54 = tpu.reciprocal %53 {approx = true} : vector<8x1xf32> -> vector<8x1xf32>
    %55 = vector.broadcast %54 : vector<8x1xf32> to vector<8x8xf32>
    %56 = arith.mulf %51, %55 : vector<8x8xf32>
    %57 = arith.truncf %56 : vector<8x8xf32> to vector<8x8xbf16>
    %cst_15 = arith.constant dense<0.000000e+00> : vector<8x32xf32>
    %58 = tpu.matmul %57, %43, %cst_15 {dimension_numbers = #tpu.dot_dimension_numbers<[1], [0], [0], [1], [0, 0, 1, 1], [], []>} : vector<8x8xbf16>, vector<8x32xbf16>, vector<8x32xf32> -> vector<8x32xf32>
    %59 = vector.extract_strided_slice %1 {offsets = [0, 96], sizes = [8, 32], strides = [1, 1]} : vector<8x384xbf16> to vector<8x32xbf16>
    %60 = vector.extract_strided_slice %1 {offsets = [0, 224], sizes = [8, 32], strides = [1, 1]} : vector<8x384xbf16> to vector<8x32xbf16>
    %61 = vector.extract_strided_slice %1 {offsets = [0, 352], sizes = [8, 32], strides = [1, 1]} : vector<8x384xbf16> to vector<8x32xbf16>
    "tpu.trace_start"() <{level = 10 : i32, message = "qd,kd->qk"}> : () -> ()
    %cst_16 = arith.constant dense<0.000000e+00> : vector<8x8xf32>
    %62 = tpu.matmul %59, %60, %cst_16 {dimension_numbers = #tpu.dot_dimension_numbers<[1], [1], [0], [0], [0, 0, 1, 0], [], []>} : vector<8x32xbf16>, vector<8x32xbf16>, vector<8x8xf32> -> vector<8x8xf32>
    %cst_17 = arith.constant -1.000000e+30 : f32
    "tpu.trace_stop"() : () -> ()
    %63 = vector.broadcast %cst_17 : f32 to vector<8x8xf32>
    %64 = arith.select %4, %62, %63 : vector<8x8xi1>, vector<8x8xf32>
    %cst_18 = arith.constant dense<0xFF800000> : vector<8xf32>
    %65 = vector.multi_reduction <maximumf>, %64, %cst_18 [1] : vector<8x8xf32> to vector<8xf32>
    %66 = vector.shape_cast %65 : vector<8xf32> to vector<8x1xf32>
    %67 = vector.broadcast %66 : vector<8x1xf32> to vector<8x8xf32>
    %68 = arith.subf %64, %67 : vector<8x8xf32>
    %69 = math.exp %68 : vector<8x8xf32>
    %cst_19 = arith.constant dense<0.000000e+00> : vector<8xf32>
    %70 = vector.multi_reduction <add>, %69, %cst_19 [1] : vector<8x8xf32> to vector<8xf32>
    %71 = vector.shape_cast %70 : vector<8xf32> to vector<8x1xf32>
    %72 = tpu.reciprocal %71 {approx = true} : vector<8x1xf32> -> vector<8x1xf32>
    %73 = vector.broadcast %72 : vector<8x1xf32> to vector<8x8xf32>
    %74 = arith.mulf %69, %73 : vector<8x8xf32>
    %75 = arith.truncf %74 : vector<8x8xf32> to vector<8x8xbf16>
    %cst_20 = arith.constant dense<0.000000e+00> : vector<8x32xf32>
    %76 = tpu.matmul %75, %61, %cst_20 {dimension_numbers = #tpu.dot_dimension_numbers<[1], [0], [0], [1], [0, 0, 1, 1], [], []>} : vector<8x8xbf16>, vector<8x32xbf16>, vector<8x32xf32> -> vector<8x32xf32>
    %77 = tpu.concatenate %22, %40, %58, %76 in 1 : vector<8x32xf32>, vector<8x32xf32>, vector<8x32xf32>, vector<8x32xf32> -> vector<8x128xf32>
    %78 = arith.truncf %77 : vector<8x128xf32> to vector<8x128xbf16>
    %c0_21 = arith.constant 0 : index
    %c0_22 = arith.constant 0 : index
    %c0_23 = arith.constant 0 : index
    %79 = vector.load %arg2[%c0_21, %c0_22, %c0_23] : memref<1x8x128xbf16, #tpu.memory_space<vmem>>, vector<1x8x128xbf16>
    %80 = vector.shape_cast %79 : vector<1x8x128xbf16> to vector<8x128xbf16>
    %81 = vector.shape_cast %78 : vector<8x128xbf16> to vector<1x8x128xbf16>
    tpu.vector_store %arg2[%c0_21, %c0_22, %c0_23], %81 {strides = array<i32>} : memref<1x8x128xbf16, #tpu.memory_space<vmem>>, vector<1x8x128xbf16>,
    return
  }
  func.func @transform_0(%arg0: i32) -> (i32, i32, i32) {
    %c0_i32 = arith.constant 0 : i32
    %c0_i32_0 = arith.constant 0 : i32
    %c0_i32_1 = arith.constant 0 : i32
    return %arg0, %c0_i32, %c0_i32_0 : i32, i32, i32
  }
  func.func @transform_1(%arg0: i32) -> (i32, i32, i32) {
    %c0_i32 = arith.constant 0 : i32
    %c0_i32_0 = arith.constant 0 : i32
    %c0_i32_1 = arith.constant 0 : i32
    return %arg0, %c0_i32, %c0_i32_0 : i32, i32, i32
  }
}

module attributes {stable_mosaic.version = 11 : i64} {
  func.func @kernel(%arg0: i32, %arg1: i32, %arg2: memref<8x128xbf16, #tpu.memory_space<vmem>>, %arg3: memref<1x128xf32, #tpu.memory_space<vmem>>, %arg4: memref<1x128xf32, #tpu.memory_space<vmem>>, %arg5: memref<128x384xbf16, #tpu.memory_space<vmem>>, %arg6: memref<1x384xf32, #tpu.memory_space<vmem>>, %arg7: memref<8x384xbf16, #tpu.memory_space<vmem>>, %arg8: memref<8x128xbf16, #tpu.memory_space<vmem>>) attributes {dimension_semantics = [#tpu.dimension_semantics<parallel>, #tpu.dimension_semantics<arbitrary>], iteration_bounds = array<i64: 2, 1>, scalar_prefetch = 0 : i64, scratch_operands = 1 : i64, tpu.core_type = #tpu.core_type<tc>, window_params = [{transform_indices = @transform_0, window_bounds = array<i64: 8, 128>}, {pipeline_mode = #tpu.pipeline_mode<synchronous>, transform_indices = @transform_1, window_bounds = array<i64: 1, 128>}, {pipeline_mode = #tpu.pipeline_mode<synchronous>, transform_indices = @transform_2, window_bounds = array<i64: 1, 128>}, {transform_indices = @transform_3, window_bounds = array<i64: 128, 384>}, {transform_indices = @transform_4, window_bounds = array<i64: 1, 384>}, {transform_indices = @transform_5, window_bounds = array<i64: 8, 384>}]} {
    %c0_i32 = arith.constant 0 : i32
    %0 = arith.cmpi eq, %arg1, %c0_i32 : i32
    %1 = arith.extui %0 : i1 to i32
    %c0_i32_0 = arith.constant 0 : i32
    %2 = arith.cmpi ne, %1, %c0_i32_0 : i32
    scf.if %2 {
      %c0_8 = arith.constant 0 : index
      %c0_9 = arith.constant 0 : index
      %11 = vector.load %arg2[%c0_8, %c0_9] : memref<8x128xbf16, #tpu.memory_space<vmem>>, vector<8x128xbf16>
      %12 = arith.extf %11 : vector<8x128xbf16> to vector<8x128xf32>
      %cst_10 = arith.constant dense<0.000000e+00> : vector<8xf32>
      %13 = vector.multi_reduction <add>, %12, %cst_10 [1] : vector<8x128xf32> to vector<8xf32>
      %14 = vector.shape_cast %13 : vector<8xf32> to vector<8x1xf32>
      %cst_11 = arith.constant 1.280000e+02 : f32
      %15 = vector.broadcast %cst_11 : f32 to vector<8x1xf32>
      %16 = arith.divf %14, %15 : vector<8x1xf32>
      %17 = vector.broadcast %16 : vector<8x1xf32> to vector<8x128xf32>
      %18 = arith.subf %12, %17 : vector<8x128xf32>
      %19 = arith.mulf %18, %18 : vector<8x128xf32>
      %cst_12 = arith.constant dense<0.000000e+00> : vector<8xf32>
      %20 = vector.multi_reduction <add>, %19, %cst_12 [1] : vector<8x128xf32> to vector<8xf32>
      %21 = vector.shape_cast %20 : vector<8xf32> to vector<8x1xf32>
      %cst_13 = arith.constant 1.280000e+02 : f32
      %22 = vector.broadcast %cst_13 : f32 to vector<8x1xf32>
      %23 = arith.divf %21, %22 : vector<8x1xf32>
      %24 = vector.broadcast %16 : vector<8x1xf32> to vector<8x128xf32>
      %25 = arith.subf %12, %24 : vector<8x128xf32>
      %cst_14 = arith.constant 9.99999974E-6 : f32
      %26 = vector.broadcast %cst_14 : f32 to vector<8x1xf32>
      %27 = arith.addf %23, %26 : vector<8x1xf32>
      %28 = math.rsqrt %27 : vector<8x1xf32>
      %29 = vector.broadcast %28 : vector<8x1xf32> to vector<8x128xf32>
      %30 = arith.mulf %25, %29 : vector<8x128xf32>
      %c0_15 = arith.constant 0 : index
      %c0_16 = arith.constant 0 : index
      %31 = vector.load %arg3[%c0_15, %c0_16] : memref<1x128xf32, #tpu.memory_space<vmem>>, vector<1x128xf32>
      %32 = vector.broadcast %31 : vector<1x128xf32> to vector<8x128xf32>
      %33 = arith.mulf %30, %32 : vector<8x128xf32>
      %c0_17 = arith.constant 0 : index
      %c0_18 = arith.constant 0 : index
      %34 = vector.load %arg4[%c0_17, %c0_18] : memref<1x128xf32, #tpu.memory_space<vmem>>, vector<1x128xf32>
      %35 = vector.broadcast %34 : vector<1x128xf32> to vector<8x128xf32>
      %36 = arith.addf %33, %35 : vector<8x128xf32>
      %37 = arith.truncf %36 : vector<8x128xf32> to vector<8x128xbf16>
      %c0_19 = arith.constant 0 : index
      %c0_20 = arith.constant 0 : index
      %38 = vector.load %arg8[%c0_19, %c0_20] : memref<8x128xbf16, #tpu.memory_space<vmem>>, vector<8x128xbf16>
      tpu.vector_store %arg8[%c0_19, %c0_20], %37 {strides = array<i32>} : memref<8x128xbf16, #tpu.memory_space<vmem>>, vector<8x128xbf16>,
    } else {
    }
    %c0 = arith.constant 0 : index
    %c0_1 = arith.constant 0 : index
    %3 = vector.load %arg8[%c0, %c0_1] : memref<8x128xbf16, #tpu.memory_space<vmem>>, vector<8x128xbf16>
    %c0_2 = arith.constant 0 : index
    %c0_3 = arith.constant 0 : index
    %4 = vector.load %arg5[%c0_2, %c0_3] : memref<128x384xbf16, #tpu.memory_space<vmem>>, vector<128x384xbf16>
    %cst = arith.constant dense<0.000000e+00> : vector<8x384xf32>
    %5 = tpu.matmul %3, %4, %cst {dimension_numbers = #tpu.dot_dimension_numbers<[1], [0], [0], [1], [0, 0, 1, 1], [], []>} : vector<8x128xbf16>, vector<128x384xbf16>, vector<8x384xf32> -> vector<8x384xf32>
    %c0_4 = arith.constant 0 : index
    %c0_5 = arith.constant 0 : index
    %6 = vector.load %arg6[%c0_4, %c0_5] : memref<1x384xf32, #tpu.memory_space<vmem>>, vector<1x384xf32>
    %7 = vector.broadcast %6 : vector<1x384xf32> to vector<8x384xf32>
    %8 = arith.addf %5, %7 : vector<8x384xf32>
    %9 = arith.truncf %8 : vector<8x384xf32> to vector<8x384xbf16>
    %c0_6 = arith.constant 0 : index
    %c0_7 = arith.constant 0 : index
    %10 = vector.load %arg7[%c0_6, %c0_7] : memref<8x384xbf16, #tpu.memory_space<vmem>>, vector<8x384xbf16>
    tpu.vector_store %arg7[%c0_6, %c0_7], %9 {strides = array<i32>} : memref<8x384xbf16, #tpu.memory_space<vmem>>, vector<8x384xbf16>,
    return
  }
  func.func @transform_0(%arg0: i32, %arg1: i32) -> (i32, i32) {
    %c0_i32 = arith.constant 0 : i32
    %c0_i32_0 = arith.constant 0 : i32
    return %arg0, %c0_i32 : i32, i32
  }
  func.func @transform_1(%arg0: i32, %arg1: i32) -> (i32, i32) {
    %c0_i32 = arith.constant 0 : i32
    %c0_i32_0 = arith.constant 0 : i32
    %c0_i32_1 = arith.constant 0 : i32
    return %c0_i32, %c0_i32_0 : i32, i32
  }
  func.func @transform_2(%arg0: i32, %arg1: i32) -> (i32, i32) {
    %c0_i32 = arith.constant 0 : i32
    %c0_i32_0 = arith.constant 0 : i32
    %c0_i32_1 = arith.constant 0 : i32
    return %c0_i32, %c0_i32_0 : i32, i32
  }
  func.func @transform_3(%arg0: i32, %arg1: i32) -> (i32, i32) {
    %c0_i32 = arith.constant 0 : i32
    %c0_i32_0 = arith.constant 0 : i32
    return %c0_i32, %arg1 : i32, i32
  }
  func.func @transform_4(%arg0: i32, %arg1: i32) -> (i32, i32) {
    %c0_i32 = arith.constant 0 : i32
    %c0_i32_0 = arith.constant 0 : i32
    return %c0_i32, %arg1 : i32, i32
  }
  func.func @transform_5(%arg0: i32, %arg1: i32) -> (i32, i32) {
    %c0_i32 = arith.constant 0 : i32
    return %arg0, %arg1 : i32, i32
  }
}

module attributes {stable_mosaic.version = 11 : i64} {
  func.func @kernel(%arg0: i32, %arg1: i32, %arg2: memref<8x512xbf16, #tpu.memory_space<vmem>>, %arg3: memref<512x128xbf16, #tpu.memory_space<vmem>>, %arg4: memref<1x128xf32, #tpu.memory_space<vmem>>, %arg5: memref<8x128xbf16, #tpu.memory_space<vmem>>, %arg6: memref<8x128xbf16, #tpu.memory_space<vmem>>) attributes {dimension_semantics = [#tpu.dimension_semantics<parallel>, #tpu.dimension_semantics<parallel>], iteration_bounds = array<i64: 2, 1>, scalar_prefetch = 0 : i64, scratch_operands = 0 : i64, tpu.core_type = #tpu.core_type<tc>, window_params = [{transform_indices = @transform_0, window_bounds = array<i64: 8, 512>}, {transform_indices = @transform_1, window_bounds = array<i64: 512, 128>}, {transform_indices = @transform_2, window_bounds = array<i64: 1, 128>}, {transform_indices = @transform_3, window_bounds = array<i64: 8, 128>}, {transform_indices = @transform_4, window_bounds = array<i64: 8, 128>}]} {
    %c0 = arith.constant 0 : index
    %c0_0 = arith.constant 0 : index
    %0 = vector.load %arg2[%c0, %c0_0] : memref<8x512xbf16, #tpu.memory_space<vmem>>, vector<8x512xbf16>
    %c0_1 = arith.constant 0 : index
    %c0_2 = arith.constant 0 : index
    %1 = vector.load %arg3[%c0_1, %c0_2] : memref<512x128xbf16, #tpu.memory_space<vmem>>, vector<512x128xbf16>
    %cst = arith.constant dense<0.000000e+00> : vector<8x128xf32>
    %2 = tpu.matmul %0, %1, %cst {dimension_numbers = #tpu.dot_dimension_numbers<[1], [0], [0], [1], [0, 0, 1, 1], [], []>} : vector<8x512xbf16>, vector<512x128xbf16>, vector<8x128xf32> -> vector<8x128xf32>
    %c0_3 = arith.constant 0 : index
    %c0_4 = arith.constant 0 : index
    %3 = vector.load %arg4[%c0_3, %c0_4] : memref<1x128xf32, #tpu.memory_space<vmem>>, vector<1x128xf32>
    %4 = vector.broadcast %3 : vector<1x128xf32> to vector<8x128xf32>
    %5 = arith.addf %2, %4 : vector<8x128xf32>
    %c0_5 = arith.constant 0 : index
    %c0_6 = arith.constant 0 : index
    %6 = vector.load %arg5[%c0_5, %c0_6] : memref<8x128xbf16, #tpu.memory_space<vmem>>, vector<8x128xbf16>
    %7 = arith.extf %6 : vector<8x128xbf16> to vector<8x128xf32>
    %8 = arith.addf %5, %7 : vector<8x128xf32>
    %9 = arith.truncf %8 : vector<8x128xf32> to vector<8x128xbf16>
    %c0_7 = arith.constant 0 : index
    %c0_8 = arith.constant 0 : index
    %10 = vector.load %arg6[%c0_7, %c0_8] : memref<8x128xbf16, #tpu.memory_space<vmem>>, vector<8x128xbf16>
    tpu.vector_store %arg6[%c0_7, %c0_8], %9 {strides = array<i32>} : memref<8x128xbf16, #tpu.memory_space<vmem>>, vector<8x128xbf16>,
    return
  }
  func.func @transform_0(%arg0: i32, %arg1: i32) -> (i32, i32) {
    %c0_i32 = arith.constant 0 : i32
    %c0_i32_0 = arith.constant 0 : i32
    return %arg0, %c0_i32 : i32, i32
  }
  func.func @transform_1(%arg0: i32, %arg1: i32) -> (i32, i32) {
    %c0_i32 = arith.constant 0 : i32
    %c0_i32_0 = arith.constant 0 : i32
    return %c0_i32, %arg1 : i32, i32
  }
  func.func @transform_2(%arg0: i32, %arg1: i32) -> (i32, i32) {
    %c0_i32 = arith.constant 0 : i32
    %c0_i32_0 = arith.constant 0 : i32
    return %c0_i32, %arg1 : i32, i32
  }
  func.func @transform_3(%arg0: i32, %arg1: i32) -> (i32, i32) {
    %c0_i32 = arith.constant 0 : i32
    return %arg0, %arg1 : i32, i32
  }
  func.func @transform_4(%arg0: i32, %arg1: i32) -> (i32, i32) {
    %c0_i32 = arith.constant 0 : i32
    return %arg0, %arg1 : i32, i32
  }
}

module attributes {stable_mosaic.version = 11 : i64} {
  func.func @kernel(%arg0: i32, %arg1: i32, %arg2: memref<8x128xbf16, #tpu.memory_space<vmem>>, %arg3: memref<1x128xf32, #tpu.memory_space<vmem>>, %arg4: memref<1x128xf32, #tpu.memory_space<vmem>>, %arg5: memref<128x384xbf16, #tpu.memory_space<vmem>>, %arg6: memref<1x384xf32, #tpu.memory_space<vmem>>, %arg7: memref<8x384xbf16, #tpu.memory_space<vmem>>, %arg8: memref<8x128xbf16, #tpu.memory_space<vmem>>) attributes {dimension_semantics = [#tpu.dimension_semantics<parallel>, #tpu.dimension_semantics<arbitrary>], iteration_bounds = array<i64: 2, 1>, scalar_prefetch = 0 : i64, scratch_operands = 1 : i64, tpu.core_type = #tpu.core_type<tc>, window_params = [{transform_indices = @transform_0, window_bounds = array<i64: 8, 128>}, {pipeline_mode = #tpu.pipeline_mode<synchronous>, transform_indices = @transform_1, window_bounds = array<i64: 1, 128>}, {pipeline_mode = #tpu.pipeline_mode<synchronous>, transform_indices = @transform_2, window_bounds = array<i64: 1, 128>}, {transform_indices = @transform_3, window_bounds = array<i64: 128, 384>}, {transform_indices = @transform_4, window_bounds = array<i64: 1, 384>}, {transform_indices = @transform_5, window_bounds = array<i64: 8, 384>}]} {
    %c0_i32 = arith.constant 0 : i32
    %0 = arith.cmpi eq, %arg1, %c0_i32 : i32
    %1 = arith.extui %0 : i1 to i32
    %c0_i32_0 = arith.constant 0 : i32
    %2 = arith.cmpi ne, %1, %c0_i32_0 : i32
    scf.if %2 {
      %c0_8 = arith.constant 0 : index
      %c0_9 = arith.constant 0 : index
      %11 = vector.load %arg2[%c0_8, %c0_9] : memref<8x128xbf16, #tpu.memory_space<vmem>>, vector<8x128xbf16>
      %12 = arith.extf %11 : vector<8x128xbf16> to vector<8x128xf32>
      %cst_10 = arith.constant dense<0.000000e+00> : vector<8xf32>
      %13 = vector.multi_reduction <add>, %12, %cst_10 [1] : vector<8x128xf32> to vector<8xf32>
      %14 = vector.shape_cast %13 : vector<8xf32> to vector<8x1xf32>
      %cst_11 = arith.constant 1.280000e+02 : f32
      %15 = vector.broadcast %cst_11 : f32 to vector<8x1xf32>
      %16 = arith.divf %14, %15 : vector<8x1xf32>
      %17 = vector.broadcast %16 : vector<8x1xf32> to vector<8x128xf32>
      %18 = arith.subf %12, %17 : vector<8x128xf32>
      %19 = arith.mulf %18, %18 : vector<8x128xf32>
      %cst_12 = arith.constant dense<0.000000e+00> : vector<8xf32>
      %20 = vector.multi_reduction <add>, %19, %cst_12 [1] : vector<8x128xf32> to vector<8xf32>
      %21 = vector.shape_cast %20 : vector<8xf32> to vector<8x1xf32>
      %cst_13 = arith.constant 1.280000e+02 : f32
      %22 = vector.broadcast %cst_13 : f32 to vector<8x1xf32>
      %23 = arith.divf %21, %22 : vector<8x1xf32>
      %24 = vector.broadcast %16 : vector<8x1xf32> to vector<8x128xf32>
      %25 = arith.subf %12, %24 : vector<8x128xf32>
      %cst_14 = arith.constant 9.99999974E-6 : f32
      %26 = vector.broadcast %cst_14 : f32 to vector<8x1xf32>
      %27 = arith.addf %23, %26 : vector<8x1xf32>
      %28 = math.rsqrt %27 : vector<8x1xf32>
      %29 = vector.broadcast %28 : vector<8x1xf32> to vector<8x128xf32>
      %30 = arith.mulf %25, %29 : vector<8x128xf32>
      %c0_15 = arith.constant 0 : index
      %c0_16 = arith.constant 0 : index
      %31 = vector.load %arg3[%c0_15, %c0_16] : memref<1x128xf32, #tpu.memory_space<vmem>>, vector<1x128xf32>
      %32 = vector.broadcast %31 : vector<1x128xf32> to vector<8x128xf32>
      %33 = arith.mulf %30, %32 : vector<8x128xf32>
      %c0_17 = arith.constant 0 : index
      %c0_18 = arith.constant 0 : index
      %34 = vector.load %arg4[%c0_17, %c0_18] : memref<1x128xf32, #tpu.memory_space<vmem>>, vector<1x128xf32>
      %35 = vector.broadcast %34 : vector<1x128xf32> to vector<8x128xf32>
      %36 = arith.addf %33, %35 : vector<8x128xf32>
      %37 = arith.truncf %36 : vector<8x128xf32> to vector<8x128xbf16>
      %c0_19 = arith.constant 0 : index
      %c0_20 = arith.constant 0 : index
      %38 = vector.load %arg8[%c0_19, %c0_20] : memref<8x128xbf16, #tpu.memory_space<vmem>>, vector<8x128xbf16>
      tpu.vector_store %arg8[%c0_19, %c0_20], %37 {strides = array<i32>} : memref<8x128xbf16, #tpu.memory_space<vmem>>, vector<8x128xbf16>,
    } else {
    }
    %c0 = arith.constant 0 : index
    %c0_1 = arith.constant 0 : index
    %3 = vector.load %arg8[%c0, %c0_1] : memref<8x128xbf16, #tpu.memory_space<vmem>>, vector<8x128xbf16>
    %c0_2 = arith.constant 0 : index
    %c0_3 = arith.constant 0 : index
    %4 = vector.load %arg5[%c0_2, %c0_3] : memref<128x384xbf16, #tpu.memory_space<vmem>>, vector<128x384xbf16>
    %cst = arith.constant dense<0.000000e+00> : vector<8x384xf32>
    %5 = tpu.matmul %3, %4, %cst {dimension_numbers = #tpu.dot_dimension_numbers<[1], [0], [0], [1], [0, 0, 1, 1], [], []>} : vector<8x128xbf16>, vector<128x384xbf16>, vector<8x384xf32> -> vector<8x384xf32>
    %c0_4 = arith.constant 0 : index
    %c0_5 = arith.constant 0 : index
    %6 = vector.load %arg6[%c0_4, %c0_5] : memref<1x384xf32, #tpu.memory_space<vmem>>, vector<1x384xf32>
    %7 = vector.broadcast %6 : vector<1x384xf32> to vector<8x384xf32>
    %8 = arith.addf %5, %7 : vector<8x384xf32>
    %9 = arith.truncf %8 : vector<8x384xf32> to vector<8x384xbf16>
    %c0_6 = arith.constant 0 : index
    %c0_7 = arith.constant 0 : index
    %10 = vector.load %arg7[%c0_6, %c0_7] : memref<8x384xbf16, #tpu.memory_space<vmem>>, vector<8x384xbf16>
    tpu.vector_store %arg7[%c0_6, %c0_7], %9 {strides = array<i32>} : memref<8x384xbf16, #tpu.memory_space<vmem>>, vector<8x384xbf16>,
    return
  }
  func.func @transform_0(%arg0: i32, %arg1: i32) -> (i32, i32) {
    %c0_i32 = arith.constant 0 : i32
    %c0_i32_0 = arith.constant 0 : i32
    return %arg0, %c0_i32 : i32, i32
  }
  func.func @transform_1(%arg0: i32, %arg1: i32) -> (i32, i32) {
    %c0_i32 = arith.constant 0 : i32
    %c0_i32_0 = arith.constant 0 : i32
    %c0_i32_1 = arith.constant 0 : i32
    return %c0_i32, %c0_i32_0 : i32, i32
  }
  func.func @transform_2(%arg0: i32, %arg1: i32) -> (i32, i32) {
    %c0_i32 = arith.constant 0 : i32
    %c0_i32_0 = arith.constant 0 : i32
    %c0_i32_1 = arith.constant 0 : i32
    return %c0_i32, %c0_i32_0 : i32, i32
  }
  func.func @transform_3(%arg0: i32, %arg1: i32) -> (i32, i32) {
    %c0_i32 = arith.constant 0 : i32
    %c0_i32_0 = arith.constant 0 : i32
    return %c0_i32, %arg1 : i32, i32
  }
  func.func @transform_4(%arg0: i32, %arg1: i32) -> (i32, i32) {
    %c0_i32 = arith.constant 0 : i32
    %c0_i32_0 = arith.constant 0 : i32
    return %c0_i32, %arg1 : i32, i32
  }
  func.func @transform_5(%arg0: i32, %arg1: i32) -> (i32, i32) {
    %c0_i32 = arith.constant 0 : i32
    return %arg0, %arg1 : i32, i32
  }
}

module attributes {stable_mosaic.version = 11 : i64} {
  func.func @kernel(%arg0: i32, %arg1: i32, %arg2: memref<8x128xbf16, #tpu.memory_space<vmem>>, %arg3: memref<1x128xf32, #tpu.memory_space<vmem>>, %arg4: memref<1x128xf32, #tpu.memory_space<vmem>>, %arg5: memref<128x512xbf16, #tpu.memory_space<vmem>>, %arg6: memref<1x512xf32, #tpu.memory_space<vmem>>, %arg7: memref<8x512xbf16, #tpu.memory_space<vmem>>, %arg8: memref<8x128xbf16, #tpu.memory_space<vmem>>) attributes {dimension_semantics = [#tpu.dimension_semantics<parallel>, #tpu.dimension_semantics<arbitrary>], iteration_bounds = array<i64: 2, 1>, scalar_prefetch = 0 : i64, scratch_operands = 1 : i64, tpu.core_type = #tpu.core_type<tc>, window_params = [{transform_indices = @transform_0, window_bounds = array<i64: 8, 128>}, {pipeline_mode = #tpu.pipeline_mode<synchronous>, transform_indices = @transform_1, window_bounds = array<i64: 1, 128>}, {pipeline_mode = #tpu.pipeline_mode<synchronous>, transform_indices = @transform_2, window_bounds = array<i64: 1, 128>}, {transform_indices = @transform_3, window_bounds = array<i64: 128, 512>}, {transform_indices = @transform_4, window_bounds = array<i64: 1, 512>}, {transform_indices = @transform_5, window_bounds = array<i64: 8, 512>}]} {
    %c0_i32 = arith.constant 0 : i32
    %0 = arith.cmpi eq, %arg1, %c0_i32 : i32
    %1 = arith.extui %0 : i1 to i32
    %c0_i32_0 = arith.constant 0 : i32
    %2 = arith.cmpi ne, %1, %c0_i32_0 : i32
    scf.if %2 {
      %c0_12 = arith.constant 0 : index
      %c0_13 = arith.constant 0 : index
      %24 = vector.load %arg2[%c0_12, %c0_13] : memref<8x128xbf16, #tpu.memory_space<vmem>>, vector<8x128xbf16>
      %25 = arith.extf %24 : vector<8x128xbf16> to vector<8x128xf32>
      %cst_14 = arith.constant dense<0.000000e+00> : vector<8xf32>
      %26 = vector.multi_reduction <add>, %25, %cst_14 [1] : vector<8x128xf32> to vector<8xf32>
      %27 = vector.shape_cast %26 : vector<8xf32> to vector<8x1xf32>
      %cst_15 = arith.constant 1.280000e+02 : f32
      %28 = vector.broadcast %cst_15 : f32 to vector<8x1xf32>
      %29 = arith.divf %27, %28 : vector<8x1xf32>
      %30 = vector.broadcast %29 : vector<8x1xf32> to vector<8x128xf32>
      %31 = arith.subf %25, %30 : vector<8x128xf32>
      %32 = arith.mulf %31, %31 : vector<8x128xf32>
      %cst_16 = arith.constant dense<0.000000e+00> : vector<8xf32>
      %33 = vector.multi_reduction <add>, %32, %cst_16 [1] : vector<8x128xf32> to vector<8xf32>
      %34 = vector.shape_cast %33 : vector<8xf32> to vector<8x1xf32>
      %cst_17 = arith.constant 1.280000e+02 : f32
      %35 = vector.broadcast %cst_17 : f32 to vector<8x1xf32>
      %36 = arith.divf %34, %35 : vector<8x1xf32>
      %37 = vector.broadcast %29 : vector<8x1xf32> to vector<8x128xf32>
      %38 = arith.subf %25, %37 : vector<8x128xf32>
      %cst_18 = arith.constant 9.99999974E-6 : f32
      %39 = vector.broadcast %cst_18 : f32 to vector<8x1xf32>
      %40 = arith.addf %36, %39 : vector<8x1xf32>
      %41 = math.rsqrt %40 : vector<8x1xf32>
      %42 = vector.broadcast %41 : vector<8x1xf32> to vector<8x128xf32>
      %43 = arith.mulf %38, %42 : vector<8x128xf32>
      %c0_19 = arith.constant 0 : index
      %c0_20 = arith.constant 0 : index
      %44 = vector.load %arg3[%c0_19, %c0_20] : memref<1x128xf32, #tpu.memory_space<vmem>>, vector<1x128xf32>
      %45 = vector.broadcast %44 : vector<1x128xf32> to vector<8x128xf32>
      %46 = arith.mulf %43, %45 : vector<8x128xf32>
      %c0_21 = arith.constant 0 : index
      %c0_22 = arith.constant 0 : index
      %47 = vector.load %arg4[%c0_21, %c0_22] : memref<1x128xf32, #tpu.memory_space<vmem>>, vector<1x128xf32>
      %48 = vector.broadcast %47 : vector<1x128xf32> to vector<8x128xf32>
      %49 = arith.addf %46, %48 : vector<8x128xf32>
      %50 = arith.truncf %49 : vector<8x128xf32> to vector<8x128xbf16>
      %c0_23 = arith.constant 0 : index
      %c0_24 = arith.constant 0 : index
      %51 = vector.load %arg8[%c0_23, %c0_24] : memref<8x128xbf16, #tpu.memory_space<vmem>>, vector<8x128xbf16>
      tpu.vector_store %arg8[%c0_23, %c0_24], %50 {strides = array<i32>} : memref<8x128xbf16, #tpu.memory_space<vmem>>, vector<8x128xbf16>,
    } else {
    }
    %c0 = arith.constant 0 : index
    %c0_1 = arith.constant 0 : index
    %3 = vector.load %arg8[%c0, %c0_1] : memref<8x128xbf16, #tpu.memory_space<vmem>>, vector<8x128xbf16>
    %c0_2 = arith.constant 0 : index
    %c0_3 = arith.constant 0 : index
    %4 = vector.load %arg5[%c0_2, %c0_3] : memref<128x512xbf16, #tpu.memory_space<vmem>>, vector<128x512xbf16>
    %cst = arith.constant dense<0.000000e+00> : vector<8x512xf32>
    %5 = tpu.matmul %3, %4, %cst {dimension_numbers = #tpu.dot_dimension_numbers<[1], [0], [0], [1], [0, 0, 1, 1], [], []>} : vector<8x128xbf16>, vector<128x512xbf16>, vector<8x512xf32> -> vector<8x512xf32>
    %c0_4 = arith.constant 0 : index
    %c0_5 = arith.constant 0 : index
    %6 = vector.load %arg6[%c0_4, %c0_5] : memref<1x512xf32, #tpu.memory_space<vmem>>, vector<1x512xf32>
    %7 = vector.broadcast %6 : vector<1x512xf32> to vector<8x512xf32>
    %8 = arith.addf %5, %7 : vector<8x512xf32>
    %cst_6 = arith.constant 5.000000e-01 : f32
    %9 = vector.broadcast %cst_6 : f32 to vector<8x512xf32>
    %10 = arith.mulf %9, %8 : vector<8x512xf32>
    %cst_7 = arith.constant 4.471500e-02 : f32
    %11 = vector.broadcast %cst_7 : f32 to vector<8x512xf32>
    %12 = arith.mulf %11, %8 : vector<8x512xf32>
    %13 = arith.mulf %12, %8 : vector<8x512xf32>
    %14 = arith.mulf %13, %8 : vector<8x512xf32>
    %15 = arith.addf %8, %14 : vector<8x512xf32>
    %cst_8 = arith.constant 0.797884583 : f32
    %16 = vector.broadcast %cst_8 : f32 to vector<8x512xf32>
    %17 = arith.mulf %16, %15 : vector<8x512xf32>
    %18 = math.tanh %17 : vector<8x512xf32>
    %cst_9 = arith.constant 1.000000e+00 : f32
    %19 = vector.broadcast %cst_9 : f32 to vector<8x512xf32>
    %20 = arith.addf %19, %18 : vector<8x512xf32>
    %21 = arith.mulf %10, %20 : vector<8x512xf32>
    %22 = arith.truncf %21 : vector<8x512xf32> to vector<8x512xbf16>
    %c0_10 = arith.constant 0 : index
    %c0_11 = arith.constant 0 : index
    %23 = vector.load %arg7[%c0_10, %c0_11] : memref<8x512xbf16, #tpu.memory_space<vmem>>, vector<8x512xbf16>
    tpu.vector_store %arg7[%c0_10, %c0_11], %22 {strides = array<i32>} : memref<8x512xbf16, #tpu.memory_space<vmem>>, vector<8x512xbf16>,
    return
  }
  func.func @transform_0(%arg0: i32, %arg1: i32) -> (i32, i32) {
    %c0_i32 = arith.constant 0 : i32
    %c0_i32_0 = arith.constant 0 : i32
    return %arg0, %c0_i32 : i32, i32
  }
  func.func @transform_1(%arg0: i32, %arg1: i32) -> (i32, i32) {
    %c0_i32 = arith.constant 0 : i32
    %c0_i32_0 = arith.constant 0 : i32
    %c0_i32_1 = arith.constant 0 : i32
    return %c0_i32, %c0_i32_0 : i32, i32
  }
  func.func @transform_2(%arg0: i32, %arg1: i32) -> (i32, i32) {
    %c0_i32 = arith.constant 0 : i32
    %c0_i32_0 = arith.constant 0 : i32
    %c0_i32_1 = arith.constant 0 : i32
    return %c0_i32, %c0_i32_0 : i32, i32
  }
  func.func @transform_3(%arg0: i32, %arg1: i32) -> (i32, i32) {
    %c0_i32 = arith.constant 0 : i32
    %c0_i32_0 = arith.constant 0 : i32
    return %c0_i32, %arg1 : i32, i32
  }
  func.func @transform_4(%arg0: i32, %arg1: i32) -> (i32, i32) {
    %c0_i32 = arith.constant 0 : i32
    %c0_i32_0 = arith.constant 0 : i32
    return %c0_i32, %arg1 : i32, i32
  }
  func.func @transform_5(%arg0: i32, %arg1: i32) -> (i32, i32) {
    %c0_i32 = arith.constant 0 : i32
    return %arg0, %arg1 : i32, i32
  }
}

module attributes {stable_mosaic.version = 11 : i64} {
  func.func @_lmhead_ce_kernel(%arg0: i32, %arg1: i32, %arg2: memref<8x128xbf16, #tpu.memory_space<vmem>>, %arg3: memref<1x128xf32, #tpu.memory_space<vmem>>, %arg4: memref<1x128xf32, #tpu.memory_space<vmem>>, %arg5: memref<128x256xbf16, #tpu.memory_space<vmem>>, %arg6: memref<8x1xi32, #tpu.memory_space<vmem>>, %arg7: memref<8x256xf32, #tpu.memory_space<vmem>>, %arg8: memref<8x1xf32, #tpu.memory_space<vmem>>, %arg9: memref<8x128xbf16, #tpu.memory_space<vmem>>, %arg10: memref<8x1xf32, #tpu.memory_space<vmem>>, %arg11: memref<8x1xf32, #tpu.memory_space<vmem>>, %arg12: memref<8x1xf32, #tpu.memory_space<vmem>>) attributes {dimension_semantics = [#tpu.dimension_semantics<parallel>, #tpu.dimension_semantics<arbitrary>], iteration_bounds = array<i64: 2, 1>, scalar_prefetch = 0 : i64, scratch_operands = 4 : i64, tpu.core_type = #tpu.core_type<tc>, window_params = [{transform_indices = @transform_0, window_bounds = array<i64: 8, 128>}, {pipeline_mode = #tpu.pipeline_mode<synchronous>, transform_indices = @transform_1, window_bounds = array<i64: 1, 128>}, {pipeline_mode = #tpu.pipeline_mode<synchronous>, transform_indices = @transform_2, window_bounds = array<i64: 1, 128>}, {transform_indices = @transform_3, window_bounds = array<i64: 128, 256>}, {transform_indices = @transform_4, window_bounds = array<i64: 8, 1>}, {transform_indices = @transform_5, window_bounds = array<i64: 8, 256>}, {transform_indices = @transform_6, window_bounds = array<i64: 8, 1>}]} {
    %c0_i32 = arith.constant 0 : i32
    %0 = arith.cmpi eq, %arg1, %c0_i32 : i32
    %1 = arith.extui %0 : i1 to i32
    %c0_i32_0 = arith.constant 0 : i32
    %2 = arith.cmpi ne, %1, %c0_i32_0 : i32
    scf.if %2 {
      %c0_28 = arith.constant 0 : index
      %c0_29 = arith.constant 0 : index
      %44 = vector.load %arg2[%c0_28, %c0_29] : memref<8x128xbf16, #tpu.memory_space<vmem>>, vector<8x128xbf16>
      %45 = arith.extf %44 : vector<8x128xbf16> to vector<8x128xf32>
      %cst_30 = arith.constant dense<0.000000e+00> : vector<8xf32>
      %46 = vector.multi_reduction <add>, %45, %cst_30 [1] : vector<8x128xf32> to vector<8xf32>
      %47 = vector.shape_cast %46 : vector<8xf32> to vector<8x1xf32>
      %cst_31 = arith.constant 1.280000e+02 : f32
      %48 = vector.broadcast %cst_31 : f32 to vector<8x1xf32>
      %49 = arith.divf %47, %48 : vector<8x1xf32>
      %50 = vector.broadcast %49 : vector<8x1xf32> to vector<8x128xf32>
      %51 = arith.subf %45, %50 : vector<8x128xf32>
      %52 = arith.mulf %51, %51 : vector<8x128xf32>
      %cst_32 = arith.constant dense<0.000000e+00> : vector<8xf32>
      %53 = vector.multi_reduction <add>, %52, %cst_32 [1] : vector<8x128xf32> to vector<8xf32>
      %54 = vector.shape_cast %53 : vector<8xf32> to vector<8x1xf32>
      %cst_33 = arith.constant 1.280000e+02 : f32
      %55 = vector.broadcast %cst_33 : f32 to vector<8x1xf32>
      %56 = arith.divf %54, %55 : vector<8x1xf32>
      %57 = vector.broadcast %49 : vector<8x1xf32> to vector<8x128xf32>
      %58 = arith.subf %45, %57 : vector<8x128xf32>
      %cst_34 = arith.constant 9.99999974E-6 : f32
      %59 = vector.broadcast %cst_34 : f32 to vector<8x1xf32>
      %60 = arith.addf %56, %59 : vector<8x1xf32>
      %61 = math.rsqrt %60 : vector<8x1xf32>
      %62 = vector.broadcast %61 : vector<8x1xf32> to vector<8x128xf32>
      %63 = arith.mulf %58, %62 : vector<8x128xf32>
      %c0_35 = arith.constant 0 : index
      %c0_36 = arith.constant 0 : index
      %64 = vector.load %arg3[%c0_35, %c0_36] : memref<1x128xf32, #tpu.memory_space<vmem>>, vector<1x128xf32>
      %65 = vector.broadcast %64 : vector<1x128xf32> to vector<8x128xf32>
      %66 = arith.mulf %63, %65 : vector<8x128xf32>
      %c0_37 = arith.constant 0 : index
      %c0_38 = arith.constant 0 : index
      %67 = vector.load %arg4[%c0_37, %c0_38] : memref<1x128xf32, #tpu.memory_space<vmem>>, vector<1x128xf32>
      %68 = vector.broadcast %67 : vector<1x128xf32> to vector<8x128xf32>
      %69 = arith.addf %66, %68 : vector<8x128xf32>
      %70 = arith.truncf %69 : vector<8x128xf32> to vector<8x128xbf16>
      %c0_39 = arith.constant 0 : index
      %c0_40 = arith.constant 0 : index
      %71 = vector.load %arg9[%c0_39, %c0_40] : memref<8x128xbf16, #tpu.memory_space<vmem>>, vector<8x128xbf16>
      tpu.vector_store %arg9[%c0_39, %c0_40], %70 {strides = array<i32>} : memref<8x128xbf16, #tpu.memory_space<vmem>>, vector<8x128xbf16>,
      %cst_41 = arith.constant -1.000000e+30 : f32
      %72 = vector.broadcast %cst_41 : f32 to vector<8x1xf32>
      %c0_42 = arith.constant 0 : index
      %c0_43 = arith.constant 0 : index
      %73 = vector.load %arg10[%c0_42, %c0_43] : memref<8x1xf32, #tpu.memory_space<vmem>>, vector<8x1xf32>
      tpu.vector_store %arg10[%c0_42, %c0_43], %72 {strides = array<i32>} : memref<8x1xf32, #tpu.memory_space<vmem>>, vector<8x1xf32>,
      %cst_44 = arith.constant 0.000000e+00 : f32
      %74 = vector.broadcast %cst_44 : f32 to vector<8x1xf32>
      %c0_45 = arith.constant 0 : index
      %c0_46 = arith.constant 0 : index
      %75 = vector.load %arg11[%c0_45, %c0_46] : memref<8x1xf32, #tpu.memory_space<vmem>>, vector<8x1xf32>
      tpu.vector_store %arg11[%c0_45, %c0_46], %74 {strides = array<i32>} : memref<8x1xf32, #tpu.memory_space<vmem>>, vector<8x1xf32>,
      %cst_47 = arith.constant 0.000000e+00 : f32
      %76 = vector.broadcast %cst_47 : f32 to vector<8x1xf32>
      %c0_48 = arith.constant 0 : index
      %c0_49 = arith.constant 0 : index
      %77 = vector.load %arg12[%c0_48, %c0_49] : memref<8x1xf32, #tpu.memory_space<vmem>>, vector<8x1xf32>
      tpu.vector_store %arg12[%c0_48, %c0_49], %76 {strides = array<i32>} : memref<8x1xf32, #tpu.memory_space<vmem>>, vector<8x1xf32>,
    } else {
    }
    %c0 = arith.constant 0 : index
    %c0_1 = arith.constant 0 : index
    %3 = vector.load %arg9[%c0, %c0_1] : memref<8x128xbf16, #tpu.memory_space<vmem>>, vector<8x128xbf16>
    %c0_2 = arith.constant 0 : index
    %c0_3 = arith.constant 0 : index
    %4 = vector.load %arg5[%c0_2, %c0_3] : memref<128x256xbf16, #tpu.memory_space<vmem>>, vector<128x256xbf16>
    %cst = arith.constant dense<0.000000e+00> : vector<8x256xf32>
    %5 = tpu.matmul %3, %4, %cst {dimension_numbers = #tpu.dot_dimension_numbers<[1], [0], [0], [1], [0, 0, 1, 1], [], []>} : vector<8x128xbf16>, vector<128x256xbf16>, vector<8x256xf32> -> vector<8x256xf32>
    %c0_4 = arith.constant 0 : index
    %c0_5 = arith.constant 0 : index
    %6 = vector.load %arg7[%c0_4, %c0_5] : memref<8x256xf32, #tpu.memory_space<vmem>>, vector<8x256xf32>
    tpu.vector_store %arg7[%c0_4, %c0_5], %5 {strides = array<i32>} : memref<8x256xf32, #tpu.memory_space<vmem>>, vector<8x256xf32>,
    %7 = tpu.iota {dimensions = array<i32: 1>} : vector<8x256xi32>
    %c256_i32 = arith.constant 256 : i32
    %8 = arith.muli %arg1, %c256_i32 : i32
    %9 = vector.broadcast %8 : i32 to vector<8x256xi32>
    %10 = arith.addi %7, %9 : vector<8x256xi32>
    %c256_i32_6 = arith.constant 256 : i32
    %11 = vector.broadcast %c256_i32_6 : i32 to vector<8x256xi32>
    %12 = arith.cmpi slt, %10, %11 : vector<8x256xi32>
    %cst_7 = arith.constant -1.000000e+30 : f32
    %13 = vector.broadcast %cst_7 : f32 to vector<8x256xf32>
    %14 = arith.select %12, %5, %13 : vector<8x256xi1>, vector<8x256xf32>
    %c0_8 = arith.constant 0 : index
    %c0_9 = arith.constant 0 : index
    %15 = vector.load %arg10[%c0_8, %c0_9] : memref<8x1xf32, #tpu.memory_space<vmem>>, vector<8x1xf32>
    %cst_10 = arith.constant dense<0xFF800000> : vector<8xf32>
    %16 = vector.multi_reduction <maximumf>, %14, %cst_10 [1] : vector<8x256xf32> to vector<8xf32>
    %17 = vector.shape_cast %16 : vector<8xf32> to vector<8x1xf32>
    %18 = arith.maximumf %15, %17 : vector<8x1xf32>
    %19 = arith.subf %15, %18 : vector<8x1xf32>
    %20 = math.exp %19 : vector<8x1xf32>
    %c0_11 = arith.constant 0 : index
    %c0_12 = arith.constant 0 : index
    %21 = vector.load %arg11[%c0_11, %c0_12] : memref<8x1xf32, #tpu.memory_space<vmem>>, vector<8x1xf32>
    %22 = arith.mulf %21, %20 : vector<8x1xf32>
    %23 = vector.broadcast %18 : vector<8x1xf32> to vector<8x256xf32>
    %24 = arith.subf %14, %23 : vector<8x256xf32>
    %25 = math.exp %24 : vector<8x256xf32>
    %cst_13 = arith.constant dense<0.000000e+00> : vector<8xf32>
    %26 = vector.multi_reduction <add>, %25, %cst_13 [1] : vector<8x256xf32> to vector<8xf32>
    %27 = vector.shape_cast %26 : vector<8xf32> to vector<8x1xf32>
    %28 = arith.addf %22, %27 : vector<8x1xf32>
    %c0_14 = arith.constant 0 : index
    %c0_15 = arith.constant 0 : index
    %29 = vector.load %arg11[%c0_14, %c0_15] : memref<8x1xf32, #tpu.memory_space<vmem>>, vector<8x1xf32>
    tpu.vector_store %arg11[%c0_14, %c0_15], %28 {strides = array<i32>} : memref<8x1xf32, #tpu.memory_space<vmem>>, vector<8x1xf32>,
    %c0_16 = arith.constant 0 : index
    %c0_17 = arith.constant 0 : index
    %30 = vector.load %arg10[%c0_16, %c0_17] : memref<8x1xf32, #tpu.memory_space<vmem>>, vector<8x1xf32>
    tpu.vector_store %arg10[%c0_16, %c0_17], %18 {strides = array<i32>} : memref<8x1xf32, #tpu.memory_space<vmem>>, vector<8x1xf32>,
    %c0_18 = arith.constant 0 : index
    %c0_19 = arith.constant 0 : index
    %31 = vector.load %arg6[%c0_18, %c0_19] : memref<8x1xi32, #tpu.memory_space<vmem>>, vector<8x1xi32>
    %c0_20 = arith.constant 0 : index
    %c0_21 = arith.constant 0 : index
    %32 = vector.load %arg12[%c0_20, %c0_21] : memref<8x1xf32, #tpu.memory_space<vmem>>, vector<8x1xf32>
    %33 = vector.broadcast %31 : vector<8x1xi32> to vector<8x256xi32>
    %34 = arith.cmpi eq, %10, %33 : vector<8x256xi32>
    %cst_22 = arith.constant 0.000000e+00 : f32
    %35 = vector.broadcast %cst_22 : f32 to vector<8x256xf32>
    %36 = arith.select %34, %5, %35 : vector<8x256xi1>, vector<8x256xf32>
    %cst_23 = arith.constant dense<0.000000e+00> : vector<8xf32>
    %37 = vector.multi_reduction <add>, %36, %cst_23 [1] : vector<8x256xf32> to vector<8xf32>
    %38 = vector.shape_cast %37 : vector<8xf32> to vector<8x1xf32>
    %39 = arith.addf %32, %38 : vector<8x1xf32>
    %c0_24 = arith.constant 0 : index
    %c0_25 = arith.constant 0 : index
    %40 = vector.load %arg12[%c0_24, %c0_25] : memref<8x1xf32, #tpu.memory_space<vmem>>, vector<8x1xf32>
    tpu.vector_store %arg12[%c0_24, %c0_25], %39 {strides = array<i32>} : memref<8x1xf32, #tpu.memory_space<vmem>>, vector<8x1xf32>,
    %c0_i32_26 = arith.constant 0 : i32
    %41 = arith.cmpi eq, %arg1, %c0_i32_26 : i32
    %42 = arith.extui %41 : i1 to i32
    %c0_i32_27 = arith.constant 0 : i32
    %43 = arith.cmpi ne, %42, %c0_i32_27 : i32
    scf.if %43 {
      %c0_28 = arith.constant 0 : index
      %c0_29 = arith.constant 0 : index
      %44 = vector.load %arg10[%c0_28, %c0_29] : memref<8x1xf32, #tpu.memory_space<vmem>>, vector<8x1xf32>
      %c0_30 = arith.constant 0 : index
      %c0_31 = arith.constant 0 : index
      %45 = vector.load %arg11[%c0_30, %c0_31] : memref<8x1xf32, #tpu.memory_space<vmem>>, vector<8x1xf32>
      %46 = math.log %45 : vector<8x1xf32>
      %47 = arith.addf %44, %46 : vector<8x1xf32>
      %c0_32 = arith.constant 0 : index
      %c0_33 = arith.constant 0 : index
      %48 = vector.load %arg12[%c0_32, %c0_33] : memref<8x1xf32, #tpu.memory_space<vmem>>, vector<8x1xf32>
      %49 = arith.subf %47, %48 : vector<8x1xf32>
      %c0_34 = arith.constant 0 : index
      %c0_35 = arith.constant 0 : index
      %50 = vector.load %arg8[%c0_34, %c0_35] : memref<8x1xf32, #tpu.memory_space<vmem>>, vector<8x1xf32>
      tpu.vector_store %arg8[%c0_34, %c0_35], %49 {strides = array<i32>} : memref<8x1xf32, #tpu.memory_space<vmem>>, vector<8x1xf32>,
    } else {
    }
    return
  }
  func.func @transform_0(%arg0: i32, %arg1: i32) -> (i32, i32) {
    %c0_i32 = arith.constant 0 : i32
    %c0_i32_0 = arith.constant 0 : i32
    return %arg0, %c0_i32 : i32, i32
  }
  func.func @transform_1(%arg0: i32, %arg1: i32) -> (i32, i32) {
    %c0_i32 = arith.constant 0 : i32
    %c0_i32_0 = arith.constant 0 : i32
    %c0_i32_1 = arith.constant 0 : i32
    return %c0_i32, %c0_i32_0 : i32, i32
  }
  func.func @transform_2(%arg0: i32, %arg1: i32) -> (i32, i32) {
    %c0_i32 = arith.constant 0 : i32
    %c0_i32_0 = arith.constant 0 : i32
    %c0_i32_1 = arith.constant 0 : i32
    return %c0_i32, %c0_i32_0 : i32, i32
  }
  func.func @transform_3(%arg0: i32, %arg1: i32) -> (i32, i32) {
    %c0_i32 = arith.constant 0 : i32
    %c0_i32_0 = arith.constant 0 : i32
    return %c0_i32, %arg1 : i32, i32
  }
  func.func @transform_4(%arg0: i32, %arg1: i32) -> (i32, i32) {
    %c0_i32 = arith.constant 0 : i32
    %c0_i32_0 = arith.constant 0 : i32
    return %arg0, %c0_i32 : i32, i32
  }
  func.func @transform_5(%arg0: i32, %arg1: i32) -> (i32, i32) {
    %c0_i32 = arith.constant 0 : i32
    return %arg0, %arg1 : i32, i32
  }
  func.func @transform_6(%arg0: i32, %arg1: i32) -> (i32, i32) {
    %c0_i32 = arith.constant 0 : i32
    %c0_i32_0 = arith.constant 0 : i32
    return %arg0, %c0_i32 : i32, i32
  }
}

</mosaic_0001>

<llo_original>
// kernel: model_forward.12
$region0: #{model_forward.12}
  #allocation0 [shape = 'u32[]', space=smem, size = 0x4, offset = 0x4, fixed_abs, tag = 'smem constant byte address 0x4 - core index']
  #allocation1 [shape = 'u32[72,128]{1,0:T(1,128)}', space=vmem, size = 0x9000, scoped, tag = 'internal scratch']
  %s0 = inlined_call_operand.vmem [shape: bf16[2,8,384], index: 0, kind: input, shape index: {}]
  %s1 = inlined_call_operand.vmem [shape: bf16[2,8,128], index: 1, kind: output, shape index: {}]
  %s2 = sld [smem:[#allocation0]]
  $region37: #{model_forward.12} parent=0
    _
  %s4 = ssub.s32 1, %s2
  %s5 = scalar_select 0, %s4, %s2
  loop: start=0, step=1, limit=4
  $region2: #{model_forward.12} parent=0 // loop_pre_header
    _
  $region3: #{model_forward.12} parent=0 // loop_header
    %s7 = sphi 0, %s11
    %p8 = scmp.ge.s32.totalorder %s7, 4
    %s17 = sphi 0, %s19
    %s20 = sphi 0, %s17
    %s21 = sphi 0, %s20
    %s37 = sphi 0, %s21
    %s43 = sphi 0, %s45
    %s46 = sphi 0, %s43
    %s47 = sphi 0, %s46
    %s63 = sphi 0, %s47
  $region4: #{model_forward.12} parent=0 // loop_header_branch
    %10 = sbr.rel (%p8) target = $region8
  $region5: #{model_forward.12} parent=0 // loop_body
    %s12 = ssub.s32 %s7, 1
    %s13 = ssub.s32 %s7, 2
    %s14 = sadd.s32 %s7, 1
    %s15 = ssub.s32 %s7, %s14
    %p16 = scmp.eq.s32.totalorder %s15, 0
    %s18 = sadd.s32 %s17, 1
    %s19 = scalar_select %p16, %s17, %s18
    %p22 = pneg %p16
    %p23 = scmp.eq.s32.totalorder %s7, 1
    %p24 = por %p22, %p23
    %p25 = scmp.ne.s32.totalorder %s17, %s20
    %p26 = scmp.eq.s32.totalorder %s7, 0
    %p27 = por %p25, %p26
    %p28 = scmp.ne.s32.totalorder %s17, %s20
    %p29 = scmp.eq.s32.totalorder %s12, 1
    %p30 = por %p28, %p29
    %p31 = scmp.ne.s32.totalorder %s20, %s21
    %p32 = scmp.eq.s32.totalorder %s12, 0
    %p33 = por %p31, %p32
    %p34 = scmp.ne.s32.totalorder %s20, %s21
    %p35 = scmp.eq.s32.totalorder %s13, 1
    %p36 = por %p34, %p35
    %p38 = scmp.ne.s32.totalorder %s21, %s37
    %p39 = scmp.eq.s32.totalorder %s13, 0
    %p40 = por %p38, %p39
    %s41 = ssub.s32 %s7, %s14
    %p42 = scmp.eq.s32.totalorder %s41, 0
    %s44 = sadd.s32 %s43, 1
    %s45 = scalar_select %p42, %s43, %s44
    %p48 = pneg %p42
    %p49 = scmp.eq.s32.totalorder %s7, 1
    %p50 = por %p48, %p49
    %p51 = scmp.ne.s32.totalorder %s43, %s46
    %p52 = scmp.eq.s32.totalorder %s7, 0
    %p53 = por %p51, %p52
    %p54 = scmp.ne.s32.totalorder %s43, %s46
    %p55 = scmp.eq.s32.totalorder %s12, 1
    %p56 = por %p54, %p55
    %p57 = scmp.ne.s32.totalorder %s46, %s47
    %p58 = scmp.eq.s32.totalorder %s12, 0
    %p59 = por %p57, %p58
    %p60 = scmp.ne.s32.totalorder %s46, %s47
    %p61 = scmp.eq.s32.totalorder %s13, 1
    %p62 = por %p60, %p61
    %p64 = scmp.ne.s32.totalorder %s47, %s63
    %p65 = scmp.eq.s32.totalorder %s13, 0
    %p66 = por %p64, %p65
    %p67 = scmp.le.s32.totalorder 1, %s7
    %p68 = scmp.lt.s32.totalorder %s7, 3
    %p69 = pnand %p67, %p68
    %p70 = pneg %p69
    // Predicated region
    $region9: #{model_forward.12} parent=5 // pred_check
      _
    $region10: #{model_forward.12} parent=5 // pred_check_branch
      %72 = sbr.rel (%p69) target = $region12
    $region11: #{model_forward.12} parent=5 // pred_region
      %s73 = ssub.s32 %s7, 1
    $region12: #{model_forward.12} parent=5 // pred_fallthru
      _
    %p74 = scmp.lt.s32.totalorder %s7, 2
    // Predicated region
    $region13: #{model_forward.12} parent=5 // pred_check
      %p75 = pneg %p74
    $region14: #{model_forward.12} parent=5 // pred_check_branch
      %77 = sbr.rel (%p75) target = $region16
    $region15: #{model_forward.12} parent=5 // pred_region
      // Predicated region
      $region17: #{model_forward.12} parent=15 // pred_check
        %p78 = pneg %p27
      $region18: #{model_forward.12} parent=15 // pred_check_branch
        %80 = sbr.rel (%p78) target = $region20
      $region19: #{model_forward.12} parent=15 // pred_region
        %p81 = scmp.lt.s32.totalorder %s7, 1
        %s82 = scalar_select %p81, %s7, 1
        %s83 = smul.addr %s82, 3
        %s84 = smul.addr %s83, 4
        %s85 = scalar_lea.vmem %s0, %s84
      $region20: #{model_forward.12} parent=15 // pred_fallthru
        _
    $region16: #{model_forward.12} parent=5 // pred_fallthru
      _
    %p86 = scmp.le.s32.totalorder 1, %s7
    %p87 = scmp.lt.s32.totalorder %s7, 3
    %p88 = pnand %p86, %p87
    %p89 = pneg %p88
    // Predicated region
    $region21: #{model_forward.12} parent=5 // pred_check
      _
    $region22: #{model_forward.12} parent=5 // pred_check_branch
      %91 = sbr.rel (%p88) target = $region24
    $region23: #{model_forward.12} parent=5 // pred_region
      %s92 = ssub.s32 %s7, 1
      %p93 = scmp.lt.s32.totalorder %s12, 1
      %s94 = scalar_select %p93, %s12, 1
      %s95 = smul.addr %s94, 3
      %s96 = smul.addr %s95, 4
      %s97 = scalar_lea.vmem %s0, %s96
      %p98 = pneg %p33
      %p99 = pneg %p30
      %p100 = pneg %p59
      %p101 = pneg %p56
      %p102 = scmp.lt.s32.totalorder %s12, 1
      %s103 = scalar_select %p102, %s12, 1
      %s104 = smul.addr %s103, 4
      %s105 = scalar_lea.vmem %s1, %s104
      %p106 = scmp.lt.s32.totalorder %s12, 1
      %s107 = scalar_select %p106, %s12, 1
      %s108 = smul.addr %s107, 3
      %s109 = smul.addr %s108, 4
      %s110 = scalar_lea.vmem %s0, %s109
      %p111 = scmp.lt.s32.totalorder %s12, 1
      %s112 = scalar_select %p111, %s12, 1
      %s113 = smul.addr %s112, 4
      %s114 = scalar_lea.vmem %s1, %s113
      %v116 = vld [vmem:[%s110] sm:$0xff]
      %v117 = vld [vmem:[%s110 + $0x8] sm:$0xf]
      %v118 = vlaneseq
      %v119 = vshrl.u32 %v118, 7
      %v120 = vlaneseq
      %v121 = vand.u32 %v120, 127
      %vm122 = vcmp.le.s32.totalorder %v121, %v119
      %v124 = vunpack.c.h.b16 %v116
      %v125 = vpack.c.b16 %v124, %v124
      %vm126 = vcmask 261120
      %v128 = vsel %vm126, %v116, 0
      %v131 = vsel %vm126, %v125, 0
      %133 = vmatpush.bf16.xpose.msra.mxu0 0
      %134 = vmatpush.bf16.xpose.msra.mxu0 0
      %135 = vmatpush.bf16.xpose.msra.mxu0 0
      %136 = vmatpush.bf16.xpose.msra.mxu0 0
      %137 = vmatpush.bf16.xpose.msra.mxu0 0
      %138 = vmatpush.bf16.xpose.msra.mxu0 0
      %139 = vmatpush.bf16.xpose.msra.mxu0 0
      %140 = vmatpush.bf16.xpose.msra.mxu0 %v131
      %141 = vmatmul.bf16.gmra.mxu0 %v128
      %v142 = vpop.f32.mrf.mxu0
      %v143 = vadd.f32 0.0, %v142
      %v144 = vpop.f32.mrf.mxu0
      %145 = vdwg.mxu0
      %v146 = vsel %vm122, %v143, -1e+30
      %vm147 = vcmask 64512
      %v148 = vsel %vm147, %v146, -inf
      %149 = vmax.xlane.f32.xlu0 %v148
      %v150 = vpop.xlane.xlu0 %149
      %v151 = vsub.f32 %v146, %v150
      %v152 = vmul.f32 %v151, 1.442695
      %v153 = vpow.pop %v152
      %v154 = vsel %vm147, %v153, 0.0
      %155 = vadd.xlane.f32.xlu0 %v154
      %v156 = vpop.xlane.xlu0 %155
      %v157 = vrcp.pop %v156
      %v158 = vmul.f32 %v153, %v157
      %v159 = vpack.c.bf16 %v158, %v158
      %v161 = vsel %vm147, %v159, 0
      %vm163 = vcmask 1043456
      %v165 = vsel %vm163, %v117, 0
      %167 = vmatpush.bf16.msra.mxu0 0
      %168 = vmatpush.bf16.msra.mxu0 0
      %169 = vmatpush.bf16.msra.mxu0 0
      %170 = vmatpush.bf16.msra.mxu0 0
      %171 = vmatpush.bf16.msra.mxu0 0
      %172 = vmatpush.bf16.msra.mxu0 0
      %173 = vmatpush.bf16.msra.mxu0 0
      %174 = vmatpush.bf16.msra.mxu0 %v165
      %175 = vmatmul.bf16.gmra.mxu0 %v161
      %v176 = vpop.f32.mrf.mxu0
      %v177 = vadd.f32 0.0, %v176
      %v178 = vpop.f32.mrf.mxu0
      %179 = vdwg.mxu0
      %v180 = vunpack.c.l.b16 %v116
      %v181 = vpack.c.b16 %v180, %v180
      %182 = vrot.lane.b32.xlu0 %v181, 96
      %v183 = vpop.permute.xlu0 %182
      %184 = vrot.lane.b32.xlu0 %v125, 96
      %v185 = vpop.permute.xlu0 %184
      %v187 = vsel %vm126, %v183, 0
      %v190 = vsel %vm126, %v185, 0
      %192 = vmatpush.bf16.xpose.msra.mxu0 0
      %193 = vmatpush.bf16.xpose.msra.mxu0 0
      %194 = vmatpush.bf16.xpose.msra.mxu0 0
      %195 = vmatpush.bf16.xpose.msra.mxu0 0
      %196 = vmatpush.bf16.xpose.msra.mxu0 0
      %197 = vmatpush.bf16.xpose.msra.mxu0 0
      %198 = vmatpush.bf16.xpose.msra.mxu0 0
      %199 = vmatpush.bf16.xpose.msra.mxu0 %v190
      %200 = vmatmul.bf16.gmra.mxu0 %v187
      %v201 = vpop.f32.mrf.mxu0
      %v202 = vadd.f32 0.0, %v201
      %v203 = vpop.f32.mrf.mxu0
      %204 = vdwg.mxu0
      %v205 = vsel %vm122, %v202, -1e+30
      %v206 = vsel %vm147, %v205, -inf
      %207 = vmax.xlane.f32.xlu0 %v206
      %v208 = vpop.xlane.xlu0 %207
      %v209 = vsub.f32 %v205, %v208
      %v210 = vmul.f32 %v209, 1.442695
      %v211 = vpow.pop %v210
      %v212 = vsel %vm147, %v211, 0.0
      %213 = vadd.xlane.f32.xlu0 %v212
      %v214 = vpop.xlane.xlu0 %213
      %v215 = vrcp.pop %v214
      %v216 = vmul.f32 %v211, %v215
      %v217 = vpack.c.bf16 %v216, %v216
      %v219 = vunpack.c.l.b16 %v117
      %v220 = vpack.c.b16 %v219, %v219
      %221 = vrot.lane.b32.xlu0 %v220, 96
      %v222 = vpop.permute.xlu0 %221
      %v224 = vsel %vm147, %v217, 0
      %v227 = vsel %vm163, %v222, 0
      %229 = vmatpush.bf16.msra.mxu0 0
      %230 = vmatpush.bf16.msra.mxu0 0
      %231 = vmatpush.bf16.msra.mxu0 0
      %232 = vmatpush.bf16.msra.mxu0 0
      %233 = vmatpush.bf16.msra.mxu0 0
      %234 = vmatpush.bf16.msra.mxu0 0
      %235 = vmatpush.bf16.msra.mxu0 0
      %236 = vmatpush.bf16.msra.mxu0 %v227
      %237 = vmatmul.bf16.gmra.mxu0 %v224
      %v238 = vpop.f32.mrf.mxu0
      %v239 = vadd.f32 0.0, %v238
      %v240 = vpop.f32.mrf.mxu0
      %241 = vdwg.mxu0
      %242 = vrot.lane.b32.xlu0 %v181, 64
      %v243 = vpop.permute.xlu0 %242
      %244 = vrot.lane.b32.xlu0 %v125, 64
      %v245 = vpop.permute.xlu0 %244
      %v247 = vsel %vm126, %v243, 0
      %v250 = vsel %vm126, %v245, 0
      %252 = vmatpush.bf16.xpose.msra.mxu0 0
      %253 = vmatpush.bf16.xpose.msra.mxu0 0
      %254 = vmatpush.bf16.xpose.msra.mxu0 0
      %255 = vmatpush.bf16.xpose.msra.mxu0 0
      %256 = vmatpush.bf16.xpose.msra.mxu0 0
      %257 = vmatpush.bf16.xpose.msra.mxu0 0
      %258 = vmatpush.bf16.xpose.msra.mxu0 0
      %259 = vmatpush.bf16.xpose.msra.mxu0 %v250
      %260 = vmatmul.bf16.gmra.mxu0 %v247
      %v261 = vpop.f32.mrf.mxu0
      %v262 = vadd.f32 0.0, %v261
      %v263 = vpop.f32.mrf.mxu0
      %264 = vdwg.mxu0
      %v265 = vsel %vm122, %v262, -1e+30
      %v266 = vsel %vm147, %v265, -inf
      %267 = vmax.xlane.f32.xlu0 %v266
      %v268 = vpop.xlane.xlu0 %267
      %v269 = vsub.f32 %v265, %v268
      %v270 = vmul.f32 %v269, 1.442695
      %v271 = vpow.pop %v270
      %v272 = vsel %vm147, %v271, 0.0
      %273 = vadd.xlane.f32.xlu0 %v272
      %v274 = vpop.xlane.xlu0 %273
      %v275 = vrcp.pop %v274
      %v276 = vmul.f32 %v271, %v275
      %v277 = vpack.c.bf16 %v276, %v276
      %278 = vrot.lane.b32.xlu0 %v220, 64
      %v279 = vpop.permute.xlu0 %278
      %v281 = vsel %vm147, %v277, 0
      %v284 = vsel %vm163, %v279, 0
      %286 = vmatpush.bf16.msra.mxu0 0
      %287 = vmatpush.bf16.msra.mxu0 0
      %288 = vmatpush.bf16.msra.mxu0 0
      %289 = vmatpush.bf16.msra.mxu0 0
      %290 = vmatpush.bf16.msra.mxu0 0
      %291 = vmatpush.bf16.msra.mxu0 0
      %292 = vmatpush.bf16.msra.mxu0 0
      %293 = vmatpush.bf16.msra.mxu0 %v284
      %294 = vmatmul.bf16.gmra.mxu0 %v281
      %v295 = vpop.f32.mrf.mxu0
      %v296 = vadd.f32 0.0, %v295
      %v297 = vpop.f32.mrf.mxu0
      %298 = vdwg.mxu0
      %299 = vrot.lane.b32.xlu0 %v181, 32
      %v300 = vpop.permute.xlu0 %299
      %301 = vrot.lane.b32.xlu0 %v125, 32
      %v302 = vpop.permute.xlu0 %301
      %v304 = vsel %vm126, %v300, 0
      %v307 = vsel %vm126, %v302, 0
      %309 = vmatpush.bf16.xpose.msra.mxu0 0
      %310 = vmatpush.bf16.xpose.msra.mxu0 0
      %311 = vmatpush.bf16.xpose.msra.mxu0 0
      %312 = vmatpush.bf16.xpose.msra.mxu0 0
      %313 = vmatpush.bf16.xpose.msra.mxu0 0
      %314 = vmatpush.bf16.xpose.msra.mxu0 0
      %315 = vmatpush.bf16.xpose.msra.mxu0 0
      %316 = vmatpush.bf16.xpose.msra.mxu0 %v307
      %317 = vmatmul.bf16.gmra.mxu0 %v304
      %v318 = vpop.f32.mrf.mxu0
      %v319 = vadd.f32 0.0, %v318
      %v320 = vpop.f32.mrf.mxu0
      %321 = vdwg.mxu0
      %v322 = vsel %vm122, %v319, -1e+30
      %v323 = vsel %vm147, %v322, -inf
      %324 = vmax.xlane.f32.xlu0 %v323
      %v325 = vpop.xlane.xlu0 %324
      %v326 = vsub.f32 %v322, %v325
      %v327 = vmul.f32 %v326, 1.442695
      %v328 = vpow.pop %v327
      %v329 = vsel %vm147, %v328, 0.0
      %330 = vadd.xlane.f32.xlu0 %v329
      %v331 = vpop.xlane.xlu0 %330
      %v332 = vrcp.pop %v331
      %v333 = vmul.f32 %v328, %v332
      %v334 = vpack.c.bf16 %v333, %v333
      %335 = vrot.lane.b32.xlu0 %v220, 32
      %v336 = vpop.permute.xlu0 %335
      %v338 = vsel %vm147, %v334, 0
      %v341 = vsel %vm163, %v336, 0
      %343 = vmatpush.bf16.msra.mxu0 0
      %344 = vmatpush.bf16.msra.mxu0 0
      %345 = vmatpush.bf16.msra.mxu0 0
      %346 = vmatpush.bf16.msra.mxu0 0
      %347 = vmatpush.bf16.msra.mxu0 0
      %348 = vmatpush.bf16.msra.mxu0 0
      %349 = vmatpush.bf16.msra.mxu0 0
      %350 = vmatpush.bf16.msra.mxu0 %v341
      %351 = vmatmul.bf16.gmra.mxu0 %v338
      %v352 = vpop.f32.mrf.mxu0
      %v353 = vadd.f32 0.0, %v352
      %v354 = vpop.f32.mrf.mxu0
      %355 = vdwg.mxu0
      %357 = vrot.lane.b32.xlu0 %v239, 32
      %v358 = vpop.permute.xlu0 %357
      %361 = vrot.lane.b32.xlu0 %v296, 64
      %v362 = vpop.permute.xlu0 %361
      %365 = vrot.lane.b32.xlu0 %v353, 96
      %v366 = vpop.permute.xlu0 %365
      %v368 = vsel %vm126, %v177, %v358
      %vm369 = vcmask 523264
      %v370 = vsel %vm369, %v368, %v362
      %vm371 = vcmask 785408
      %v372 = vsel %vm371, %v370, %v366
      %v373 = vpack.c.bf16 %v372, %v372
      %374 = vst [vmem:[%s114] sm:$0xf] %v373
      %p375 = scmp.lt.s32.totalorder %s12, 1
      %s376 = scalar_select %p375, %s12, 1
      %s377 = smul.addr %s376, 4
      %s378 = scalar_lea.vmem %s1, %s377
      // Predicated region
      $region25: #{model_forward.12} parent=23 // pred_check
        %p379 = pneg %p56
      $region26: #{model_forward.12} parent=23 // pred_check_branch
        %381 = sbr.rel (%p379) target = $region28
      $region27: #{model_forward.12} parent=23 // pred_region
        _
      $region28: #{model_forward.12} parent=23 // pred_fallthru
        _
    $region24: #{model_forward.12} parent=5 // pred_fallthru
      _
    %p382 = scmp.le.s32.totalorder 2, %s7
    // Predicated region
    $region29: #{model_forward.12} parent=5 // pred_check
      %p383 = pneg %p382
    $region30: #{model_forward.12} parent=5 // pred_check_branch
      %385 = sbr.rel (%p383) target = $region32
    $region31: #{model_forward.12} parent=5 // pred_region
      %s386 = ssub.s32 %s7, 2
      // Predicated region
      $region33: #{model_forward.12} parent=31 // pred_check
        %p387 = pneg %p62
      $region34: #{model_forward.12} parent=31 // pred_check_branch
        %389 = sbr.rel (%p387) target = $region36
      $region35: #{model_forward.12} parent=31 // pred_region
        %p390 = scmp.lt.s32.totalorder %s13, 1
        %s391 = scalar_select %p390, %s13, 1
        %s392 = smul.addr %s391, 4
        %s393 = scalar_lea.vmem %s1, %s392
      $region36: #{model_forward.12} parent=31 // pred_fallthru
        _
    $region32: #{model_forward.12} parent=5 // pred_fallthru
      _
  $region6: #{model_forward.12} parent=0 // loop_footer
    %s11 = sadd.s32 1, %s7
  $region7: #{model_forward.12} parent=0 // loop_footer_branch
    %6 = sbr.rel target = $region3
  $region8: #{model_forward.12} parent=0 // loop_exit
    _

// kernel: model_forward.13
$region0: #{model_forward.13}
  #allocation0 [shape = 'u32[]', space=smem, size = 0x4, offset = 0x4, fixed_abs, tag = 'smem constant byte address 0x4 - core index']
  #allocation1 [shape = 'u32[72,128]{1,0:T(1,128)}', space=vmem, size = 0x9000, scoped, tag = 'internal scratch']
  %s0 = inlined_call_operand.vmem [shape: bf16[16,128], index: 0, kind: input, shape index: {}]
  %s1 = inlined_call_operand.hbm [shape: bf16[128,128], index: 1, kind: input, shape index: {}]
  %s2 = inlined_call_operand.vmem [shape: f32[1,128], index: 2, kind: input, shape index: {}]
  %s3 = inlined_call_operand.vmem [shape: bf16[16,128], index: 3, kind: input, shape index: {}]
  %s4 = inlined_call_operand.vmem [shape: bf16[16,128], index: 4, kind: output, shape index: {}]
  %s5 = sld [smem:[#allocation0]]
  $region53: #{model_forward.13} parent=0
    _
  %s7 = ssub.s32 1, %s5
  %s8 = scalar_select 0, %s7, %s5
  $region1: #{model_forward.13} parent=0
    #allocation2 [shape = 'u8[32768]{0}', space=vmem, size = 0x8000, scoped, tag = 'input window, operand 1, single buffered']
    #allocation3 [shape = 's32[2]{0}', space=sflag, size = 0x8, scoped, tag = 'scoped memory for model_forward.13']
    %9 = vsyncpa [#allocation3], 0
    loop: start=0, step=1, limit=4
    $region2: #{model_forward.13} parent=1 // loop_pre_header
      _
    $region3: #{model_forward.13} parent=1 // loop_header
      %s11 = sphi 0, %s15
      %p12 = scmp.ge.s32.totalorder %s11, 4
      %s18 = sphi 0, %s30
      %s19 = sphi 0, %s26
      %s20 = sphi 0, %s18
      %s21 = sphi 0, %s19
      %s22 = sphi 0, %s20
      %s23 = sphi 0, %s21
      %s33 = sphi 0, %s35
      %s36 = sphi 0, %s33
      %s37 = sphi 0, %s36
      %s53 = sphi 0, %s37
      %s59 = sphi 0, %s61
      %s62 = sphi 0, %s59
      %s63 = sphi 0, %s62
      %s79 = sphi 0, %s63
      %s85 = sphi 0, %s87
      %s88 = sphi 0, %s85
      %s89 = sphi 0, %s88
      %s105 = sphi 0, %s89
      %s113 = sphi 0, %s115
      %s116 = sphi 0, %s113
      %s117 = sphi 0, %s116
      %s133 = sphi 0, %s117
      %s141 = sphi 0, %s143
      %s144 = sphi 0, %s141
      %s145 = sphi 0, %s144
      %s161 = sphi 0, %s145
    $region4: #{model_forward.13} parent=1 // loop_header_branch
      %14 = sbr.rel (%p12) target = $region8
    $region5: #{model_forward.13} parent=1 // loop_body
      %s16 = ssub.s32 %s11, 1
      %s17 = ssub.s32 %s11, 2
      %s24 = sadd.s32 1, %s19
      %p25 = scmp.ge.s32.totalorder %s24, 1
      %s26 = scalar_select %p25, 0, %s24
      %s27 = sadd.s32 1, %s18
      %s28 = scalar_select %p25, %s27, %s18
      %p29 = scmp.ge.s32.totalorder %s28, 2
      %s30 = scalar_select %p29, 0, %s28
      %s31 = ssub.s32 %s18, %s30
      %p32 = scmp.eq.s32.totalorder %s31, 0
      %s34 = sadd.s32 %s33, 1
      %s35 = scalar_select %p32, %s33, %s34
      %p38 = pneg %p32
      %p39 = scmp.eq.s32.totalorder %s11, 1
      %p40 = por %p38, %p39
      %p41 = scmp.ne.s32.totalorder %s33, %s36
      %p42 = scmp.eq.s32.totalorder %s11, 0
      %p43 = por %p41, %p42
      %p44 = scmp.ne.s32.totalorder %s33, %s36
      %p45 = scmp.eq.s32.totalorder %s16, 1
      %p46 = por %p44, %p45
      %p47 = scmp.ne.s32.totalorder %s36, %s37
      %p48 = scmp.eq.s32.totalorder %s16, 0
      %p49 = por %p47, %p48
      %p50 = scmp.ne.s32.totalorder %s36, %s37
      %p51 = scmp.eq.s32.totalorder %s17, 1
      %p52 = por %p50, %p51
      %p54 = scmp.ne.s32.totalorder %s37, %s53
      %p55 = scmp.eq.s32.totalorder %s17, 0
      %p56 = por %p54, %p55
      %s57 = ssub.s32 %s19, %s26
      %p58 = scmp.eq.s32.totalorder %s57, 0
      %s60 = sadd.s32 %s59, 1
      %s61 = scalar_select %p58, %s59, %s60
      %p64 = pneg %p58
      %p65 = scmp.eq.s32.totalorder %s11, 1
      %p66 = por %p64, %p65
      %p67 = scmp.ne.s32.totalorder %s59, %s62
      %p68 = scmp.eq.s32.totalorder %s11, 0
      %p69 = por %p67, %p68
      %p70 = scmp.ne.s32.totalorder %s59, %s62
      %p71 = scmp.eq.s32.totalorder %s16, 1
      %p72 = por %p70, %p71
      %p73 = scmp.ne.s32.totalorder %s62, %s63
      %p74 = scmp.eq.s32.totalorder %s16, 0
      %p75 = por %p73, %p74
      %p76 = scmp.ne.s32.totalorder %s62, %s63
      %p77 = scmp.eq.s32.totalorder %s17, 1
      %p78 = por %p76, %p77
      %p80 = scmp.ne.s32.totalorder %s63, %s79
      %p81 = scmp.eq.s32.totalorder %s17, 0
      %p82 = por %p80, %p81
      %s83 = ssub.s32 %s19, %s26
      %p84 = scmp.eq.s32.totalorder %s83, 0
      %s86 = sadd.s32 %s85, 1
      %s87 = scalar_select %p84, %s85, %s86
      %p90 = pneg %p84
      %p91 = scmp.eq.s32.totalorder %s11, 1
      %p92 = por %p90, %p91
      %p93 = scmp.ne.s32.totalorder %s85, %s88
      %p94 = scmp.eq.s32.totalorder %s11, 0
      %p95 = por %p93, %p94
      %p96 = scmp.ne.s32.totalorder %s85, %s88
      %p97 = scmp.eq.s32.totalorder %s16, 1
      %p98 = por %p96, %p97
      %p99 = scmp.ne.s32.totalorder %s88, %s89
      %p100 = scmp.eq.s32.totalorder %s16, 0
      %p101 = por %p99, %p100
      %p102 = scmp.ne.s32.totalorder %s88, %s89
      %p103 = scmp.eq.s32.totalorder %s17, 1
      %p104 = por %p102, %p103
      %p106 = scmp.ne.s32.totalorder %s89, %s105
      %p107 = scmp.eq.s32.totalorder %s17, 0
      %p108 = por %p106, %p107
      %s109 = ssub.s32 %s18, %s30
      %s110 = ssub.s32 %s19, %s26
      %s111 = sor.u32 %s109, %s110
      %p112 = scmp.eq.s32.totalorder %s111, 0
      %s114 = sadd.s32 %s113, 1
      %s115 = scalar_select %p112, %s113, %s114
      %p118 = pneg %p112
      %p119 = scmp.eq.s32.totalorder %s11, 1
      %p120 = por %p118, %p119
      %p121 = scmp.ne.s32.totalorder %s113, %s116
      %p122 = scmp.eq.s32.totalorder %s11, 0
      %p123 = por %p121, %p122
      %p124 = scmp.ne.s32.totalorder %s113, %s116
      %p125 = scmp.eq.s32.totalorder %s16, 1
      %p126 = por %p124, %p125
      %p127 = scmp.ne.s32.totalorder %s116, %s117
      %p128 = scmp.eq.s32.totalorder %s16, 0
      %p129 = por %p127, %p128
      %p130 = scmp.ne.s32.totalorder %s116, %s117
      %p131 = scmp.eq.s32.totalorder %s17, 1
      %p132 = por %p130, %p131
      %p134 = scmp.ne.s32.totalorder %s117, %s133
      %p135 = scmp.eq.s32.totalorder %s17, 0
      %p136 = por %p134, %p135
      %s137 = ssub.s32 %s18, %s30
      %s138 = ssub.s32 %s19, %s26
      %s139 = sor.u32 %s137, %s138
      %p140 = scmp.eq.s32.totalorder %s139, 0
      %s142 = sadd.s32 %s141, 1
      %s143 = scalar_select %p140, %s141, %s142
      %p146 = pneg %p140
      %p147 = scmp.eq.s32.totalorder %s11, 1
      %p148 = por %p146, %p147
      %p149 = scmp.ne.s32.totalorder %s141, %s144
      %p150 = scmp.eq.s32.totalorder %s11, 0
      %p151 = por %p149, %p150
      %p152 = scmp.ne.s32.totalorder %s141, %s144
      %p153 = scmp.eq.s32.totalorder %s16, 1
      %p154 = por %p152, %p153
      %p155 = scmp.ne.s32.totalorder %s144, %s145
      %p156 = scmp.eq.s32.totalorder %s16, 0
      %p157 = por %p155, %p156
      %p158 = scmp.ne.s32.totalorder %s144, %s145
      %p159 = scmp.eq.s32.totalorder %s17, 1
      %p160 = por %p158, %p159
      %p162 = scmp.ne.s32.totalorder %s145, %s161
      %p163 = scmp.eq.s32.totalorder %s17, 0
      %p164 = por %p162, %p163
      %p165 = scmp.le.s32.totalorder 1, %s11
      %p166 = scmp.lt.s32.totalorder %s11, 3
      %p167 = pnand %p165, %p166
      %p168 = pneg %p167
      // Predicated region
      $region9: #{model_forward.13} parent=5 // pred_check
        _
      $region10: #{model_forward.13} parent=5 // pred_check_branch
        %170 = sbr.rel (%p167) target = $region12
      $region11: #{model_forward.13} parent=5 // pred_region
        %s171 = ssub.s32 %s11, 1
        // Predicated region
        $region13: #{model_forward.13} parent=11 // pred_check
          %p172 = pneg %p75
        $region14: #{model_forward.13} parent=11 // pred_check_branch
          %174 = sbr.rel (%p172) target = $region16
        $region15: #{model_forward.13} parent=11 // pred_region
          %176 = vsyncadd [#allocation3], 0
          %s177 = smul.addr %s21, 4
          %s178 = scalar_lea.hbm %s1, %s177
          %s179 = sshll.u32 %s178, 4
          %s180 = int_to_ptr.hbm [resolvable:$true] %s179
          %s181 = sshll.u32 [#allocation2], 4
          %s182 = int_to_ptr.vmem [resolvable:$true] %s181
          %187 = dma.hbm_to_vmem [thread:$0]  %s180, 1024, %s182, [#allocation3], 64, 64, 4
        $region16: #{model_forward.13} parent=11 // pred_fallthru
          _
        // Predicated region
        $region17: #{model_forward.13} parent=11 // pred_check
          %p188 = pneg %p101
        $region18: #{model_forward.13} parent=11 // pred_check_branch
          %190 = sbr.rel (%p188) target = $region20
        $region19: #{model_forward.13} parent=11 // pred_region
          %p191 = scmp.lt.s32.totalorder %s21, 0
          %s192 = scalar_select %p191, %s21, 0
          %s193 = scalar_lea.vmem %s2, %s192
        $region20: #{model_forward.13} parent=11 // pred_fallthru
          _
      $region12: #{model_forward.13} parent=5 // pred_fallthru
        _
      %p194 = scmp.lt.s32.totalorder %s11, 2
      // Predicated region
      $region21: #{model_forward.13} parent=5 // pred_check
        %p195 = pneg %p194
      $region22: #{model_forward.13} parent=5 // pred_check_branch
        %197 = sbr.rel (%p195) target = $region24
      $region23: #{model_forward.13} parent=5 // pred_region
        // Predicated region
        $region25: #{model_forward.13} parent=23 // pred_check
          %p198 = pneg %p43
        $region26: #{model_forward.13} parent=23 // pred_check_branch
          %200 = sbr.rel (%p198) target = $region28
        $region27: #{model_forward.13} parent=23 // pred_region
          %p201 = scmp.lt.s32.totalorder %s18, 1
          %s202 = scalar_select %p201, %s18, 1
          %s203 = smul.addr %s202, 4
          %s204 = scalar_lea.vmem %s0, %s203
        $region28: #{model_forward.13} parent=23 // pred_fallthru
          _
        // Predicated region
        $region29: #{model_forward.13} parent=23 // pred_check
          %p205 = pneg %p123
        $region30: #{model_forward.13} parent=23 // pred_check_branch
          %207 = sbr.rel (%p205) target = $region32
        $region31: #{model_forward.13} parent=23 // pred_region
          %p208 = scmp.lt.s32.totalorder %s18, 1
          %s209 = scalar_select %p208, %s18, 1
          %p210 = scmp.lt.s32.totalorder %s19, 0
          %s211 = scalar_select %p210, %s19, 0
          %s212 = sadd.s32 %s211, %s209
          %s213 = smul.addr %s212, 4
          %s214 = scalar_lea.vmem %s3, %s213
        $region32: #{model_forward.13} parent=23 // pred_fallthru
          _
      $region24: #{model_forward.13} parent=5 // pred_fallthru
        _
      %p215 = scmp.le.s32.totalorder 1, %s11
      %p216 = scmp.lt.s32.totalorder %s11, 3
      %p217 = pnand %p215, %p216
      %p218 = pneg %p217
      // Predicated region
      $region33: #{model_forward.13} parent=5 // pred_check
        _
      $region34: #{model_forward.13} parent=5 // pred_check_branch
        %220 = sbr.rel (%p217) target = $region36
      $region35: #{model_forward.13} parent=5 // pred_region
        %s221 = ssub.s32 %s11, 1
        // Predicated region
        $region37: #{model_forward.13} parent=35 // pred_check
          %p222 = pneg %p75
        $region38: #{model_forward.13} parent=35 // pred_check_branch
          %224 = sbr.rel (%p222) target = $region40
        $region39: #{model_forward.13} parent=35 // pred_region
          %226 = dma.done [#allocation3], 1024
        $region40: #{model_forward.13} parent=35 // pred_fallthru
          _
        %p227 = scmp.lt.s32.totalorder %s20, 1
        %s228 = scalar_select %p227, %s20, 1
        %s229 = smul.addr %s228, 4
        %s230 = scalar_lea.vmem %s0, %s229
        %p231 = pneg %p49
        %p232 = pneg %p46
        %p233 = pneg %p75
        %p234 = pneg %p72
        %p235 = scmp.lt.s32.totalorder %s21, 0
        %s236 = scalar_select %p235, %s21, 0
        %s237 = scalar_lea.vmem %s2, %s236
        %p238 = pneg %p101
        %p239 = pneg %p98
        %p240 = scmp.lt.s32.totalorder %s20, 1
        %s241 = scalar_select %p240, %s20, 1
        %p242 = scmp.lt.s32.totalorder %s21, 0
        %s243 = scalar_select %p242, %s21, 0
        %s244 = sadd.s32 %s243, %s241
        %s245 = smul.addr %s244, 4
        %s246 = scalar_lea.vmem %s3, %s245
        %p247 = pneg %p129
        %p248 = pneg %p126
        %p249 = pneg %p157
        %p250 = pneg %p154
        %p251 = scmp.lt.s32.totalorder %s20, 1
        %s252 = scalar_select %p251, %s20, 1
        %p253 = scmp.lt.s32.totalorder %s21, 0
        %s254 = scalar_select %p253, %s21, 0
        %s255 = sadd.s32 %s254, %s252
        %s256 = smul.addr %s255, 4
        %s257 = scalar_lea.vmem %s4, %s256
        %p258 = scmp.lt.s32.totalorder %s20, 1
        %s259 = scalar_select %p258, %s20, 1
        %s260 = smul.addr %s259, 4
        %s261 = scalar_lea.vmem %s0, %s260
        %p262 = scmp.lt.s32.totalorder %s21, 0
        %s263 = scalar_select %p262, %s21, 0
        %s264 = scalar_lea.vmem %s2, %s263
        %p265 = scmp.lt.s32.totalorder %s20, 1
        %s266 = scalar_select %p265, %s20, 1
        %p267 = scmp.lt.s32.totalorder %s21, 0
        %s268 = scalar_select %p267, %s21, 0
        %s269 = sadd.s32 %s268, %s266
        %s270 = smul.addr %s269, 4
        %s271 = scalar_lea.vmem %s3, %s270
        %p272 = scmp.lt.s32.totalorder %s20, 1
        %s273 = scalar_select %p272, %s20, 1
        %p274 = scmp.lt.s32.totalorder %s21, 0
        %s275 = scalar_select %p274, %s21, 0
        %s276 = sadd.s32 %s275, %s273
        %s277 = smul.addr %s276, 4
        %s278 = scalar_lea.vmem %s4, %s277
        %v279 = vld [vmem:[%s261] sm:$0xf]
        %v280 = vld [vmem:[#allocation2] sm:$0xf]
        %v281 = vld [vmem:[#allocation2 + $0x4] sm:$0xf]
        %v282 = vld [vmem:[#allocation2 + $0x8] sm:$0xf]
        %v283 = vld [vmem:[#allocation2 + $0xc] sm:$0xf]
        %v284 = vld [vmem:[#allocation2 + $0x10] sm:$0xf]
        %v285 = vld [vmem:[#allocation2 + $0x14] sm:$0xf]
        %v286 = vld [vmem:[#allocation2 + $0x18] sm:$0xf]
        %v287 = vld [vmem:[#allocation2 + $0x1c] sm:$0xf]
        %v288 = vld [vmem:[#allocation2 + $0x20] sm:$0xf]
        %v289 = vld [vmem:[#allocation2 + $0x24] sm:$0xf]
        %v290 = vld [vmem:[#allocation2 + $0x28] sm:$0xf]
        %v291 = vld [vmem:[#allocation2 + $0x2c] sm:$0xf]
        %v292 = vld [vmem:[#allocation2 + $0x30] sm:$0xf]
        %v293 = vld [vmem:[#allocation2 + $0x34] sm:$0xf]
        %v294 = vld [vmem:[#allocation2 + $0x38] sm:$0xf]
        %v295 = vld [vmem:[#allocation2 + $0x3c] sm:$0xf]
        %v296 = vld [vmem:[%s264] sm:$0x1]
        %v298 = vperm.slane %v296, 0
        %v316 = vunpack.c.l.b16 %v280
        %v317 = vunpack.c.l.b16 %v281
        %v318 = vunpack.c.l.b16 %v282
        %v319 = vunpack.c.l.b16 %v283
        %v320 = vunpack.c.l.b16 %v284
        %v321 = vunpack.c.l.b16 %v285
        %v322 = vunpack.c.l.b16 %v286
        %v323 = vunpack.c.l.b16 %v287
        %v324 = vunpack.c.l.b16 %v288
        %v325 = vunpack.c.l.b16 %v289
        %v326 = vunpack.c.l.b16 %v290
        %v327 = vunpack.c.l.b16 %v291
        %v328 = vunpack.c.l.b16 %v292
        %v329 = vunpack.c.l.b16 %v293
        %v330 = vunpack.c.l.b16 %v294
        %v331 = vunpack.c.l.b16 %v295
        %v332 = vpack.c.b16 %v317, %v316
        %v333 = vpack.c.b16 %v319, %v318
        %v334 = vpack.c.b16 %v321, %v320
        %v335 = vpack.c.b16 %v323, %v322
        %v336 = vpack.c.b16 %v325, %v324
        %v337 = vpack.c.b16 %v327, %v326
        %v338 = vpack.c.b16 %v329, %v328
        %v339 = vpack.c.b16 %v331, %v330
        %348 = vmatpush.bf16.msra.mxu0 %v339
        %349 = vmatpush.bf16.msra.mxu0 %v338
        %350 = vmatpush.bf16.msra.mxu0 %v337
        %351 = vmatpush.bf16.msra.mxu0 %v336
        %352 = vmatpush.bf16.msra.mxu0 %v335
        %353 = vmatpush.bf16.msra.mxu0 %v334
        %354 = vmatpush.bf16.msra.mxu0 %v333
        %355 = vmatpush.bf16.msra.mxu0 %v332
        %356 = vmatmul.bf16.gmra.mxu0 %v279
        %v357 = vpop.f32.mrf.mxu0
        %v358 = vadd.f32 %v298, %v357
        %v359 = vpop.f32.mrf.mxu0
        %360 = vdwg.mxu0
        %v361 = vld [vmem:[%s271] sm:$0xf]
        %v362 = vunpack.c.l.bf16 %v361
        %v363 = vadd.f32 %v358, %v362
        %v364 = vpack.c.bf16 %v363, %v363
        %365 = vst [vmem:[%s278] sm:$0xf] %v364
        %p366 = scmp.lt.s32.totalorder %s20, 1
        %s367 = scalar_select %p366, %s20, 1
        %p368 = scmp.lt.s32.totalorder %s21, 0
        %s369 = scalar_select %p368, %s21, 0
        %s370 = sadd.s32 %s369, %s367
        %s371 = smul.addr %s370, 4
        %s372 = scalar_lea.vmem %s4, %s371
        // Predicated region
        $region41: #{model_forward.13} parent=35 // pred_check
          %p373 = pneg %p154
        $region42: #{model_forward.13} parent=35 // pred_check_branch
          %375 = sbr.rel (%p373) target = $region44
        $region43: #{model_forward.13} parent=35 // pred_region
          _
        $region44: #{model_forward.13} parent=35 // pred_fallthru
          _
      $region36: #{model_forward.13} parent=5 // pred_fallthru
        _
      %p376 = scmp.le.s32.totalorder 2, %s11
      // Predicated region
      $region45: #{model_forward.13} parent=5 // pred_check
        %p377 = pneg %p376
      $region46: #{model_forward.13} parent=5 // pred_check_branch
        %379 = sbr.rel (%p377) target = $region48
      $region47: #{model_forward.13} parent=5 // pred_region
        %s380 = ssub.s32 %s11, 2
        // Predicated region
        $region49: #{model_forward.13} parent=47 // pred_check
          %p381 = pneg %p160
        $region50: #{model_forward.13} parent=47 // pred_check_branch
          %383 = sbr.rel (%p381) target = $region52
        $region51: #{model_forward.13} parent=47 // pred_region
          %p384 = scmp.lt.s32.totalorder %s22, 1
          %s385 = scalar_select %p384, %s22, 1
          %p386 = scmp.lt.s32.totalorder %s23, 0
          %s387 = scalar_select %p386, %s23, 0
          %s388 = sadd.s32 %s387, %s385
          %s389 = smul.addr %s388, 4
          %s390 = scalar_lea.vmem %s4, %s389
        $region52: #{model_forward.13} parent=47 // pred_fallthru
          _
      $region48: #{model_forward.13} parent=5 // pred_fallthru
        _
    $region6: #{model_forward.13} parent=1 // loop_footer
      %s15 = sadd.s32 1, %s11
    $region7: #{model_forward.13} parent=1 // loop_footer_branch
      %10 = sbr.rel target = $region3
    $region8: #{model_forward.13} parent=1 // loop_exit
      _
    %391 = vsyncpa [#allocation3], 1
    %s392 = scalar_lea.sflag [#allocation3], 1
    %393 = vsyncpa %s392, 1

// kernel: model_forward.14
$region0: #{model_forward.14}
  #allocation0 [shape = 'u32[]', space=smem, size = 0x4, offset = 0x4, fixed_abs, tag = 'smem constant byte address 0x4 - core index']
  #allocation1 [shape = 'u32[72,128]{1,0:T(1,128)}', space=vmem, size = 0x9000, scoped, tag = 'internal scratch']
  #allocation2 [shape = 'bf16[8,128]{1,0:T(8,128)(2,1)}', space=vmem, size = 0x800, scoped, tag = 'scratch operand']
  %s0 = inlined_call_operand.vmem [shape: bf16[16,128], index: 0, kind: input, shape index: {}]
  %s1 = inlined_call_operand.vmem [shape: f32[1,128], index: 1, kind: input, shape index: {}]
  %s2 = inlined_call_operand.vmem [shape: f32[1,128], index: 2, kind: input, shape index: {}]
  %s3 = inlined_call_operand.vmem [shape: bf16[128,512], index: 3, kind: input, shape index: {}]
  %s4 = inlined_call_operand.vmem [shape: f32[1,512], index: 4, kind: input, shape index: {}]
  %s5 = inlined_call_operand.vmem [shape: bf16[16,512], index: 5, kind: output, shape index: {}]
  %s6 = sld [smem:[#allocation0]]
  $region57: #{model_forward.14} parent=0
    _
  %s8 = ssub.s32 1, %s6
  %s9 = scalar_select 0, %s8, %s6
  loop: start=0, step=1, limit=4
  $region2: #{model_forward.14} parent=0 // loop_pre_header
    _
  $region3: #{model_forward.14} parent=0 // loop_header
    %s11 = sphi 0, %s15
    %p12 = scmp.ge.s32.totalorder %s11, 4
    %s18 = sphi 0, %s30
    %s19 = sphi 0, %s26
    %s20 = sphi 0, %s18
    %s21 = sphi 0, %s19
    %s22 = sphi 0, %s20
    %s23 = sphi 0, %s21
    %s33 = sphi 0, %s35
    %s36 = sphi 0, %s33
    %s37 = sphi 0, %s36
    %s53 = sphi 0, %s37
    %s57 = sphi 0, %s57
    %s59 = sphi 0, %s57
    %s60 = sphi 0, %s59
    %s74 = sphi 0, %s60
    %s78 = sphi 0, %s78
    %s80 = sphi 0, %s78
    %s81 = sphi 0, %s80
    %s95 = sphi 0, %s81
    %s101 = sphi 0, %s103
    %s104 = sphi 0, %s101
    %s105 = sphi 0, %s104
    %s121 = sphi 0, %s105
    %s127 = sphi 0, %s129
    %s130 = sphi 0, %s127
    %s131 = sphi 0, %s130
    %s147 = sphi 0, %s131
    %s155 = sphi 0, %s157
    %s158 = sphi 0, %s155
    %s159 = sphi 0, %s158
    %s175 = sphi 0, %s159
  $region4: #{model_forward.14} parent=0 // loop_header_branch
    %14 = sbr.rel (%p12) target = $region8
  $region5: #{model_forward.14} parent=0 // loop_body
    %s16 = ssub.s32 %s11, 1
    %s17 = ssub.s32 %s11, 2
    %s24 = sadd.s32 1, %s19
    %p25 = scmp.ge.s32.totalorder %s24, 1
    %s26 = scalar_select %p25, 0, %s24
    %s27 = sadd.s32 1, %s18
    %s28 = scalar_select %p25, %s27, %s18
    %p29 = scmp.ge.s32.totalorder %s28, 2
    %s30 = scalar_select %p29, 0, %s28
    %s31 = ssub.s32 %s18, %s30
    %p32 = scmp.eq.s32.totalorder %s31, 0
    %s34 = sadd.s32 %s33, 1
    %s35 = scalar_select %p32, %s33, %s34
    %p38 = pneg %p32
    %p39 = scmp.eq.s32.totalorder %s11, 1
    %p40 = por %p38, %p39
    %p41 = scmp.ne.s32.totalorder %s33, %s36
    %p42 = scmp.eq.s32.totalorder %s11, 0
    %p43 = por %p41, %p42
    %p44 = scmp.ne.s32.totalorder %s33, %s36
    %p45 = scmp.eq.s32.totalorder %s16, 1
    %p46 = por %p44, %p45
    %p47 = scmp.ne.s32.totalorder %s36, %s37
    %p48 = scmp.eq.s32.totalorder %s16, 0
    %p49 = por %p47, %p48
    %p50 = scmp.ne.s32.totalorder %s36, %s37
    %p51 = scmp.eq.s32.totalorder %s17, 1
    %p52 = por %p50, %p51
    %p54 = scmp.ne.s32.totalorder %s37, %s53
    %p55 = scmp.eq.s32.totalorder %s17, 0
    %p56 = por %p54, %p55
    %s58 = sadd.s32 %s57, 1
    %p61 = scmp.eq.s32.totalorder %s11, 1
    %p62 = scmp.ne.s32.totalorder %s57, %s59
    %p63 = scmp.eq.s32.totalorder %s11, 0
    %p64 = por %p62, %p63
    %p65 = scmp.ne.s32.totalorder %s57, %s59
    %p66 = scmp.eq.s32.totalorder %s16, 1
    %p67 = por %p65, %p66
    %p68 = scmp.ne.s32.totalorder %s59, %s60
    %p69 = scmp.eq.s32.totalorder %s16, 0
    %p70 = por %p68, %p69
    %p71 = scmp.ne.s32.totalorder %s59, %s60
    %p72 = scmp.eq.s32.totalorder %s17, 1
    %p73 = por %p71, %p72
    %p75 = scmp.ne.s32.totalorder %s60, %s74
    %p76 = scmp.eq.s32.totalorder %s17, 0
    %p77 = por %p75, %p76
    %s79 = sadd.s32 %s78, 1
    %p82 = scmp.eq.s32.totalorder %s11, 1
    %p83 = scmp.ne.s32.totalorder %s78, %s80
    %p84 = scmp.eq.s32.totalorder %s11, 0
    %p85 = por %p83, %p84
    %p86 = scmp.ne.s32.totalorder %s78, %s80
    %p87 = scmp.eq.s32.totalorder %s16, 1
    %p88 = por %p86, %p87
    %p89 = scmp.ne.s32.totalorder %s80, %s81
    %p90 = scmp.eq.s32.totalorder %s16, 0
    %p91 = por %p89, %p90
    %p92 = scmp.ne.s32.totalorder %s80, %s81
    %p93 = scmp.eq.s32.totalorder %s17, 1
    %p94 = por %p92, %p93
    %p96 = scmp.ne.s32.totalorder %s81, %s95
    %p97 = scmp.eq.s32.totalorder %s17, 0
    %p98 = por %p96, %p97
    %s99 = ssub.s32 %s19, %s26
    %p100 = scmp.eq.s32.totalorder %s99, 0
    %s102 = sadd.s32 %s101, 1
    %s103 = scalar_select %p100, %s101, %s102
    %p106 = pneg %p100
    %p107 = scmp.eq.s32.totalorder %s11, 1
    %p108 = por %p106, %p107
    %p109 = scmp.ne.s32.totalorder %s101, %s104
    %p110 = scmp.eq.s32.totalorder %s11, 0
    %p111 = por %p109, %p110
    %p112 = scmp.ne.s32.totalorder %s101, %s104
    %p113 = scmp.eq.s32.totalorder %s16, 1
    %p114 = por %p112, %p113
    %p115 = scmp.ne.s32.totalorder %s104, %s105
    %p116 = scmp.eq.s32.totalorder %s16, 0
    %p117 = por %p115, %p116
    %p118 = scmp.ne.s32.totalorder %s104, %s105
    %p119 = scmp.eq.s32.totalorder %s17, 1
    %p120 = por %p118, %p119
    %p122 = scmp.ne.s32.totalorder %s105, %s121
    %p123 = scmp.eq.s32.totalorder %s17, 0
    %p124 = por %p122, %p123
    %s125 = ssub.s32 %s19, %s26
    %p126 = scmp.eq.s32.totalorder %s125, 0
    %s128 = sadd.s32 %s127, 1
    %s129 = scalar_select %p126, %s127, %s128
    %p132 = pneg %p126
    %p133 = scmp.eq.s32.totalorder %s11, 1
    %p134 = por %p132, %p133
    %p135 = scmp.ne.s32.totalorder %s127, %s130
    %p136 = scmp.eq.s32.totalorder %s11, 0
    %p137 = por %p135, %p136
    %p138 = scmp.ne.s32.totalorder %s127, %s130
    %p139 = scmp.eq.s32.totalorder %s16, 1
    %p140 = por %p138, %p139
    %p141 = scmp.ne.s32.totalorder %s130, %s131
    %p142 = scmp.eq.s32.totalorder %s16, 0
    %p143 = por %p141, %p142
    %p144 = scmp.ne.s32.totalorder %s130, %s131
    %p145 = scmp.eq.s32.totalorder %s17, 1
    %p146 = por %p144, %p145
    %p148 = scmp.ne.s32.totalorder %s131, %s147
    %p149 = scmp.eq.s32.totalorder %s17, 0
    %p150 = por %p148, %p149
    %s151 = ssub.s32 %s18, %s30
    %s152 = ssub.s32 %s19, %s26
    %s153 = sor.u32 %s151, %s152
    %p154 = scmp.eq.s32.totalorder %s153, 0
    %s156 = sadd.s32 %s155, 1
    %s157 = scalar_select %p154, %s155, %s156
    %p160 = pneg %p154
    %p161 = scmp.eq.s32.totalorder %s11, 1
    %p162 = por %p160, %p161
    %p163 = scmp.ne.s32.totalorder %s155, %s158
    %p164 = scmp.eq.s32.totalorder %s11, 0
    %p165 = por %p163, %p164
    %p166 = scmp.ne.s32.totalorder %s155, %s158
    %p167 = scmp.eq.s32.totalorder %s16, 1
    %p168 = por %p166, %p167
    %p169 = scmp.ne.s32.totalorder %s158, %s159
    %p170 = scmp.eq.s32.totalorder %s16, 0
    %p171 = por %p169, %p170
    %p172 = scmp.ne.s32.totalorder %s158, %s159
    %p173 = scmp.eq.s32.totalorder %s17, 1
    %p174 = por %p172, %p173
    %p176 = scmp.ne.s32.totalorder %s159, %s175
    %p177 = scmp.eq.s32.totalorder %s17, 0
    %p178 = por %p176, %p177
    %p179 = scmp.le.s32.totalorder 1, %s11
    %p180 = scmp.lt.s32.totalorder %s11, 3
    %p181 = pnand %p179, %p180
    %p182 = pneg %p181
    // Predicated region
    $region9: #{model_forward.14} parent=5 // pred_check
      _
    $region10: #{model_forward.14} parent=5 // pred_check_branch
      %184 = sbr.rel (%p181) target = $region12
    $region11: #{model_forward.14} parent=5 // pred_region
      %s185 = ssub.s32 %s11, 1
      // Predicated region
      $region13: #{model_forward.14} parent=11 // pred_check
        %p186 = pneg %p70
      $region14: #{model_forward.14} parent=11 // pred_check_branch
        %188 = sbr.rel (%p186) target = $region16
      $region15: #{model_forward.14} parent=11 // pred_region
        _
      $region16: #{model_forward.14} parent=11 // pred_fallthru
        _
      // Predicated region
      $region17: #{model_forward.14} parent=11 // pred_check
        %p189 = pneg %p91
      $region18: #{model_forward.14} parent=11 // pred_check_branch
        %191 = sbr.rel (%p189) target = $region20
      $region19: #{model_forward.14} parent=11 // pred_region
        _
      $region20: #{model_forward.14} parent=11 // pred_fallthru
        _
      // Predicated region
      $region21: #{model_forward.14} parent=11 // pred_check
        %p192 = pneg %p117
      $region22: #{model_forward.14} parent=11 // pred_check_branch
        %194 = sbr.rel (%p192) target = $region24
      $region23: #{model_forward.14} parent=11 // pred_region
        %s195 = smul.u32 4, %s21
        %p196 = scmp.lt.s32.totalorder %s195, 3
        %s197 = scalar_select %p196, %s195, 3
        %s198 = smul.addr %s197, 4
        %s199 = scalar_lea.vmem %s3, %s198
        %s200 = smul.u32 4, %s21
      $region24: #{model_forward.14} parent=11 // pred_fallthru
        _
      // Predicated region
      $region25: #{model_forward.14} parent=11 // pred_check
        %p201 = pneg %p143
      $region26: #{model_forward.14} parent=11 // pred_check_branch
        %203 = sbr.rel (%p201) target = $region28
      $region27: #{model_forward.14} parent=11 // pred_region
        %s204 = smul.u32 4, %s21
        %p205 = scmp.lt.s32.totalorder %s204, 3
        %s206 = scalar_select %p205, %s204, 3
        %s207 = scalar_lea.vmem %s4, %s206
        %s208 = smul.u32 4, %s21
      $region28: #{model_forward.14} parent=11 // pred_fallthru
        _
    $region12: #{model_forward.14} parent=5 // pred_fallthru
      _
    %p209 = scmp.lt.s32.totalorder %s11, 2
    // Predicated region
    $region29: #{model_forward.14} parent=5 // pred_check
      %p210 = pneg %p209
    $region30: #{model_forward.14} parent=5 // pred_check_branch
      %212 = sbr.rel (%p210) target = $region32
    $region31: #{model_forward.14} parent=5 // pred_region
      // Predicated region
      $region33: #{model_forward.14} parent=31 // pred_check
        %p213 = pneg %p43
      $region34: #{model_forward.14} parent=31 // pred_check_branch
        %215 = sbr.rel (%p213) target = $region36
      $region35: #{model_forward.14} parent=31 // pred_region
        %p216 = scmp.lt.s32.totalorder %s18, 1
        %s217 = scalar_select %p216, %s18, 1
        %s218 = smul.addr %s217, 4
        %s219 = scalar_lea.vmem %s0, %s218
      $region36: #{model_forward.14} parent=31 // pred_fallthru
        _
    $region32: #{model_forward.14} parent=5 // pred_fallthru
      _
    %p220 = scmp.le.s32.totalorder 1, %s11
    %p221 = scmp.lt.s32.totalorder %s11, 3
    %p222 = pnand %p220, %p221
    %p223 = pneg %p222
    // Predicated region
    $region37: #{model_forward.14} parent=5 // pred_check
      _
    $region38: #{model_forward.14} parent=5 // pred_check_branch
      %225 = sbr.rel (%p222) target = $region40
    $region39: #{model_forward.14} parent=5 // pred_region
      %s226 = ssub.s32 %s11, 1
      %p227 = scmp.lt.s32.totalorder %s20, 1
      %s228 = scalar_select %p227, %s20, 1
      %s229 = smul.addr %s228, 4
      %s230 = scalar_lea.vmem %s0, %s229
      %p231 = pneg %p49
      %p232 = pneg %p46
      %p233 = pneg %p70
      %p234 = pneg %p67
      %p235 = pneg %p91
      %p236 = pneg %p88
      %s237 = smul.u32 4, %s21
      %p238 = scmp.lt.s32.totalorder %s237, 3
      %s239 = scalar_select %p238, %s237, 3
      %s240 = smul.addr %s239, 4
      %s241 = scalar_lea.vmem %s3, %s240
      %p242 = pneg %p117
      %p243 = pneg %p114
      %s244 = smul.u32 4, %s21
      %p245 = scmp.lt.s32.totalorder %s244, 3
      %s246 = scalar_select %p245, %s244, 3
      %s247 = scalar_lea.vmem %s4, %s246
      %p248 = pneg %p143
      %p249 = pneg %p140
      %p250 = pneg %p171
      %p251 = pneg %p168
      %s252 = smul.u32 4, %s21
      %p253 = scmp.lt.s32.totalorder %s20, 1
      %s254 = scalar_select %p253, %s20, 1
      %p255 = scmp.lt.s32.totalorder %s252, 3
      %s256 = scalar_select %p255, %s252, 3
      %s257 = smul.addr %s254, 4
      %s258 = sadd.s32 %s256, %s257
      %s259 = smul.addr %s258, 4
      %s260 = scalar_lea.vmem %s5, %s259
      %p261 = scmp.lt.s32.totalorder %s20, 1
      %s262 = scalar_select %p261, %s20, 1
      %s263 = smul.addr %s262, 4
      %s264 = scalar_lea.vmem %s0, %s263
      %s265 = smul.u32 4, %s21
      %p266 = scmp.lt.s32.totalorder %s265, 3
      %s267 = scalar_select %p266, %s265, 3
      %s268 = smul.addr %s267, 4
      %s269 = scalar_lea.vmem %s3, %s268
      %s270 = smul.u32 4, %s21
      %s271 = smul.u32 4, %s21
      %p272 = scmp.lt.s32.totalorder %s271, 3
      %s273 = scalar_select %p272, %s271, 3
      %s274 = scalar_lea.vmem %s4, %s273
      %s275 = smul.u32 4, %s21
      %s276 = smul.u32 4, %s21
      %p277 = scmp.lt.s32.totalorder %s20, 1
      %s278 = scalar_select %p277, %s20, 1
      %p279 = scmp.lt.s32.totalorder %s276, 3
      %s280 = scalar_select %p279, %s276, 3
      %s281 = smul.addr %s278, 4
      %s282 = sadd.s32 %s280, %s281
      %s283 = smul.addr %s282, 4
      %s284 = scalar_lea.vmem %s5, %s283
      %s285 = smul.u32 4, %s21
      %p286 = scmp.eq.s32.totalorder %s21, 0
      // Predicated region
      $region41: #{model_forward.14} parent=39 // pred_check
        %p287 = pneg %p286
      $region42: #{model_forward.14} parent=39 // pred_check_branch
        %289 = sbr.rel (%p287) target = $region44
      $region43: #{model_forward.14} parent=39 // pred_region
        %v290 = vld [vmem:[%s264] sm:$0xf]
        %v291 = vunpack.c.l.bf16 %v290
        %292 = vadd.xlane.f32.xlu0 %v291
        %v293 = vpop.xlane.xlu0 %292
        %v294 = vrcp.pop 128.0
        %v295 = vmul.f32 128.0, %v294
        %v296 = vsub.f32 1.0, %v295
        %v297 = vmul.f32 %v294, %v296
        %v298 = vadd.f32 %v294, %v297
        %vm299 = vweird.f32 %v294
        %v300 = vsel %vm299, %v294, %v298
        %v301 = vmul.f32 %v293, %v300
        %v302 = vsub.f32 %v291, %v301
        %v303 = vmul.f32 %v302, %v302
        %304 = vadd.xlane.f32.xlu0 %v303
        %v305 = vpop.xlane.xlu0 %304
        %v306 = vmul.f32 %v305, %v300
        %v307 = vadd.f32 %v306, 1e-05
        %v308 = vrsqrt.pop %v307
        %v309 = vmul.f32 %v308, %v307
        %v310 = vmul.f32 %v309, %v308
        %v311 = vmul.f32 0.5, %v310
        %v312 = vsub.f32 1.5, %v311
        %v313 = vmul.f32 %v308, %v312
        %vm314 = vweird.f32 %v307
        %vm315 = vweird.f32 %v308
        %vm316 = vmor %vm314, %vm315
        %v317 = vsel %vm316, %v308, %v313
        %v318 = vmul.f32 %v302, %v317
        %v319 = vld [vmem:[%s1] sm:$0x1]
        %v321 = vperm.slane %v319, 0
        %v323 = vmul.f32 %v318, %v321
        %v324 = vld [vmem:[%s2] sm:$0x1]
        %v326 = vperm.slane %v324, 0
        %v328 = vadd.f32 %v323, %v326
        %v329 = vpack.c.bf16 %v328, %v328
        %330 = vst [vmem:[#allocation2] sm:$0xf] %v329
      $region44: #{model_forward.14} parent=39 // pred_fallthru
        _
      %v331 = vld [vmem:[#allocation2] sm:$0xf]
      %v332 = vld [vmem:[%s269] sm:$0xff]
      %v333 = vld [vmem:[%s269 + $0x8] sm:$0xff]
      %v334 = vld [vmem:[%s269 + $0x10] sm:$0xff]
      %v335 = vld [vmem:[%s269 + $0x18] sm:$0xff]
      %v336 = vld [vmem:[%s269 + $0x20] sm:$0xff]
      %v337 = vld [vmem:[%s269 + $0x28] sm:$0xff]
      %v338 = vld [vmem:[%s269 + $0x30] sm:$0xff]
      %v339 = vld [vmem:[%s269 + $0x38] sm:$0xff]
      %v340 = vld [vmem:[%s269 + $0x40] sm:$0xff]
      %v341 = vld [vmem:[%s269 + $0x48] sm:$0xff]
      %v342 = vld [vmem:[%s269 + $0x50] sm:$0xff]
      %v343 = vld [vmem:[%s269 + $0x58] sm:$0xff]
      %v344 = vld [vmem:[%s269 + $0x60] sm:$0xff]
      %v345 = vld [vmem:[%s269 + $0x68] sm:$0xff]
      %v346 = vld [vmem:[%s269 + $0x70] sm:$0xff]
      %v347 = vld [vmem:[%s269 + $0x78] sm:$0xff]
      %v348 = vld [vmem:[%s269 + $0x80] sm:$0xff]
      %v349 = vld [vmem:[%s269 + $0x88] sm:$0xff]
      %v350 = vld [vmem:[%s269 + $0x90] sm:$0xff]
      %v351 = vld [vmem:[%s269 + $0x98] sm:$0xff]
      %v352 = vld [vmem:[%s269 + $0xa0] sm:$0xff]
      %v353 = vld [vmem:[%s269 + $0xa8] sm:$0xff]
      %v354 = vld [vmem:[%s269 + $0xb0] sm:$0xff]
      %v355 = vld [vmem:[%s269 + $0xb8] sm:$0xff]
      %v356 = vld [vmem:[%s269 + $0xc0] sm:$0xff]
      %v357 = vld [vmem:[%s269 + $0xc8] sm:$0xff]
      %v358 = vld [vmem:[%s269 + $0xd0] sm:$0xff]
      %v359 = vld [vmem:[%s269 + $0xd8] sm:$0xff]
      %v360 = vld [vmem:[%s269 + $0xe0] sm:$0xff]
      %v361 = vld [vmem:[%s269 + $0xe8] sm:$0xff]
      %v362 = vld [vmem:[%s269 + $0xf0] sm:$0xff]
      %v363 = vld [vmem:[%s269 + $0xf8] sm:$0xff]
      %v364 = vld [vmem:[%s274] sm:$0xf]
      %v366 = vperm.slane %v364, 0
      %v367 = vperm.slane %v364, 1
      %v368 = vperm.slane %v364, 2
      %v369 = vperm.slane %v364, 3
      %v406 = vunpack.c.l.b16 %v332
      %v407 = vunpack.c.h.b16 %v332
      %v408 = vunpack.c.l.b16 %v333
      %v409 = vunpack.c.h.b16 %v333
      %v410 = vunpack.c.l.b16 %v334
      %v411 = vunpack.c.h.b16 %v334
      %v412 = vunpack.c.l.b16 %v335
      %v413 = vunpack.c.h.b16 %v335
      %v414 = vunpack.c.l.b16 %v336
      %v415 = vunpack.c.h.b16 %v336
      %v416 = vunpack.c.l.b16 %v337
      %v417 = vunpack.c.h.b16 %v337
      %v418 = vunpack.c.l.b16 %v338
      %v419 = vunpack.c.h.b16 %v338
      %v420 = vunpack.c.l.b16 %v339
      %v421 = vunpack.c.h.b16 %v339
      %v422 = vunpack.c.l.b16 %v340
      %v423 = vunpack.c.h.b16 %v340
      %v424 = vunpack.c.l.b16 %v341
      %v425 = vunpack.c.h.b16 %v341
      %v426 = vunpack.c.l.b16 %v342
      %v427 = vunpack.c.h.b16 %v342
      %v428 = vunpack.c.l.b16 %v343
      %v429 = vunpack.c.h.b16 %v343
      %v430 = vunpack.c.l.b16 %v344
      %v431 = vunpack.c.h.b16 %v344
      %v432 = vunpack.c.l.b16 %v345
      %v433 = vunpack.c.h.b16 %v345
      %v434 = vunpack.c.l.b16 %v346
      %v435 = vunpack.c.h.b16 %v346
      %v436 = vunpack.c.l.b16 %v347
      %v437 = vunpack.c.h.b16 %v347
      %v438 = vunpack.c.l.b16 %v348
      %v439 = vunpack.c.h.b16 %v348
      %v440 = vunpack.c.l.b16 %v349
      %v441 = vunpack.c.h.b16 %v349
      %v442 = vunpack.c.l.b16 %v350
      %v443 = vunpack.c.h.b16 %v350
      %v444 = vunpack.c.l.b16 %v351
      %v445 = vunpack.c.h.b16 %v351
      %v446 = vunpack.c.l.b16 %v352
      %v447 = vunpack.c.h.b16 %v352
      %v448 = vunpack.c.l.b16 %v353
      %v449 = vunpack.c.h.b16 %v353
      %v450 = vunpack.c.l.b16 %v354
      %v451 = vunpack.c.h.b16 %v354
      %v452 = vunpack.c.l.b16 %v355
      %v453 = vunpack.c.h.b16 %v355
      %v454 = vunpack.c.l.b16 %v356
      %v455 = vunpack.c.h.b16 %v356
      %v456 = vunpack.c.l.b16 %v357
      %v457 = vunpack.c.h.b16 %v357
      %v458 = vunpack.c.l.b16 %v358
      %v459 = vunpack.c.h.b16 %v358
      %v460 = vunpack.c.l.b16 %v359
      %v461 = vunpack.c.h.b16 %v359
      %v462 = vunpack.c.l.b16 %v360
      %v463 = vunpack.c.h.b16 %v360
      %v464 = vunpack.c.l.b16 %v361
      %v465 = vunpack.c.h.b16 %v361
      %v466 = vunpack.c.l.b16 %v362
      %v467 = vunpack.c.h.b16 %v362
      %v468 = vunpack.c.l.b16 %v363
      %v469 = vunpack.c.h.b16 %v363
      %v470 = vpack.c.b16 %v410, %v406
      %v471 = vpack.c.b16 %v411, %v407
      %v472 = vpack.c.b16 %v412, %v408
      %v473 = vpack.c.b16 %v413, %v409
      %v474 = vpack.c.b16 %v418, %v414
      %v475 = vpack.c.b16 %v419, %v415
      %v476 = vpack.c.b16 %v420, %v416
      %v477 = vpack.c.b16 %v421, %v417
      %v478 = vpack.c.b16 %v426, %v422
      %v479 = vpack.c.b16 %v427, %v423
      %v480 = vpack.c.b16 %v428, %v424
      %v481 = vpack.c.b16 %v429, %v425
      %v482 = vpack.c.b16 %v434, %v430
      %v483 = vpack.c.b16 %v435, %v431
      %v484 = vpack.c.b16 %v436, %v432
      %v485 = vpack.c.b16 %v437, %v433
      %v486 = vpack.c.b16 %v442, %v438
      %v487 = vpack.c.b16 %v443, %v439
      %v488 = vpack.c.b16 %v444, %v440
      %v489 = vpack.c.b16 %v445, %v441
      %v490 = vpack.c.b16 %v450, %v446
      %v491 = vpack.c.b16 %v451, %v447
      %v492 = vpack.c.b16 %v452, %v448
      %v493 = vpack.c.b16 %v453, %v449
      %v494 = vpack.c.b16 %v458, %v454
      %v495 = vpack.c.b16 %v459, %v455
      %v496 = vpack.c.b16 %v460, %v456
      %v497 = vpack.c.b16 %v461, %v457
      %v498 = vpack.c.b16 %v466, %v462
      %v499 = vpack.c.b16 %v467, %v463
      %v500 = vpack.c.b16 %v468, %v464
      %v501 = vpack.c.b16 %v469, %v465
      %534 = vmatpush.bf16.msra.mxu0 %v498
      %535 = vmatpush.bf16.msra.mxu0 %v494
      %536 = vmatpush.bf16.msra.mxu0 %v490
      %537 = vmatpush.bf16.msra.mxu0 %v486
      %538 = vmatpush.bf16.msra.mxu0 %v482
      %539 = vmatpush.bf16.msra.mxu0 %v478
      %540 = vmatpush.bf16.msra.mxu0 %v474
      %541 = vmatpush.bf16.msra.mxu0 %v470
      %542 = vmatmul.bf16.gmra.mxu0 %v331
      %v543 = vpop.f32.mrf.mxu0
      %v544 = vadd.f32 %v366, %v543
      %v545 = vpop.f32.mrf.mxu0
      %546 = vdwg.mxu0
      %547 = vmatpush.bf16.msra.mxu0 %v499
      %548 = vmatpush.bf16.msra.mxu0 %v495
      %549 = vmatpush.bf16.msra.mxu0 %v491
      %550 = vmatpush.bf16.msra.mxu0 %v487
      %551 = vmatpush.bf16.msra.mxu0 %v483
      %552 = vmatpush.bf16.msra.mxu0 %v479
      %553 = vmatpush.bf16.msra.mxu0 %v475
      %554 = vmatpush.bf16.msra.mxu0 %v471
      %555 = vmatmul.bf16.gmra.mxu0 %v331
      %v556 = vpop.f32.mrf.mxu0
      %v557 = vadd.f32 %v367, %v556
      %v558 = vpop.f32.mrf.mxu0
      %559 = vdwg.mxu0
      %560 = vmatpush.bf16.msra.mxu0 %v500
      %561 = vmatpush.bf16.msra.mxu0 %v496
      %562 = vmatpush.bf16.msra.mxu0 %v492
      %563 = vmatpush.bf16.msra.mxu0 %v488
      %564 = vmatpush.bf16.msra.mxu0 %v484
      %565 = vmatpush.bf16.msra.mxu0 %v480
      %566 = vmatpush.bf16.msra.mxu0 %v476
      %567 = vmatpush.bf16.msra.mxu0 %v472
      %568 = vmatmul.bf16.gmra.mxu0 %v331
      %v569 = vpop.f32.mrf.mxu0
      %v570 = vadd.f32 %v368, %v569
      %v571 = vpop.f32.mrf.mxu0
      %572 = vdwg.mxu0
      %573 = vmatpush.bf16.msra.mxu0 %v501
      %574 = vmatpush.bf16.msra.mxu0 %v497
      %575 = vmatpush.bf16.msra.mxu0 %v493
      %576 = vmatpush.bf16.msra.mxu0 %v489
      %577 = vmatpush.bf16.msra.mxu0 %v485
      %578 = vmatpush.bf16.msra.mxu0 %v481
      %579 = vmatpush.bf16.msra.mxu0 %v477
      %580 = vmatpush.bf16.msra.mxu0 %v473
      %581 = vmatmul.bf16.gmra.mxu0 %v331
      %v582 = vpop.f32.mrf.mxu0
      %v583 = vadd.f32 %v369, %v582
      %v584 = vpop.f32.mrf.mxu0
      %585 = vdwg.mxu0
      %v586 = vmul.f32 %v544, 0.5
      %v587 = vmul.f32 %v557, 0.5
      %v588 = vmul.f32 %v570, 0.5
      %v589 = vmul.f32 %v583, 0.5
      %v590 = vmul.f32 %v544, 0.044715
      %v591 = vmul.f32 %v557, 0.044715
      %v592 = vmul.f32 %v570, 0.044715
      %v593 = vmul.f32 %v583, 0.044715
      %v594 = vmul.f32 %v590, %v544
      %v595 = vmul.f32 %v591, %v557
      %v596 = vmul.f32 %v592, %v570
      %v597 = vmul.f32 %v593, %v583
      %v598 = vmul.f32 %v594, %v544
      %v599 = vmul.f32 %v595, %v557
      %v600 = vmul.f32 %v596, %v570
      %v601 = vmul.f32 %v597, %v583
      %v602 = vadd.f32 %v544, %v598
      %v603 = vadd.f32 %v557, %v599
      %v604 = vadd.f32 %v570, %v600
      %v605 = vadd.f32 %v583, %v601
      %v606 = vmul.f32 %v602, 0.7978846
      %v607 = vmul.f32 %v603, 0.7978846
      %v608 = vmul.f32 %v604, 0.7978846
      %v609 = vmul.f32 %v605, 0.7978846
      %v610 = vtanh.pop %v606
      %v611 = vtanh.pop %v607
      %v612 = vtanh.pop %v608
      %v613 = vtanh.pop %v609
      %v614 = vadd.f32 %v610, 1.0
      %v615 = vadd.f32 %v611, 1.0
      %v616 = vadd.f32 %v612, 1.0
      %v617 = vadd.f32 %v613, 1.0
      %v618 = vmul.f32 %v586, %v614
      %v619 = vmul.f32 %v587, %v615
      %v620 = vmul.f32 %v588, %v616
      %v621 = vmul.f32 %v589, %v617
      %v622 = vpack.c.bf16 %v619, %v618
      %v623 = vpack.c.bf16 %v621, %v620
      %624 = vst [vmem:[%s284] sm:$0xff] %v622
      %625 = vst [vmem:[%s284 + $0x8] sm:$0xff] %v623
      %s626 = smul.u32 4, %s21
      %p627 = scmp.lt.s32.totalorder %s20, 1
      %s628 = scalar_select %p627, %s20, 1
      %p629 = scmp.lt.s32.totalorder %s626, 3
      %s630 = scalar_select %p629, %s626, 3
      %s631 = smul.addr %s628, 4
      %s632 = sadd.s32 %s630, %s631
      %s633 = smul.addr %s632, 4
      %s634 = scalar_lea.vmem %s5, %s633
      // Predicated region
      $region45: #{model_forward.14} parent=39 // pred_check
        %p635 = pneg %p168
      $region46: #{model_forward.14} parent=39 // pred_check_branch
        %637 = sbr.rel (%p635) target = $region48
      $region47: #{model_forward.14} parent=39 // pred_region
        %s638 = smul.u32 4, %s21
      $region48: #{model_forward.14} parent=39 // pred_fallthru
        _
    $region40: #{model_forward.14} parent=5 // pred_fallthru
      _
    %p639 = scmp.le.s32.totalorder 2, %s11
    // Predicated region
    $region49: #{model_forward.14} parent=5 // pred_check
      %p640 = pneg %p639
    $region50: #{model_forward.14} parent=5 // pred_check_branch
      %642 = sbr.rel (%p640) target = $region52
    $region51: #{model_forward.14} parent=5 // pred_region
      %s643 = ssub.s32 %s11, 2
      // Predicated region
      $region53: #{model_forward.14} parent=51 // pred_check
        %p644 = pneg %p174
      $region54: #{model_forward.14} parent=51 // pred_check_branch
        %646 = sbr.rel (%p644) target = $region56
      $region55: #{model_forward.14} parent=51 // pred_region
        %s647 = smul.u32 4, %s23
        %p648 = scmp.lt.s32.totalorder %s22, 1
        %s649 = scalar_select %p648, %s22, 1
        %p650 = scmp.lt.s32.totalorder %s647, 3
        %s651 = scalar_select %p650, %s647, 3
        %s652 = smul.addr %s649, 4
        %s653 = sadd.s32 %s651, %s652
        %s654 = smul.addr %s653, 4
        %s655 = scalar_lea.vmem %s5, %s654
      $region56: #{model_forward.14} parent=51 // pred_fallthru
        _
    $region52: #{model_forward.14} parent=5 // pred_fallthru
      _
  $region6: #{model_forward.14} parent=0 // loop_footer
    %s15 = sadd.s32 1, %s11
  $region7: #{model_forward.14} parent=0 // loop_footer_branch
    %10 = sbr.rel target = $region3
  $region8: #{model_forward.14} parent=0 // loop_exit
    _

// kernel: model_forward.11
$region0: #{model_forward.11}
  #allocation0 [shape = 'u32[]', space=smem, size = 0x4, offset = 0x4, fixed_abs, tag = 'smem constant byte address 0x4 - core index']
  #allocation1 [shape = 'u32[72,128]{1,0:T(1,128)}', space=vmem, size = 0x9000, scoped, tag = 'internal scratch']
  #allocation2 [shape = 'bf16[8,128]{1,0:T(8,128)(2,1)}', space=vmem, size = 0x800, scoped, tag = 'scratch operand']
  %s0 = inlined_call_operand.vmem [shape: bf16[16,128], index: 0, kind: input, shape index: {}]
  %s1 = inlined_call_operand.vmem [shape: f32[1,128], index: 1, kind: input, shape index: {}]
  %s2 = inlined_call_operand.vmem [shape: f32[1,128], index: 2, kind: input, shape index: {}]
  %s3 = inlined_call_operand.hbm [shape: bf16[128,384], index: 3, kind: input, shape index: {}]
  %s4 = inlined_call_operand.vmem [shape: f32[1,384], index: 4, kind: input, shape index: {}]
  %s5 = inlined_call_operand.vmem [shape: bf16[16,384], index: 5, kind: output, shape index: {}]
  %s6 = sld [smem:[#allocation0]]
  $region61: #{model_forward.11} parent=0
    _
  %s8 = ssub.s32 1, %s6
  %s9 = scalar_select 0, %s8, %s6
  $region1: #{model_forward.11} parent=0
    #allocation3 [shape = 'u8[98304]{0}', space=vmem, size = 0x18000, scoped, tag = 'input window, operand 3, single buffered']
    #allocation4 [shape = 's32[2]{0}', space=sflag, size = 0x8, scoped, tag = 'scoped memory for model_forward.11']
    %10 = vsyncpa [#allocation4], 0
    loop: start=0, step=1, limit=4
    $region2: #{model_forward.11} parent=1 // loop_pre_header
      _
    $region3: #{model_forward.11} parent=1 // loop_header
      %s12 = sphi 0, %s16
      %p13 = scmp.ge.s32.totalorder %s12, 4
      %s19 = sphi 0, %s31
      %s20 = sphi 0, %s27
      %s21 = sphi 0, %s19
      %s22 = sphi 0, %s20
      %s23 = sphi 0, %s21
      %s24 = sphi 0, %s22
      %s34 = sphi 0, %s36
      %s37 = sphi 0, %s34
      %s38 = sphi 0, %s37
      %s54 = sphi 0, %s38
      %s58 = sphi 0, %s58
      %s60 = sphi 0, %s58
      %s61 = sphi 0, %s60
      %s75 = sphi 0, %s61
      %s79 = sphi 0, %s79
      %s81 = sphi 0, %s79
      %s82 = sphi 0, %s81
      %s96 = sphi 0, %s82
      %s102 = sphi 0, %s104
      %s105 = sphi 0, %s102
      %s106 = sphi 0, %s105
      %s122 = sphi 0, %s106
      %s128 = sphi 0, %s130
      %s131 = sphi 0, %s128
      %s132 = sphi 0, %s131
      %s148 = sphi 0, %s132
      %s156 = sphi 0, %s158
      %s159 = sphi 0, %s156
      %s160 = sphi 0, %s159
      %s176 = sphi 0, %s160
    $region4: #{model_forward.11} parent=1 // loop_header_branch
      %15 = sbr.rel (%p13) target = $region8
    $region5: #{model_forward.11} parent=1 // loop_body
      %s17 = ssub.s32 %s12, 1
      %s18 = ssub.s32 %s12, 2
      %s25 = sadd.s32 1, %s20
      %p26 = scmp.ge.s32.totalorder %s25, 1
      %s27 = scalar_select %p26, 0, %s25
      %s28 = sadd.s32 1, %s19
      %s29 = scalar_select %p26, %s28, %s19
      %p30 = scmp.ge.s32.totalorder %s29, 2
      %s31 = scalar_select %p30, 0, %s29
      %s32 = ssub.s32 %s19, %s31
      %p33 = scmp.eq.s32.totalorder %s32, 0
      %s35 = sadd.s32 %s34, 1
      %s36 = scalar_select %p33, %s34, %s35
      %p39 = pneg %p33
      %p40 = scmp.eq.s32.totalorder %s12, 1
      %p41 = por %p39, %p40
      %p42 = scmp.ne.s32.totalorder %s34, %s37
      %p43 = scmp.eq.s32.totalorder %s12, 0
      %p44 = por %p42, %p43
      %p45 = scmp.ne.s32.totalorder %s34, %s37
      %p46 = scmp.eq.s32.totalorder %s17, 1
      %p47 = por %p45, %p46
      %p48 = scmp.ne.s32.totalorder %s37, %s38
      %p49 = scmp.eq.s32.totalorder %s17, 0
      %p50 = por %p48, %p49
      %p51 = scmp.ne.s32.totalorder %s37, %s38
      %p52 = scmp.eq.s32.totalorder %s18, 1
      %p53 = por %p51, %p52
      %p55 = scmp.ne.s32.totalorder %s38, %s54
      %p56 = scmp.eq.s32.totalorder %s18, 0
      %p57 = por %p55, %p56
      %s59 = sadd.s32 %s58, 1
      %p62 = scmp.eq.s32.totalorder %s12, 1
      %p63 = scmp.ne.s32.totalorder %s58, %s60
      %p64 = scmp.eq.s32.totalorder %s12, 0
      %p65 = por %p63, %p64
      %p66 = scmp.ne.s32.totalorder %s58, %s60
      %p67 = scmp.eq.s32.totalorder %s17, 1
      %p68 = por %p66, %p67
      %p69 = scmp.ne.s32.totalorder %s60, %s61
      %p70 = scmp.eq.s32.totalorder %s17, 0
      %p71 = por %p69, %p70
      %p72 = scmp.ne.s32.totalorder %s60, %s61
      %p73 = scmp.eq.s32.totalorder %s18, 1
      %p74 = por %p72, %p73
      %p76 = scmp.ne.s32.totalorder %s61, %s75
      %p77 = scmp.eq.s32.totalorder %s18, 0
      %p78 = por %p76, %p77
      %s80 = sadd.s32 %s79, 1
      %p83 = scmp.eq.s32.totalorder %s12, 1
      %p84 = scmp.ne.s32.totalorder %s79, %s81
      %p85 = scmp.eq.s32.totalorder %s12, 0
      %p86 = por %p84, %p85
      %p87 = scmp.ne.s32.totalorder %s79, %s81
      %p88 = scmp.eq.s32.totalorder %s17, 1
      %p89 = por %p87, %p88
      %p90 = scmp.ne.s32.totalorder %s81, %s82
      %p91 = scmp.eq.s32.totalorder %s17, 0
      %p92 = por %p90, %p91
      %p93 = scmp.ne.s32.totalorder %s81, %s82
      %p94 = scmp.eq.s32.totalorder %s18, 1
      %p95 = por %p93, %p94
      %p97 = scmp.ne.s32.totalorder %s82, %s96
      %p98 = scmp.eq.s32.totalorder %s18, 0
      %p99 = por %p97, %p98
      %s100 = ssub.s32 %s20, %s27
      %p101 = scmp.eq.s32.totalorder %s100, 0
      %s103 = sadd.s32 %s102, 1
      %s104 = scalar_select %p101, %s102, %s103
      %p107 = pneg %p101
      %p108 = scmp.eq.s32.totalorder %s12, 1
      %p109 = por %p107, %p108
      %p110 = scmp.ne.s32.totalorder %s102, %s105
      %p111 = scmp.eq.s32.totalorder %s12, 0
      %p112 = por %p110, %p111
      %p113 = scmp.ne.s32.totalorder %s102, %s105
      %p114 = scmp.eq.s32.totalorder %s17, 1
      %p115 = por %p113, %p114
      %p116 = scmp.ne.s32.totalorder %s105, %s106
      %p117 = scmp.eq.s32.totalorder %s17, 0
      %p118 = por %p116, %p117
      %p119 = scmp.ne.s32.totalorder %s105, %s106
      %p120 = scmp.eq.s32.totalorder %s18, 1
      %p121 = por %p119, %p120
      %p123 = scmp.ne.s32.totalorder %s106, %s122
      %p124 = scmp.eq.s32.totalorder %s18, 0
      %p125 = por %p123, %p124
      %s126 = ssub.s32 %s20, %s27
      %p127 = scmp.eq.s32.totalorder %s126, 0
      %s129 = sadd.s32 %s128, 1
      %s130 = scalar_select %p127, %s128, %s129
      %p133 = pneg %p127
      %p134 = scmp.eq.s32.totalorder %s12, 1
      %p135 = por %p133, %p134
      %p136 = scmp.ne.s32.totalorder %s128, %s131
      %p137 = scmp.eq.s32.totalorder %s12, 0
      %p138 = por %p136, %p137
      %p139 = scmp.ne.s32.totalorder %s128, %s131
      %p140 = scmp.eq.s32.totalorder %s17, 1
      %p141 = por %p139, %p140
      %p142 = scmp.ne.s32.totalorder %s131, %s132
      %p143 = scmp.eq.s32.totalorder %s17, 0
      %p144 = por %p142, %p143
      %p145 = scmp.ne.s32.totalorder %s131, %s132
      %p146 = scmp.eq.s32.totalorder %s18, 1
      %p147 = por %p145, %p146
      %p149 = scmp.ne.s32.totalorder %s132, %s148
      %p150 = scmp.eq.s32.totalorder %s18, 0
      %p151 = por %p149, %p150
      %s152 = ssub.s32 %s19, %s31
      %s153 = ssub.s32 %s20, %s27
      %s154 = sor.u32 %s152, %s153
      %p155 = scmp.eq.s32.totalorder %s154, 0
      %s157 = sadd.s32 %s156, 1
      %s158 = scalar_select %p155, %s156, %s157
      %p161 = pneg %p155
      %p162 = scmp.eq.s32.totalorder %s12, 1
      %p163 = por %p161, %p162
      %p164 = scmp.ne.s32.totalorder %s156, %s159
      %p165 = scmp.eq.s32.totalorder %s12, 0
      %p166 = por %p164, %p165
      %p167 = scmp.ne.s32.totalorder %s156, %s159
      %p168 = scmp.eq.s32.totalorder %s17, 1
      %p169 = por %p167, %p168
      %p170 = scmp.ne.s32.totalorder %s159, %s160
      %p171 = scmp.eq.s32.totalorder %s17, 0
      %p172 = por %p170, %p171
      %p173 = scmp.ne.s32.totalorder %s159, %s160
      %p174 = scmp.eq.s32.totalorder %s18, 1
      %p175 = por %p173, %p174
      %p177 = scmp.ne.s32.totalorder %s160, %s176
      %p178 = scmp.eq.s32.totalorder %s18, 0
      %p179 = por %p177, %p178
      %p180 = scmp.le.s32.totalorder 1, %s12
      %p181 = scmp.lt.s32.totalorder %s12, 3
      %p182 = pnand %p180, %p181
      %p183 = pneg %p182
      // Predicated region
      $region9: #{model_forward.11} parent=5 // pred_check
        _
      $region10: #{model_forward.11} parent=5 // pred_check_branch
        %185 = sbr.rel (%p182) target = $region12
      $region11: #{model_forward.11} parent=5 // pred_region
        %s186 = ssub.s32 %s12, 1
        // Predicated region
        $region13: #{model_forward.11} parent=11 // pred_check
          %p187 = pneg %p71
        $region14: #{model_forward.11} parent=11 // pred_check_branch
          %189 = sbr.rel (%p187) target = $region16
        $region15: #{model_forward.11} parent=11 // pred_region
          _
        $region16: #{model_forward.11} parent=11 // pred_fallthru
          _
        // Predicated region
        $region17: #{model_forward.11} parent=11 // pred_check
          %p190 = pneg %p92
        $region18: #{model_forward.11} parent=11 // pred_check_branch
          %192 = sbr.rel (%p190) target = $region20
        $region19: #{model_forward.11} parent=11 // pred_region
          _
        $region20: #{model_forward.11} parent=11 // pred_fallthru
          _
        // Predicated region
        $region21: #{model_forward.11} parent=11 // pred_check
          %p193 = pneg %p118
        $region22: #{model_forward.11} parent=11 // pred_check_branch
          %195 = sbr.rel (%p193) target = $region24
        $region23: #{model_forward.11} parent=11 // pred_region
          %s196 = smul.u32 3, %s22
          %198 = vsyncadd [#allocation4], 0
          %s199 = smul.addr %s196, 4
          %s200 = scalar_lea.hbm %s3, %s199
          %s201 = sshll.u32 %s200, 4
          %s202 = int_to_ptr.hbm [resolvable:$true] %s201
          %s203 = sshll.u32 [#allocation3], 4
          %s204 = int_to_ptr.vmem [resolvable:$true] %s203
          %209 = dma.hbm_to_vmem [thread:$0]  %s202, 3072, %s204, [#allocation4], 192, 192, 12
        $region24: #{model_forward.11} parent=11 // pred_fallthru
          _
        // Predicated region
        $region25: #{model_forward.11} parent=11 // pred_check
          %p210 = pneg %p144
        $region26: #{model_forward.11} parent=11 // pred_check_branch
          %212 = sbr.rel (%p210) target = $region28
        $region27: #{model_forward.11} parent=11 // pred_region
          %s213 = smul.u32 3, %s22
          %p214 = scmp.lt.s32.totalorder %s213, 2
          %s215 = scalar_select %p214, %s213, 2
          %s216 = scalar_lea.vmem %s4, %s215
          %s217 = smul.u32 3, %s22
        $region28: #{model_forward.11} parent=11 // pred_fallthru
          _
      $region12: #{model_forward.11} parent=5 // pred_fallthru
        _
      %p218 = scmp.lt.s32.totalorder %s12, 2
      // Predicated region
      $region29: #{model_forward.11} parent=5 // pred_check
        %p219 = pneg %p218
      $region30: #{model_forward.11} parent=5 // pred_check_branch
        %221 = sbr.rel (%p219) target = $region32
      $region31: #{model_forward.11} parent=5 // pred_region
        // Predicated region
        $region33: #{model_forward.11} parent=31 // pred_check
          %p222 = pneg %p44
        $region34: #{model_forward.11} parent=31 // pred_check_branch
          %224 = sbr.rel (%p222) target = $region36
        $region35: #{model_forward.11} parent=31 // pred_region
          %p225 = scmp.lt.s32.totalorder %s19, 1
          %s226 = scalar_select %p225, %s19, 1
          %s227 = smul.addr %s226, 4
          %s228 = scalar_lea.vmem %s0, %s227
        $region36: #{model_forward.11} parent=31 // pred_fallthru
          _
      $region32: #{model_forward.11} parent=5 // pred_fallthru
        _
      %p229 = scmp.le.s32.totalorder 1, %s12
      %p230 = scmp.lt.s32.totalorder %s12, 3
      %p231 = pnand %p229, %p230
      %p232 = pneg %p231
      // Predicated region
      $region37: #{model_forward.11} parent=5 // pred_check
        _
      $region38: #{model_forward.11} parent=5 // pred_check_branch
        %234 = sbr.rel (%p231) target = $region40
      $region39: #{model_forward.11} parent=5 // pred_region
        %s235 = ssub.s32 %s12, 1
        // Predicated region
        $region41: #{model_forward.11} parent=39 // pred_check
          %p236 = pneg %p118
        $region42: #{model_forward.11} parent=39 // pred_check_branch
          %238 = sbr.rel (%p236) target = $region44
        $region43: #{model_forward.11} parent=39 // pred_region
          %240 = dma.done [#allocation4], 3072
        $region44: #{model_forward.11} parent=39 // pred_fallthru
          _
        %p241 = scmp.lt.s32.totalorder %s21, 1
        %s242 = scalar_select %p241, %s21, 1
        %s243 = smul.addr %s242, 4
        %s244 = scalar_lea.vmem %s0, %s243
        %p245 = pneg %p50
        %p246 = pneg %p47
        %p247 = pneg %p71
        %p248 = pneg %p68
        %p249 = pneg %p92
        %p250 = pneg %p89
        %p251 = pneg %p118
        %p252 = pneg %p115
        %s253 = smul.u32 3, %s22
        %p254 = scmp.lt.s32.totalorder %s253, 2
        %s255 = scalar_select %p254, %s253, 2
        %s256 = scalar_lea.vmem %s4, %s255
        %p257 = pneg %p144
        %p258 = pneg %p141
        %p259 = pneg %p172
        %p260 = pneg %p169
        %s261 = smul.u32 3, %s22
        %p262 = scmp.lt.s32.totalorder %s21, 1
        %s263 = scalar_select %p262, %s21, 1
        %p264 = scmp.lt.s32.totalorder %s261, 2
        %s265 = scalar_select %p264, %s261, 2
        %s266 = smul.addr %s263, 3
        %s267 = sadd.s32 %s265, %s266
        %s268 = smul.addr %s267, 4
        %s269 = scalar_lea.vmem %s5, %s268
        %p270 = scmp.lt.s32.totalorder %s21, 1
        %s271 = scalar_select %p270, %s21, 1
        %s272 = smul.addr %s271, 4
        %s273 = scalar_lea.vmem %s0, %s272
        %s274 = smul.u32 3, %s22
        %s275 = smul.u32 3, %s22
        %p276 = scmp.lt.s32.totalorder %s275, 2
        %s277 = scalar_select %p276, %s275, 2
        %s278 = scalar_lea.vmem %s4, %s277
        %s279 = smul.u32 3, %s22
        %s280 = smul.u32 3, %s22
        %p281 = scmp.lt.s32.totalorder %s21, 1
        %s282 = scalar_select %p281, %s21, 1
        %p283 = scmp.lt.s32.totalorder %s280, 2
        %s284 = scalar_select %p283, %s280, 2
        %s285 = smul.addr %s282, 3
        %s286 = sadd.s32 %s284, %s285
        %s287 = smul.addr %s286, 4
        %s288 = scalar_lea.vmem %s5, %s287
        %s289 = smul.u32 3, %s22
        %p290 = scmp.eq.s32.totalorder %s22, 0
        // Predicated region
        $region45: #{model_forward.11} parent=39 // pred_check
          %p291 = pneg %p290
        $region46: #{model_forward.11} parent=39 // pred_check_branch
          %293 = sbr.rel (%p291) target = $region48
        $region47: #{model_forward.11} parent=39 // pred_region
          %v294 = vld [vmem:[%s273] sm:$0xf]
          %v295 = vunpack.c.l.bf16 %v294
          %296 = vadd.xlane.f32.xlu0 %v295
          %v297 = vpop.xlane.xlu0 %296
          %v298 = vrcp.pop 128.0
          %v299 = vmul.f32 128.0, %v298
          %v300 = vsub.f32 1.0, %v299
          %v301 = vmul.f32 %v298, %v300
          %v302 = vadd.f32 %v298, %v301
          %vm303 = vweird.f32 %v298
          %v304 = vsel %vm303, %v298, %v302
          %v305 = vmul.f32 %v297, %v304
          %v306 = vsub.f32 %v295, %v305
          %v307 = vmul.f32 %v306, %v306
          %308 = vadd.xlane.f32.xlu0 %v307
          %v309 = vpop.xlane.xlu0 %308
          %v310 = vmul.f32 %v309, %v304
          %v311 = vadd.f32 %v310, 1e-05
          %v312 = vrsqrt.pop %v311
          %v313 = vmul.f32 %v312, %v311
          %v314 = vmul.f32 %v313, %v312
          %v315 = vmul.f32 0.5, %v314
          %v316 = vsub.f32 1.5, %v315
          %v317 = vmul.f32 %v312, %v316
          %vm318 = vweird.f32 %v311
          %vm319 = vweird.f32 %v312
          %vm320 = vmor %vm318, %vm319
          %v321 = vsel %vm320, %v312, %v317
          %v322 = vmul.f32 %v306, %v321
          %v323 = vld [vmem:[%s1] sm:$0x1]
          %v325 = vperm.slane %v323, 0
          %v327 = vmul.f32 %v322, %v325
          %v328 = vld [vmem:[%s2] sm:$0x1]
          %v330 = vperm.slane %v328, 0
          %v332 = vadd.f32 %v327, %v330
          %v333 = vpack.c.bf16 %v332, %v332
          %334 = vst [vmem:[#allocation2] sm:$0xf] %v333
        $region48: #{model_forward.11} parent=39 // pred_fallthru
          _
        %v335 = vld [vmem:[#allocation2] sm:$0xf]
        %v336 = vld [vmem:[#allocation3] sm:$0xff]
        %v337 = vld [vmem:[#allocation3 + $0x8] sm:$0xf]
        %v338 = vld [vmem:[#allocation3 + $0xc] sm:$0xff]
        %v339 = vld [vmem:[#allocation3 + $0x14] sm:$0xf]
        %v340 = vld [vmem:[#allocation3 + $0x18] sm:$0xff]
        %v341 = vld [vmem:[#allocation3 + $0x20] sm:$0xf]
        %v342 = vld [vmem:[#allocation3 + $0x24] sm:$0xff]
        %v343 = vld [vmem:[#allocation3 + $0x2c] sm:$0xf]
        %v344 = vld [vmem:[#allocation3 + $0x30] sm:$0xff]
        %v345 = vld [vmem:[#allocation3 + $0x38] sm:$0xf]
        %v346 = vld [vmem:[#allocation3 + $0x3c] sm:$0xff]
        %v347 = vld [vmem:[#allocation3 + $0x44] sm:$0xf]
        %v348 = vld [vmem:[#allocation3 + $0x48] sm:$0xff]
        %v349 = vld [vmem:[#allocation3 + $0x50] sm:$0xf]
        %v350 = vld [vmem:[#allocation3 + $0x54] sm:$0xff]
        %v351 = vld [vmem:[#allocation3 + $0x5c] sm:$0xf]
        %v352 = vld [vmem:[#allocation3 + $0x60] sm:$0xff]
        %v353 = vld [vmem:[#allocation3 + $0x68] sm:$0xf]
        %v354 = vld [vmem:[#allocation3 + $0x6c] sm:$0xff]
        %v355 = vld [vmem:[#allocation3 + $0x74] sm:$0xf]
        %v356 = vld [vmem:[#allocation3 + $0x78] sm:$0xff]
        %v357 = vld [vmem:[#allocation3 + $0x80] sm:$0xf]
        %v358 = vld [vmem:[#allocation3 + $0x84] sm:$0xff]
        %v359 = vld [vmem:[#allocation3 + $0x8c] sm:$0xf]
        %v360 = vld [vmem:[#allocation3 + $0x90] sm:$0xff]
        %v361 = vld [vmem:[#allocation3 + $0x98] sm:$0xf]
        %v362 = vld [vmem:[#allocation3 + $0x9c] sm:$0xff]
        %v363 = vld [vmem:[#allocation3 + $0xa4] sm:$0xf]
        %v364 = vld [vmem:[#allocation3 + $0xa8] sm:$0xff]
        %v365 = vld [vmem:[#allocation3 + $0xb0] sm:$0xf]
        %v366 = vld [vmem:[#allocation3 + $0xb4] sm:$0xff]
        %v367 = vld [vmem:[#allocation3 + $0xbc] sm:$0xf]
        %v368 = vld [vmem:[%s278] sm:$0x7]
        %v370 = vperm.slane %v368, 0
        %v371 = vperm.slane %v368, 1
        %v372 = vperm.slane %v368, 2
        %v408 = vunpack.c.l.b16 %v336
        %v409 = vunpack.c.h.b16 %v336
        %v410 = vunpack.c.l.b16 %v337
        %v411 = vunpack.c.l.b16 %v338
        %v412 = vunpack.c.h.b16 %v338
        %v413 = vunpack.c.l.b16 %v339
        %v414 = vunpack.c.l.b16 %v340
        %v415 = vunpack.c.h.b16 %v340
        %v416 = vunpack.c.l.b16 %v341
        %v417 = vunpack.c.l.b16 %v342
        %v418 = vunpack.c.h.b16 %v342
        %v419 = vunpack.c.l.b16 %v343
        %v420 = vunpack.c.l.b16 %v344
        %v421 = vunpack.c.h.b16 %v344
        %v422 = vunpack.c.l.b16 %v345
        %v423 = vunpack.c.l.b16 %v346
        %v424 = vunpack.c.h.b16 %v346
        %v425 = vunpack.c.l.b16 %v347
        %v426 = vunpack.c.l.b16 %v348
        %v427 = vunpack.c.h.b16 %v348
        %v428 = vunpack.c.l.b16 %v349
        %v429 = vunpack.c.l.b16 %v350
        %v430 = vunpack.c.h.b16 %v350
        %v431 = vunpack.c.l.b16 %v351
        %v432 = vunpack.c.l.b16 %v352
        %v433 = vunpack.c.h.b16 %v352
        %v434 = vunpack.c.l.b16 %v353
        %v435 = vunpack.c.l.b16 %v354
        %v436 = vunpack.c.h.b16 %v354
        %v437 = vunpack.c.l.b16 %v355
        %v438 = vunpack.c.l.b16 %v356
        %v439 = vunpack.c.h.b16 %v356
        %v440 = vunpack.c.l.b16 %v357
        %v441 = vunpack.c.l.b16 %v358
        %v442 = vunpack.c.h.b16 %v358
        %v443 = vunpack.c.l.b16 %v359
        %v444 = vunpack.c.l.b16 %v360
        %v445 = vunpack.c.h.b16 %v360
        %v446 = vunpack.c.l.b16 %v361
        %v447 = vunpack.c.l.b16 %v362
        %v448 = vunpack.c.h.b16 %v362
        %v449 = vunpack.c.l.b16 %v363
        %v450 = vunpack.c.l.b16 %v364
        %v451 = vunpack.c.h.b16 %v364
        %v452 = vunpack.c.l.b16 %v365
        %v453 = vunpack.c.l.b16 %v366
        %v454 = vunpack.c.h.b16 %v366
        %v455 = vunpack.c.l.b16 %v367
        %v456 = vpack.c.b16 %v411, %v408
        %v457 = vpack.c.b16 %v412, %v409
        %v458 = vpack.c.b16 %v413, %v410
        %v459 = vpack.c.b16 %v417, %v414
        %v460 = vpack.c.b16 %v418, %v415
        %v461 = vpack.c.b16 %v419, %v416
        %v462 = vpack.c.b16 %v423, %v420
        %v463 = vpack.c.b16 %v424, %v421
        %v464 = vpack.c.b16 %v425, %v422
        %v465 = vpack.c.b16 %v429, %v426
        %v466 = vpack.c.b16 %v430, %v427
        %v467 = vpack.c.b16 %v431, %v428
        %v468 = vpack.c.b16 %v435, %v432
        %v469 = vpack.c.b16 %v436, %v433
        %v470 = vpack.c.b16 %v437, %v434
        %v471 = vpack.c.b16 %v441, %v438
        %v472 = vpack.c.b16 %v442, %v439
        %v473 = vpack.c.b16 %v443, %v440
        %v474 = vpack.c.b16 %v447, %v444
        %v475 = vpack.c.b16 %v448, %v445
        %v476 = vpack.c.b16 %v449, %v446
        %v477 = vpack.c.b16 %v453, %v450
        %v478 = vpack.c.b16 %v454, %v451
        %v479 = vpack.c.b16 %v455, %v452
        %504 = vmatpush.bf16.msra.mxu0 %v477
        %505 = vmatpush.bf16.msra.mxu0 %v474
        %506 = vmatpush.bf16.msra.mxu0 %v471
        %507 = vmatpush.bf16.msra.mxu0 %v468
        %508 = vmatpush.bf16.msra.mxu0 %v465
        %509 = vmatpush.bf16.msra.mxu0 %v462
        %510 = vmatpush.bf16.msra.mxu0 %v459
        %511 = vmatpush.bf16.msra.mxu0 %v456
        %512 = vmatmul.bf16.gmra.mxu0 %v335
        %v513 = vpop.f32.mrf.mxu0
        %v514 = vadd.f32 %v370, %v513
        %v515 = vpop.f32.mrf.mxu0
        %516 = vdwg.mxu0
        %517 = vmatpush.bf16.msra.mxu0 %v478
        %518 = vmatpush.bf16.msra.mxu0 %v475
        %519 = vmatpush.bf16.msra.mxu0 %v472
        %520 = vmatpush.bf16.msra.mxu0 %v469
        %521 = vmatpush.bf16.msra.mxu0 %v466
        %522 = vmatpush.bf16.msra.mxu0 %v463
        %523 = vmatpush.bf16.msra.mxu0 %v460
        %524 = vmatpush.bf16.msra.mxu0 %v457
        %525 = vmatmul.bf16.gmra.mxu0 %v335
        %v526 = vpop.f32.mrf.mxu0
        %v527 = vadd.f32 %v371, %v526
        %v528 = vpop.f32.mrf.mxu0
        %529 = vdwg.mxu0
        %530 = vmatpush.bf16.msra.mxu0 %v479
        %531 = vmatpush.bf16.msra.mxu0 %v476
        %532 = vmatpush.bf16.msra.mxu0 %v473
        %533 = vmatpush.bf16.msra.mxu0 %v470
        %534 = vmatpush.bf16.msra.mxu0 %v467
        %535 = vmatpush.bf16.msra.mxu0 %v464
        %536 = vmatpush.bf16.msra.mxu0 %v461
        %537 = vmatpush.bf16.msra.mxu0 %v458
        %538 = vmatmul.bf16.gmra.mxu0 %v335
        %v539 = vpop.f32.mrf.mxu0
        %v540 = vadd.f32 %v372, %v539
        %v541 = vpop.f32.mrf.mxu0
        %542 = vdwg.mxu0
        %v543 = vpack.c.bf16 %v527, %v514
        %v544 = vpack.c.bf16 %v540, %v540
        %545 = vst [vmem:[%s288] sm:$0xff] %v543
        %546 = vst [vmem:[%s288 + $0x8] sm:$0xf] %v544
        %s547 = smul.u32 3, %s22
        %p548 = scmp.lt.s32.totalorder %s21, 1
        %s549 = scalar_select %p548, %s21, 1
        %p550 = scmp.lt.s32.totalorder %s547, 2
        %s551 = scalar_select %p550, %s547, 2
        %s552 = smul.addr %s549, 3
        %s553 = sadd.s32 %s551, %s552
        %s554 = smul.addr %s553, 4
        %s555 = scalar_lea.vmem %s5, %s554
        // Predicated region
        $region49: #{model_forward.11} parent=39 // pred_check
          %p556 = pneg %p169
        $region50: #{model_forward.11} parent=39 // pred_check_branch
          %558 = sbr.rel (%p556) target = $region52
        $region51: #{model_forward.11} parent=39 // pred_region
          %s559 = smul.u32 3, %s22
        $region52: #{model_forward.11} parent=39 // pred_fallthru
          _
      $region40: #{model_forward.11} parent=5 // pred_fallthru
        _
      %p560 = scmp.le.s32.totalorder 2, %s12
      // Predicated region
      $region53: #{model_forward.11} parent=5 // pred_check
        %p561 = pneg %p560
      $region54: #{model_forward.11} parent=5 // pred_check_branch
        %563 = sbr.rel (%p561) target = $region56
      $region55: #{model_forward.11} parent=5 // pred_region
        %s564 = ssub.s32 %s12, 2
        // Predicated region
        $region57: #{model_forward.11} parent=55 // pred_check
          %p565 = pneg %p175
        $region58: #{model_forward.11} parent=55 // pred_check_branch
          %567 = sbr.rel (%p565) target = $region60
        $region59: #{model_forward.11} parent=55 // pred_region
          %s568 = smul.u32 3, %s24
          %p569 = scmp.lt.s32.totalorder %s23, 1
          %s570 = scalar_select %p569, %s23, 1
          %p571 = scmp.lt.s32.totalorder %s568, 2
          %s572 = scalar_select %p571, %s568, 2
          %s573 = smul.addr %s570, 3
          %s574 = sadd.s32 %s572, %s573
          %s575 = smul.addr %s574, 4
          %s576 = scalar_lea.vmem %s5, %s575
        $region60: #{model_forward.11} parent=55 // pred_fallthru
          _
      $region56: #{model_forward.11} parent=5 // pred_fallthru
        _
    $region6: #{model_forward.11} parent=1 // loop_footer
      %s16 = sadd.s32 1, %s12
    $region7: #{model_forward.11} parent=1 // loop_footer_branch
      %11 = sbr.rel target = $region3
    $region8: #{model_forward.11} parent=1 // loop_exit
      _
    %577 = vsyncpa [#allocation4], 1
    %s578 = scalar_lea.sflag [#allocation4], 1
    %579 = vsyncpa %s578, 1

// kernel: model_forward.15
$region0: #{model_forward.15}
  #allocation0 [shape = 'u32[]', space=smem, size = 0x4, offset = 0x4, fixed_abs, tag = 'smem constant byte address 0x4 - core index']
  #allocation1 [shape = 'u32[72,128]{1,0:T(1,128)}', space=vmem, size = 0x9000, scoped, tag = 'internal scratch']
  %s0 = inlined_call_operand.vmem [shape: bf16[16,512], index: 0, kind: input, shape index: {}]
  %s1 = inlined_call_operand.hbm [shape: bf16[512,128], index: 1, kind: input, shape index: {}]
  %s2 = inlined_call_operand.vmem [shape: f32[1,128], index: 2, kind: input, shape index: {}]
  %s3 = inlined_call_operand.vmem [shape: bf16[16,128], index: 3, kind: input, shape index: {}]
  %s4 = inlined_call_operand.vmem [shape: bf16[16,128], index: 4, kind: output, shape index: {}]
  %s5 = sld [smem:[#allocation0]]
  $region53: #{model_forward.15} parent=0
    _
  %s7 = ssub.s32 1, %s5
  %s8 = scalar_select 0, %s7, %s5
  $region1: #{model_forward.15} parent=0
    #allocation2 [shape = 'u8[131072]{0}', space=vmem, size = 0x20000, scoped, tag = 'input window, operand 1, single buffered']
    #allocation3 [shape = 's32[2]{0}', space=sflag, size = 0x8, scoped, tag = 'scoped memory for model_forward.15']
    %9 = vsyncpa [#allocation3], 0
    loop: start=0, step=1, limit=4
    $region2: #{model_forward.15} parent=1 // loop_pre_header
      _
    $region3: #{model_forward.15} parent=1 // loop_header
      %s11 = sphi 0, %s15
      %p12 = scmp.ge.s32.totalorder %s11, 4
      %s18 = sphi 0, %s30
      %s19 = sphi 0, %s26
      %s20 = sphi 0, %s18
      %s21 = sphi 0, %s19
      %s22 = sphi 0, %s20
      %s23 = sphi 0, %s21
      %s33 = sphi 0, %s35
      %s36 = sphi 0, %s33
      %s37 = sphi 0, %s36
      %s53 = sphi 0, %s37
      %s59 = sphi 0, %s61
      %s62 = sphi 0, %s59
      %s63 = sphi 0, %s62
      %s79 = sphi 0, %s63
      %s85 = sphi 0, %s87
      %s88 = sphi 0, %s85
      %s89 = sphi 0, %s88
      %s105 = sphi 0, %s89
      %s113 = sphi 0, %s115
      %s116 = sphi 0, %s113
      %s117 = sphi 0, %s116
      %s133 = sphi 0, %s117
      %s141 = sphi 0, %s143
      %s144 = sphi 0, %s141
      %s145 = sphi 0, %s144
      %s161 = sphi 0, %s145
    $region4: #{model_forward.15} parent=1 // loop_header_branch
      %14 = sbr.rel (%p12) target = $region8
    $region5: #{model_forward.15} parent=1 // loop_body
      %s16 = ssub.s32 %s11, 1
      %s17 = ssub.s32 %s11, 2
      %s24 = sadd.s32 1, %s19
      %p25 = scmp.ge.s32.totalorder %s24, 1
      %s26 = scalar_select %p25, 0, %s24
      %s27 = sadd.s32 1, %s18
      %s28 = scalar_select %p25, %s27, %s18
      %p29 = scmp.ge.s32.totalorder %s28, 2
      %s30 = scalar_select %p29, 0, %s28
      %s31 = ssub.s32 %s18, %s30
      %p32 = scmp.eq.s32.totalorder %s31, 0
      %s34 = sadd.s32 %s33, 1
      %s35 = scalar_select %p32, %s33, %s34
      %p38 = pneg %p32
      %p39 = scmp.eq.s32.totalorder %s11, 1
      %p40 = por %p38, %p39
      %p41 = scmp.ne.s32.totalorder %s33, %s36
      %p42 = scmp.eq.s32.totalorder %s11, 0
      %p43 = por %p41, %p42
      %p44 = scmp.ne.s32.totalorder %s33, %s36
      %p45 = scmp.eq.s32.totalorder %s16, 1
      %p46 = por %p44, %p45
      %p47 = scmp.ne.s32.totalorder %s36, %s37
      %p48 = scmp.eq.s32.totalorder %s16, 0
      %p49 = por %p47, %p48
      %p50 = scmp.ne.s32.totalorder %s36, %s37
      %p51 = scmp.eq.s32.totalorder %s17, 1
      %p52 = por %p50, %p51
      %p54 = scmp.ne.s32.totalorder %s37, %s53
      %p55 = scmp.eq.s32.totalorder %s17, 0
      %p56 = por %p54, %p55
      %s57 = ssub.s32 %s19, %s26
      %p58 = scmp.eq.s32.totalorder %s57, 0
      %s60 = sadd.s32 %s59, 1
      %s61 = scalar_select %p58, %s59, %s60
      %p64 = pneg %p58
      %p65 = scmp.eq.s32.totalorder %s11, 1
      %p66 = por %p64, %p65
      %p67 = scmp.ne.s32.totalorder %s59, %s62
      %p68 = scmp.eq.s32.totalorder %s11, 0
      %p69 = por %p67, %p68
      %p70 = scmp.ne.s32.totalorder %s59, %s62
      %p71 = scmp.eq.s32.totalorder %s16, 1
      %p72 = por %p70, %p71
      %p73 = scmp.ne.s32.totalorder %s62, %s63
      %p74 = scmp.eq.s32.totalorder %s16, 0
      %p75 = por %p73, %p74
      %p76 = scmp.ne.s32.totalorder %s62, %s63
      %p77 = scmp.eq.s32.totalorder %s17, 1
      %p78 = por %p76, %p77
      %p80 = scmp.ne.s32.totalorder %s63, %s79
      %p81 = scmp.eq.s32.totalorder %s17, 0
      %p82 = por %p80, %p81
      %s83 = ssub.s32 %s19, %s26
      %p84 = scmp.eq.s32.totalorder %s83, 0
      %s86 = sadd.s32 %s85, 1
      %s87 = scalar_select %p84, %s85, %s86
      %p90 = pneg %p84
      %p91 = scmp.eq.s32.totalorder %s11, 1
      %p92 = por %p90, %p91
      %p93 = scmp.ne.s32.totalorder %s85, %s88
      %p94 = scmp.eq.s32.totalorder %s11, 0
      %p95 = por %p93, %p94
      %p96 = scmp.ne.s32.totalorder %s85, %s88
      %p97 = scmp.eq.s32.totalorder %s16, 1
      %p98 = por %p96, %p97
      %p99 = scmp.ne.s32.totalorder %s88, %s89
      %p100 = scmp.eq.s32.totalorder %s16, 0
      %p101 = por %p99, %p100
      %p102 = scmp.ne.s32.totalorder %s88, %s89
      %p103 = scmp.eq.s32.totalorder %s17, 1
      %p104 = por %p102, %p103
      %p106 = scmp.ne.s32.totalorder %s89, %s105
      %p107 = scmp.eq.s32.totalorder %s17, 0
      %p108 = por %p106, %p107
      %s109 = ssub.s32 %s18, %s30
      %s110 = ssub.s32 %s19, %s26
      %s111 = sor.u32 %s109, %s110
      %p112 = scmp.eq.s32.totalorder %s111, 0
      %s114 = sadd.s32 %s113, 1
      %s115 = scalar_select %p112, %s113, %s114
      %p118 = pneg %p112
      %p119 = scmp.eq.s32.totalorder %s11, 1
      %p120 = por %p118, %p119
      %p121 = scmp.ne.s32.totalorder %s113, %s116
      %p122 = scmp.eq.s32.totalorder %s11, 0
      %p123 = por %p121, %p122
      %p124 = scmp.ne.s32.totalorder %s113, %s116
      %p125 = scmp.eq.s32.totalorder %s16, 1
      %p126 = por %p124, %p125
      %p127 = scmp.ne.s32.totalorder %s116, %s117
      %p128 = scmp.eq.s32.totalorder %s16, 0
      %p129 = por %p127, %p128
      %p130 = scmp.ne.s32.totalorder %s116, %s117
      %p131 = scmp.eq.s32.totalorder %s17, 1
      %p132 = por %p130, %p131
      %p134 = scmp.ne.s32.totalorder %s117, %s133
      %p135 = scmp.eq.s32.totalorder %s17, 0
      %p136 = por %p134, %p135
      %s137 = ssub.s32 %s18, %s30
      %s138 = ssub.s32 %s19, %s26
      %s139 = sor.u32 %s137, %s138
      %p140 = scmp.eq.s32.totalorder %s139, 0
      %s142 = sadd.s32 %s141, 1
      %s143 = scalar_select %p140, %s141, %s142
      %p146 = pneg %p140
      %p147 = scmp.eq.s32.totalorder %s11, 1
      %p148 = por %p146, %p147
      %p149 = scmp.ne.s32.totalorder %s141, %s144
      %p150 = scmp.eq.s32.totalorder %s11, 0
      %p151 = por %p149, %p150
      %p152 = scmp.ne.s32.totalorder %s141, %s144
      %p153 = scmp.eq.s32.totalorder %s16, 1
      %p154 = por %p152, %p153
      %p155 = scmp.ne.s32.totalorder %s144, %s145
      %p156 = scmp.eq.s32.totalorder %s16, 0
      %p157 = por %p155, %p156
      %p158 = scmp.ne.s32.totalorder %s144, %s145
      %p159 = scmp.eq.s32.totalorder %s17, 1
      %p160 = por %p158, %p159
      %p162 = scmp.ne.s32.totalorder %s145, %s161
      %p163 = scmp.eq.s32.totalorder %s17, 0
      %p164 = por %p162, %p163
      %p165 = scmp.le.s32.totalorder 1, %s11
      %p166 = scmp.lt.s32.totalorder %s11, 3
      %p167 = pnand %p165, %p166
      %p168 = pneg %p167
      // Predicated region
      $region9: #{model_forward.15} parent=5 // pred_check
        _
      $region10: #{model_forward.15} parent=5 // pred_check_branch
        %170 = sbr.rel (%p167) target = $region12
      $region11: #{model_forward.15} parent=5 // pred_region
        %s171 = ssub.s32 %s11, 1
        // Predicated region
        $region13: #{model_forward.15} parent=11 // pred_check
          %p172 = pneg %p75
        $region14: #{model_forward.15} parent=11 // pred_check_branch
          %174 = sbr.rel (%p172) target = $region16
        $region15: #{model_forward.15} parent=11 // pred_region
          %176 = vsyncadd [#allocation3], 0
          %s177 = smul.addr %s21, 4
          %s178 = scalar_lea.hbm %s1, %s177
          %s179 = sshll.u32 %s178, 4
          %s180 = int_to_ptr.hbm [resolvable:$true] %s179
          %s181 = sshll.u32 [#allocation2], 4
          %s182 = int_to_ptr.vmem [resolvable:$true] %s181
          %187 = dma.hbm_to_vmem [thread:$0]  %s180, 4096, %s182, [#allocation3], 64, 64, 4
        $region16: #{model_forward.15} parent=11 // pred_fallthru
          _
        // Predicated region
        $region17: #{model_forward.15} parent=11 // pred_check
          %p188 = pneg %p101
        $region18: #{model_forward.15} parent=11 // pred_check_branch
          %190 = sbr.rel (%p188) target = $region20
        $region19: #{model_forward.15} parent=11 // pred_region
          %p191 = scmp.lt.s32.totalorder %s21, 0
          %s192 = scalar_select %p191, %s21, 0
          %s193 = scalar_lea.vmem %s2, %s192
        $region20: #{model_forward.15} parent=11 // pred_fallthru
          _
      $region12: #{model_forward.15} parent=5 // pred_fallthru
        _
      %p194 = scmp.lt.s32.totalorder %s11, 2
      // Predicated region
      $region21: #{model_forward.15} parent=5 // pred_check
        %p195 = pneg %p194
      $region22: #{model_forward.15} parent=5 // pred_check_branch
        %197 = sbr.rel (%p195) target = $region24
      $region23: #{model_forward.15} parent=5 // pred_region
        // Predicated region
        $region25: #{model_forward.15} parent=23 // pred_check
          %p198 = pneg %p43
        $region26: #{model_forward.15} parent=23 // pred_check_branch
          %200 = sbr.rel (%p198) target = $region28
        $region27: #{model_forward.15} parent=23 // pred_region
          %p201 = scmp.lt.s32.totalorder %s18, 1
          %s202 = scalar_select %p201, %s18, 1
          %s203 = smul.addr %s202, 4
          %s204 = smul.addr %s203, 4
          %s205 = scalar_lea.vmem %s0, %s204
        $region28: #{model_forward.15} parent=23 // pred_fallthru
          _
        // Predicated region
        $region29: #{model_forward.15} parent=23 // pred_check
          %p206 = pneg %p123
        $region30: #{model_forward.15} parent=23 // pred_check_branch
          %208 = sbr.rel (%p206) target = $region32
        $region31: #{model_forward.15} parent=23 // pred_region
          %p209 = scmp.lt.s32.totalorder %s18, 1
          %s210 = scalar_select %p209, %s18, 1
          %p211 = scmp.lt.s32.totalorder %s19, 0
          %s212 = scalar_select %p211, %s19, 0
          %s213 = sadd.s32 %s212, %s210
          %s214 = smul.addr %s213, 4
          %s215 = scalar_lea.vmem %s3, %s214
        $region32: #{model_forward.15} parent=23 // pred_fallthru
          _
      $region24: #{model_forward.15} parent=5 // pred_fallthru
        _
      %p216 = scmp.le.s32.totalorder 1, %s11
      %p217 = scmp.lt.s32.totalorder %s11, 3
      %p218 = pnand %p216, %p217
      %p219 = pneg %p218
      // Predicated region
      $region33: #{model_forward.15} parent=5 // pred_check
        _
      $region34: #{model_forward.15} parent=5 // pred_check_branch
        %221 = sbr.rel (%p218) target = $region36
      $region35: #{model_forward.15} parent=5 // pred_region
        %s222 = ssub.s32 %s11, 1
        // Predicated region
        $region37: #{model_forward.15} parent=35 // pred_check
          %p223 = pneg %p75
        $region38: #{model_forward.15} parent=35 // pred_check_branch
          %225 = sbr.rel (%p223) target = $region40
        $region39: #{model_forward.15} parent=35 // pred_region
          %227 = dma.done [#allocation3], 4096
        $region40: #{model_forward.15} parent=35 // pred_fallthru
          _
        %p228 = scmp.lt.s32.totalorder %s20, 1
        %s229 = scalar_select %p228, %s20, 1
        %s230 = smul.addr %s229, 4
        %s231 = smul.addr %s230, 4
        %s232 = scalar_lea.vmem %s0, %s231
        %p233 = pneg %p49
        %p234 = pneg %p46
        %p235 = pneg %p75
        %p236 = pneg %p72
        %p237 = scmp.lt.s32.totalorder %s21, 0
        %s238 = scalar_select %p237, %s21, 0
        %s239 = scalar_lea.vmem %s2, %s238
        %p240 = pneg %p101
        %p241 = pneg %p98
        %p242 = scmp.lt.s32.totalorder %s20, 1
        %s243 = scalar_select %p242, %s20, 1
        %p244 = scmp.lt.s32.totalorder %s21, 0
        %s245 = scalar_select %p244, %s21, 0
        %s246 = sadd.s32 %s245, %s243
        %s247 = smul.addr %s246, 4
        %s248 = scalar_lea.vmem %s3, %s247
        %p249 = pneg %p129
        %p250 = pneg %p126
        %p251 = pneg %p157
        %p252 = pneg %p154
        %p253 = scmp.lt.s32.totalorder %s20, 1
        %s254 = scalar_select %p253, %s20, 1
        %p255 = scmp.lt.s32.totalorder %s21, 0
        %s256 = scalar_select %p255, %s21, 0
        %s257 = sadd.s32 %s256, %s254
        %s258 = smul.addr %s257, 4
        %s259 = scalar_lea.vmem %s4, %s258
        %p260 = scmp.lt.s32.totalorder %s20, 1
        %s261 = scalar_select %p260, %s20, 1
        %s262 = smul.addr %s261, 4
        %s263 = smul.addr %s262, 4
        %s264 = scalar_lea.vmem %s0, %s263
        %p265 = scmp.lt.s32.totalorder %s21, 0
        %s266 = scalar_select %p265, %s21, 0
        %s267 = scalar_lea.vmem %s2, %s266
        %p268 = scmp.lt.s32.totalorder %s20, 1
        %s269 = scalar_select %p268, %s20, 1
        %p270 = scmp.lt.s32.totalorder %s21, 0
        %s271 = scalar_select %p270, %s21, 0
        %s272 = sadd.s32 %s271, %s269
        %s273 = smul.addr %s272, 4
        %s274 = scalar_lea.vmem %s3, %s273
        %p275 = scmp.lt.s32.totalorder %s20, 1
        %s276 = scalar_select %p275, %s20, 1
        %p277 = scmp.lt.s32.totalorder %s21, 0
        %s278 = scalar_select %p277, %s21, 0
        %s279 = sadd.s32 %s278, %s276
        %s280 = smul.addr %s279, 4
        %s281 = scalar_lea.vmem %s4, %s280
        %v282 = vld [vmem:[%s264] sm:$0xff]
        %v283 = vld [vmem:[%s264 + $0x8] sm:$0xff]
        %v284 = vld [vmem:[#allocation2] sm:$0xf]
        %v285 = vld [vmem:[#allocation2 + $0x4] sm:$0xf]
        %v286 = vld [vmem:[#allocation2 + $0x8] sm:$0xf]
        %v287 = vld [vmem:[#allocation2 + $0xc] sm:$0xf]
        %v288 = vld [vmem:[#allocation2 + $0x10] sm:$0xf]
        %v289 = vld [vmem:[#allocation2 + $0x14] sm:$0xf]
        %v290 = vld [vmem:[#allocation2 + $0x18] sm:$0xf]
        %v291 = vld [vmem:[#allocation2 + $0x1c] sm:$0xf]
        %v292 = vld [vmem:[#allocation2 + $0x20] sm:$0xf]
        %v293 = vld [vmem:[#allocation2 + $0x24] sm:$0xf]
        %v294 = vld [vmem:[#allocation2 + $0x28] sm:$0xf]
        %v295 = vld [vmem:[#allocation2 + $0x2c] sm:$0xf]
        %v296 = vld [vmem:[#allocation2 + $0x30] sm:$0xf]
        %v297 = vld [vmem:[#allocation2 + $0x34] sm:$0xf]
        %v298 = vld [vmem:[#allocation2 + $0x38] sm:$0xf]
        %v299 = vld [vmem:[#allocation2 + $0x3c] sm:$0xf]
        %v300 = vld [vmem:[#allocation2 + $0x40] sm:$0xf]
        %v301 = vld [vmem:[#allocation2 + $0x44] sm:$0xf]
        %v302 = vld [vmem:[#allocation2 + $0x48] sm:$0xf]
        %v303 = vld [vmem:[#allocation2 + $0x4c] sm:$0xf]
        %v304 = vld [vmem:[#allocation2 + $0x50] sm:$0xf]
        %v305 = vld [vmem:[#allocation2 + $0x54] sm:$0xf]
        %v306 = vld [vmem:[#allocation2 + $0x58] sm:$0xf]
        %v307 = vld [vmem:[#allocation2 + $0x5c] sm:$0xf]
        %v308 = vld [vmem:[#allocation2 + $0x60] sm:$0xf]
        %v309 = vld [vmem:[#allocation2 + $0x64] sm:$0xf]
        %v310 = vld [vmem:[#allocation2 + $0x68] sm:$0xf]
        %v311 = vld [vmem:[#allocation2 + $0x6c] sm:$0xf]
        %v312 = vld [vmem:[#allocation2 + $0x70] sm:$0xf]
        %v313 = vld [vmem:[#allocation2 + $0x74] sm:$0xf]
        %v314 = vld [vmem:[#allocation2 + $0x78] sm:$0xf]
        %v315 = vld [vmem:[#allocation2 + $0x7c] sm:$0xf]
        %v316 = vld [vmem:[#allocation2 + $0x80] sm:$0xf]
        %v317 = vld [vmem:[#allocation2 + $0x84] sm:$0xf]
        %v318 = vld [vmem:[#allocation2 + $0x88] sm:$0xf]
        %v319 = vld [vmem:[#allocation2 + $0x8c] sm:$0xf]
        %v320 = vld [vmem:[#allocation2 + $0x90] sm:$0xf]
        %v321 = vld [vmem:[#allocation2 + $0x94] sm:$0xf]
        %v322 = vld [vmem:[#allocation2 + $0x98] sm:$0xf]
        %v323 = vld [vmem:[#allocation2 + $0x9c] sm:$0xf]
        %v324 = vld [vmem:[#allocation2 + $0xa0] sm:$0xf]
        %v325 = vld [vmem:[#allocation2 + $0xa4] sm:$0xf]
        %v326 = vld [vmem:[#allocation2 + $0xa8] sm:$0xf]
        %v327 = vld [vmem:[#allocation2 + $0xac] sm:$0xf]
        %v328 = vld [vmem:[#allocation2 + $0xb0] sm:$0xf]
        %v329 = vld [vmem:[#allocation2 + $0xb4] sm:$0xf]
        %v330 = vld [vmem:[#allocation2 + $0xb8] sm:$0xf]
        %v331 = vld [vmem:[#allocation2 + $0xbc] sm:$0xf]
        %v332 = vld [vmem:[#allocation2 + $0xc0] sm:$0xf]
        %v333 = vld [vmem:[#allocation2 + $0xc4] sm:$0xf]
        %v334 = vld [vmem:[#allocation2 + $0xc8] sm:$0xf]
        %v335 = vld [vmem:[#allocation2 + $0xcc] sm:$0xf]
        %v336 = vld [vmem:[#allocation2 + $0xd0] sm:$0xf]
        %v337 = vld [vmem:[#allocation2 + $0xd4] sm:$0xf]
        %v338 = vld [vmem:[#allocation2 + $0xd8] sm:$0xf]
        %v339 = vld [vmem:[#allocation2 + $0xdc] sm:$0xf]
        %v340 = vld [vmem:[#allocation2 + $0xe0] sm:$0xf]
        %v341 = vld [vmem:[#allocation2 + $0xe4] sm:$0xf]
        %v342 = vld [vmem:[#allocation2 + $0xe8] sm:$0xf]
        %v343 = vld [vmem:[#allocation2 + $0xec] sm:$0xf]
        %v344 = vld [vmem:[#allocation2 + $0xf0] sm:$0xf]
        %v345 = vld [vmem:[#allocation2 + $0xf4] sm:$0xf]
        %v346 = vld [vmem:[#allocation2 + $0xf8] sm:$0xf]
        %v347 = vld [vmem:[#allocation2 + $0xfc] sm:$0xf]
        %v348 = vld [vmem:[%s267] sm:$0x1]
        %v350 = vperm.slane %v348, 0
        %v354 = vunpack.c.l.b16 %v282
        %v355 = vunpack.c.h.b16 %v282
        %v356 = vunpack.c.l.b16 %v283
        %v357 = vunpack.c.h.b16 %v283
        %v358 = vpack.c.b16 %v354, %v354
        %v359 = vpack.c.b16 %v355, %v355
        %v360 = vpack.c.b16 %v356, %v356
        %v361 = vpack.c.b16 %v357, %v357
        %v430 = vunpack.c.l.b16 %v284
        %v431 = vunpack.c.l.b16 %v285
        %v432 = vunpack.c.l.b16 %v286
        %v433 = vunpack.c.l.b16 %v287
        %v434 = vunpack.c.l.b16 %v288
        %v435 = vunpack.c.l.b16 %v289
        %v436 = vunpack.c.l.b16 %v290
        %v437 = vunpack.c.l.b16 %v291
        %v438 = vunpack.c.l.b16 %v292
        %v439 = vunpack.c.l.b16 %v293
        %v440 = vunpack.c.l.b16 %v294
        %v441 = vunpack.c.l.b16 %v295
        %v442 = vunpack.c.l.b16 %v296
        %v443 = vunpack.c.l.b16 %v297
        %v444 = vunpack.c.l.b16 %v298
        %v445 = vunpack.c.l.b16 %v299
        %v446 = vunpack.c.l.b16 %v300
        %v447 = vunpack.c.l.b16 %v301
        %v448 = vunpack.c.l.b16 %v302
        %v449 = vunpack.c.l.b16 %v303
        %v450 = vunpack.c.l.b16 %v304
        %v451 = vunpack.c.l.b16 %v305
        %v452 = vunpack.c.l.b16 %v306
        %v453 = vunpack.c.l.b16 %v307
        %v454 = vunpack.c.l.b16 %v308
        %v455 = vunpack.c.l.b16 %v309
        %v456 = vunpack.c.l.b16 %v310
        %v457 = vunpack.c.l.b16 %v311
        %v458 = vunpack.c.l.b16 %v312
        %v459 = vunpack.c.l.b16 %v313
        %v460 = vunpack.c.l.b16 %v314
        %v461 = vunpack.c.l.b16 %v315
        %v462 = vunpack.c.l.b16 %v316
        %v463 = vunpack.c.l.b16 %v317
        %v464 = vunpack.c.l.b16 %v318
        %v465 = vunpack.c.l.b16 %v319
        %v466 = vunpack.c.l.b16 %v320
        %v467 = vunpack.c.l.b16 %v321
        %v468 = vunpack.c.l.b16 %v322
        %v469 = vunpack.c.l.b16 %v323
        %v470 = vunpack.c.l.b16 %v324
        %v471 = vunpack.c.l.b16 %v325
        %v472 = vunpack.c.l.b16 %v326
        %v473 = vunpack.c.l.b16 %v327
        %v474 = vunpack.c.l.b16 %v328
        %v475 = vunpack.c.l.b16 %v329
        %v476 = vunpack.c.l.b16 %v330
        %v477 = vunpack.c.l.b16 %v331
        %v478 = vunpack.c.l.b16 %v332
        %v479 = vunpack.c.l.b16 %v333
        %v480 = vunpack.c.l.b16 %v334
        %v481 = vunpack.c.l.b16 %v335
        %v482 = vunpack.c.l.b16 %v336
        %v483 = vunpack.c.l.b16 %v337
        %v484 = vunpack.c.l.b16 %v338
        %v485 = vunpack.c.l.b16 %v339
        %v486 = vunpack.c.l.b16 %v340
        %v487 = vunpack.c.l.b16 %v341
        %v488 = vunpack.c.l.b16 %v342
        %v489 = vunpack.c.l.b16 %v343
        %v490 = vunpack.c.l.b16 %v344
        %v491 = vunpack.c.l.b16 %v345
        %v492 = vunpack.c.l.b16 %v346
        %v493 = vunpack.c.l.b16 %v347
        %v494 = vpack.c.b16 %v431, %v430
        %v495 = vpack.c.b16 %v433, %v432
        %v496 = vpack.c.b16 %v435, %v434
        %v497 = vpack.c.b16 %v437, %v436
        %v498 = vpack.c.b16 %v439, %v438
        %v499 = vpack.c.b16 %v441, %v440
        %v500 = vpack.c.b16 %v443, %v442
        %v501 = vpack.c.b16 %v445, %v444
        %v502 = vpack.c.b16 %v447, %v446
        %v503 = vpack.c.b16 %v449, %v448
        %v504 = vpack.c.b16 %v451, %v450
        %v505 = vpack.c.b16 %v453, %v452
        %v506 = vpack.c.b16 %v455, %v454
        %v507 = vpack.c.b16 %v457, %v456
        %v508 = vpack.c.b16 %v459, %v458
        %v509 = vpack.c.b16 %v461, %v460
        %v510 = vpack.c.b16 %v463, %v462
        %v511 = vpack.c.b16 %v465, %v464
        %v512 = vpack.c.b16 %v467, %v466
        %v513 = vpack.c.b16 %v469, %v468
        %v514 = vpack.c.b16 %v471, %v470
        %v515 = vpack.c.b16 %v473, %v472
        %v516 = vpack.c.b16 %v475, %v474
        %v517 = vpack.c.b16 %v477, %v476
        %v518 = vpack.c.b16 %v479, %v478
        %v519 = vpack.c.b16 %v481, %v480
        %v520 = vpack.c.b16 %v483, %v482
        %v521 = vpack.c.b16 %v485, %v484
        %v522 = vpack.c.b16 %v487, %v486
        %v523 = vpack.c.b16 %v489, %v488
        %v524 = vpack.c.b16 %v491, %v490
        %v525 = vpack.c.b16 %v493, %v492
        %558 = vmatpush.bf16.msra.mxu0 %v501
        %559 = vmatpush.bf16.msra.mxu0 %v500
        %560 = vmatpush.bf16.msra.mxu0 %v499
        %561 = vmatpush.bf16.msra.mxu0 %v498
        %562 = vmatpush.bf16.msra.mxu0 %v497
        %563 = vmatpush.bf16.msra.mxu0 %v496
        %564 = vmatpush.bf16.msra.mxu0 %v495
        %565 = vmatpush.bf16.msra.mxu0 %v494
        %566 = vmatmul.bf16.gmra.mxu0 %v358
        %v567 = vpop.f32.mrf.mxu0
        %v568 = vadd.f32 %v350, %v567
        %v569 = vpop.f32.mrf.mxu0
        %570 = vdwg.mxu0
        %571 = vmatpush.bf16.msra.mxu0 %v509
        %572 = vmatpush.bf16.msra.mxu0 %v508
        %573 = vmatpush.bf16.msra.mxu0 %v507
        %574 = vmatpush.bf16.msra.mxu0 %v506
        %575 = vmatpush.bf16.msra.mxu0 %v505
        %576 = vmatpush.bf16.msra.mxu0 %v504
        %577 = vmatpush.bf16.msra.mxu0 %v503
        %578 = vmatpush.bf16.msra.mxu0 %v502
        %579 = vmatmul.bf16.gmra.mxu0 %v359
        %v580 = vpop.f32.mrf.mxu0
        %v581 = vadd.f32 %v568, %v580
        %v582 = vpop.f32.mrf.mxu0
        %583 = vdwg.mxu0
        %584 = vmatpush.bf16.msra.mxu0 %v517
        %585 = vmatpush.bf16.msra.mxu0 %v516
        %586 = vmatpush.bf16.msra.mxu0 %v515
        %587 = vmatpush.bf16.msra.mxu0 %v514
        %588 = vmatpush.bf16.msra.mxu0 %v513
        %589 = vmatpush.bf16.msra.mxu0 %v512
        %590 = vmatpush.bf16.msra.mxu0 %v511
        %591 = vmatpush.bf16.msra.mxu0 %v510
        %592 = vmatmul.bf16.gmra.mxu0 %v360
        %v593 = vpop.f32.mrf.mxu0
        %v594 = vadd.f32 %v581, %v593
        %v595 = vpop.f32.mrf.mxu0
        %596 = vdwg.mxu0
        %597 = vmatpush.bf16.msra.mxu0 %v525
        %598 = vmatpush.bf16.msra.mxu0 %v524
        %599 = vmatpush.bf16.msra.mxu0 %v523
        %600 = vmatpush.bf16.msra.mxu0 %v522
        %601 = vmatpush.bf16.msra.mxu0 %v521
        %602 = vmatpush.bf16.msra.mxu0 %v520
        %603 = vmatpush.bf16.msra.mxu0 %v519
        %604 = vmatpush.bf16.msra.mxu0 %v518
        %605 = vmatmul.bf16.gmra.mxu0 %v361
        %v606 = vpop.f32.mrf.mxu0
        %v607 = vadd.f32 %v594, %v606
        %v608 = vpop.f32.mrf.mxu0
        %609 = vdwg.mxu0
        %v610 = vld [vmem:[%s274] sm:$0xf]
        %v611 = vunpack.c.l.bf16 %v610
        %v612 = vadd.f32 %v607, %v611
        %v613 = vpack.c.bf16 %v612, %v612
        %614 = vst [vmem:[%s281] sm:$0xf] %v613
        %p615 = scmp.lt.s32.totalorder %s20, 1
        %s616 = scalar_select %p615, %s20, 1
        %p617 = scmp.lt.s32.totalorder %s21, 0
        %s618 = scalar_select %p617, %s21, 0
        %s619 = sadd.s32 %s618, %s616
        %s620 = smul.addr %s619, 4
        %s621 = scalar_lea.vmem %s4, %s620
        // Predicated region
        $region41: #{model_forward.15} parent=35 // pred_check
          %p622 = pneg %p154
        $region42: #{model_forward.15} parent=35 // pred_check_branch
          %624 = sbr.rel (%p622) target = $region44
        $region43: #{model_forward.15} parent=35 // pred_region
          _
        $region44: #{model_forward.15} parent=35 // pred_fallthru
          _
      $region36: #{model_forward.15} parent=5 // pred_fallthru
        _
      %p625 = scmp.le.s32.totalorder 2, %s11
      // Predicated region
      $region45: #{model_forward.15} parent=5 // pred_check
        %p626 = pneg %p625
      $region46: #{model_forward.15} parent=5 // pred_check_branch
        %628 = sbr.rel (%p626) target = $region48
      $region47: #{model_forward.15} parent=5 // pred_region
        %s629 = ssub.s32 %s11, 2
        // Predicated region
        $region49: #{model_forward.15} parent=47 // pred_check
          %p630 = pneg %p160
        $region50: #{model_forward.15} parent=47 // pred_check_branch
          %632 = sbr.rel (%p630) target = $region52
        $region51: #{model_forward.15} parent=47 // pred_region
          %p633 = scmp.lt.s32.totalorder %s22, 1
          %s634 = scalar_select %p633, %s22, 1
          %p635 = scmp.lt.s32.totalorder %s23, 0
          %s636 = scalar_select %p635, %s23, 0
          %s637 = sadd.s32 %s636, %s634
          %s638 = smul.addr %s637, 4
          %s639 = scalar_lea.vmem %s4, %s638
        $region52: #{model_forward.15} parent=47 // pred_fallthru
          _
      $region48: #{model_forward.15} parent=5 // pred_fallthru
        _
    $region6: #{model_forward.15} parent=1 // loop_footer
      %s15 = sadd.s32 1, %s11
    $region7: #{model_forward.15} parent=1 // loop_footer_branch
      %10 = sbr.rel target = $region3
    $region8: #{model_forward.15} parent=1 // loop_exit
      _
    %640 = vsyncpa [#allocation3], 1
    %s641 = scalar_lea.sflag [#allocation3], 1
    %642 = vsyncpa %s641, 1

// kernel: model_forward.16
$region0: #{model_forward.16}
  #allocation0 [shape = 'u32[]', space=smem, size = 0x4, offset = 0x4, fixed_abs, tag = 'smem constant byte address 0x4 - core index']
  #allocation1 [shape = 'u32[72,128]{1,0:T(1,128)}', space=vmem, size = 0x9000, scoped, tag = 'internal scratch']
  #allocation2 [shape = 'bf16[8,128]{1,0:T(8,128)(2,1)}', space=vmem, size = 0x800, scoped, tag = 'scratch operand']
  %s0 = inlined_call_operand.vmem [shape: bf16[16,128], index: 0, kind: input, shape index: {}]
  %s1 = inlined_call_operand.vmem [shape: f32[1,128], index: 1, kind: input, shape index: {}]
  %s2 = inlined_call_operand.vmem [shape: f32[1,128], index: 2, kind: input, shape index: {}]
  %s3 = inlined_call_operand.vmem [shape: bf16[128,384], index: 3, kind: input, shape index: {}]
  %s4 = inlined_call_operand.vmem [shape: f32[1,384], index: 4, kind: input, shape index: {}]
  %s5 = inlined_call_operand.vmem [shape: bf16[16,384], index: 5, kind: output, shape index: {}]
  %s6 = sld [smem:[#allocation0]]
  $region57: #{model_forward.16} parent=0
    _
  %s8 = ssub.s32 1, %s6
  %s9 = scalar_select 0, %s8, %s6
  loop: start=0, step=1, limit=4
  $region2: #{model_forward.16} parent=0 // loop_pre_header
    _
  $region3: #{model_forward.16} parent=0 // loop_header
    %s11 = sphi 0, %s15
    %p12 = scmp.ge.s32.totalorder %s11, 4
    %s18 = sphi 0, %s30
    %s19 = sphi 0, %s26
    %s20 = sphi 0, %s18
    %s21 = sphi 0, %s19
    %s22 = sphi 0, %s20
    %s23 = sphi 0, %s21
    %s33 = sphi 0, %s35
    %s36 = sphi 0, %s33
    %s37 = sphi 0, %s36
    %s53 = sphi 0, %s37
    %s57 = sphi 0, %s57
    %s59 = sphi 0, %s57
    %s60 = sphi 0, %s59
    %s74 = sphi 0, %s60
    %s78 = sphi 0, %s78
    %s80 = sphi 0, %s78
    %s81 = sphi 0, %s80
    %s95 = sphi 0, %s81
    %s101 = sphi 0, %s103
    %s104 = sphi 0, %s101
    %s105 = sphi 0, %s104
    %s121 = sphi 0, %s105
    %s127 = sphi 0, %s129
    %s130 = sphi 0, %s127
    %s131 = sphi 0, %s130
    %s147 = sphi 0, %s131
    %s155 = sphi 0, %s157
    %s158 = sphi 0, %s155
    %s159 = sphi 0, %s158
    %s175 = sphi 0, %s159
  $region4: #{model_forward.16} parent=0 // loop_header_branch
    %14 = sbr.rel (%p12) target = $region8
  $region5: #{model_forward.16} parent=0 // loop_body
    %s16 = ssub.s32 %s11, 1
    %s17 = ssub.s32 %s11, 2
    %s24 = sadd.s32 1, %s19
    %p25 = scmp.ge.s32.totalorder %s24, 1
    %s26 = scalar_select %p25, 0, %s24
    %s27 = sadd.s32 1, %s18
    %s28 = scalar_select %p25, %s27, %s18
    %p29 = scmp.ge.s32.totalorder %s28, 2
    %s30 = scalar_select %p29, 0, %s28
    %s31 = ssub.s32 %s18, %s30
    %p32 = scmp.eq.s32.totalorder %s31, 0
    %s34 = sadd.s32 %s33, 1
    %s35 = scalar_select %p32, %s33, %s34
    %p38 = pneg %p32
    %p39 = scmp.eq.s32.totalorder %s11, 1
    %p40 = por %p38, %p39
    %p41 = scmp.ne.s32.totalorder %s33, %s36
    %p42 = scmp.eq.s32.totalorder %s11, 0
    %p43 = por %p41, %p42
    %p44 = scmp.ne.s32.totalorder %s33, %s36
    %p45 = scmp.eq.s32.totalorder %s16, 1
    %p46 = por %p44, %p45
    %p47 = scmp.ne.s32.totalorder %s36, %s37
    %p48 = scmp.eq.s32.totalorder %s16, 0
    %p49 = por %p47, %p48
    %p50 = scmp.ne.s32.totalorder %s36, %s37
    %p51 = scmp.eq.s32.totalorder %s17, 1
    %p52 = por %p50, %p51
    %p54 = scmp.ne.s32.totalorder %s37, %s53
    %p55 = scmp.eq.s32.totalorder %s17, 0
    %p56 = por %p54, %p55
    %s58 = sadd.s32 %s57, 1
    %p61 = scmp.eq.s32.totalorder %s11, 1
    %p62 = scmp.ne.s32.totalorder %s57, %s59
    %p63 = scmp.eq.s32.totalorder %s11, 0
    %p64 = por %p62, %p63
    %p65 = scmp.ne.s32.totalorder %s57, %s59
    %p66 = scmp.eq.s32.totalorder %s16, 1
    %p67 = por %p65, %p66
    %p68 = scmp.ne.s32.totalorder %s59, %s60
    %p69 = scmp.eq.s32.totalorder %s16, 0
    %p70 = por %p68, %p69
    %p71 = scmp.ne.s32.totalorder %s59, %s60
    %p72 = scmp.eq.s32.totalorder %s17, 1
    %p73 = por %p71, %p72
    %p75 = scmp.ne.s32.totalorder %s60, %s74
    %p76 = scmp.eq.s32.totalorder %s17, 0
    %p77 = por %p75, %p76
    %s79 = sadd.s32 %s78, 1
    %p82 = scmp.eq.s32.totalorder %s11, 1
    %p83 = scmp.ne.s32.totalorder %s78, %s80
    %p84 = scmp.eq.s32.totalorder %s11, 0
    %p85 = por %p83, %p84
    %p86 = scmp.ne.s32.totalorder %s78, %s80
    %p87 = scmp.eq.s32.totalorder %s16, 1
    %p88 = por %p86, %p87
    %p89 = scmp.ne.s32.totalorder %s80, %s81
    %p90 = scmp.eq.s32.totalorder %s16, 0
    %p91 = por %p89, %p90
    %p92 = scmp.ne.s32.totalorder %s80, %s81
    %p93 = scmp.eq.s32.totalorder %s17, 1
    %p94 = por %p92, %p93
    %p96 = scmp.ne.s32.totalorder %s81, %s95
    %p97 = scmp.eq.s32.totalorder %s17, 0
    %p98 = por %p96, %p97
    %s99 = ssub.s32 %s19, %s26
    %p100 = scmp.eq.s32.totalorder %s99, 0
    %s102 = sadd.s32 %s101, 1
    %s103 = scalar_select %p100, %s101, %s102
    %p106 = pneg %p100
    %p107 = scmp.eq.s32.totalorder %s11, 1
    %p108 = por %p106, %p107
    %p109 = scmp.ne.s32.totalorder %s101, %s104
    %p110 = scmp.eq.s32.totalorder %s11, 0
    %p111 = por %p109, %p110
    %p112 = scmp.ne.s32.totalorder %s101, %s104
    %p113 = scmp.eq.s32.totalorder %s16, 1
    %p114 = por %p112, %p113
    %p115 = scmp.ne.s32.totalorder %s104, %s105
    %p116 = scmp.eq.s32.totalorder %s16, 0
    %p117 = por %p115, %p116
    %p118 = scmp.ne.s32.totalorder %s104, %s105
    %p119 = scmp.eq.s32.totalorder %s17, 1
    %p120 = por %p118, %p119
    %p122 = scmp.ne.s32.totalorder %s105, %s121
    %p123 = scmp.eq.s32.totalorder %s17, 0
    %p124 = por %p122, %p123
    %s125 = ssub.s32 %s19, %s26
    %p126 = scmp.eq.s32.totalorder %s125, 0
    %s128 = sadd.s32 %s127, 1
    %s129 = scalar_select %p126, %s127, %s128
    %p132 = pneg %p126
    %p133 = scmp.eq.s32.totalorder %s11, 1
    %p134 = por %p132, %p133
    %p135 = scmp.ne.s32.totalorder %s127, %s130
    %p136 = scmp.eq.s32.totalorder %s11, 0
    %p137 = por %p135, %p136
    %p138 = scmp.ne.s32.totalorder %s127, %s130
    %p139 = scmp.eq.s32.totalorder %s16, 1
    %p140 = por %p138, %p139
    %p141 = scmp.ne.s32.totalorder %s130, %s131
    %p142 = scmp.eq.s32.totalorder %s16, 0
    %p143 = por %p141, %p142
    %p144 = scmp.ne.s32.totalorder %s130, %s131
    %p145 = scmp.eq.s32.totalorder %s17, 1
    %p146 = por %p144, %p145
    %p148 = scmp.ne.s32.totalorder %s131, %s147
    %p149 = scmp.eq.s32.totalorder %s17, 0
    %p150 = por %p148, %p149
    %s151 = ssub.s32 %s18, %s30
    %s152 = ssub.s32 %s19, %s26
    %s153 = sor.u32 %s151, %s152
    %p154 = scmp.eq.s32.totalorder %s153, 0
    %s156 = sadd.s32 %s155, 1
    %s157 = scalar_select %p154, %s155, %s156
    %p160 = pneg %p154
    %p161 = scmp.eq.s32.totalorder %s11, 1
    %p162 = por %p160, %p161
    %p163 = scmp.ne.s32.totalorder %s155, %s158
    %p164 = scmp.eq.s32.totalorder %s11, 0
    %p165 = por %p163, %p164
    %p166 = scmp.ne.s32.totalorder %s155, %s158
    %p167 = scmp.eq.s32.totalorder %s16, 1
    %p168 = por %p166, %p167
    %p169 = scmp.ne.s32.totalorder %s158, %s159
    %p170 = scmp.eq.s32.totalorder %s16, 0
    %p171 = por %p169, %p170
    %p172 = scmp.ne.s32.totalorder %s158, %s159
    %p173 = scmp.eq.s32.totalorder %s17, 1
    %p174 = por %p172, %p173
    %p176 = scmp.ne.s32.totalorder %s159, %s175
    %p177 = scmp.eq.s32.totalorder %s17, 0
    %p178 = por %p176, %p177
    %p179 = scmp.le.s32.totalorder 1, %s11
    %p180 = scmp.lt.s32.totalorder %s11, 3
    %p181 = pnand %p179, %p180
    %p182 = pneg %p181
    // Predicated region
    $region9: #{model_forward.16} parent=5 // pred_check
      _
    $region10: #{model_forward.16} parent=5 // pred_check_branch
      %184 = sbr.rel (%p181) target = $region12
    $region11: #{model_forward.16} parent=5 // pred_region
      %s185 = ssub.s32 %s11, 1
      // Predicated region
      $region13: #{model_forward.16} parent=11 // pred_check
        %p186 = pneg %p70
      $region14: #{model_forward.16} parent=11 // pred_check_branch
        %188 = sbr.rel (%p186) target = $region16
      $region15: #{model_forward.16} parent=11 // pred_region
        _
      $region16: #{model_forward.16} parent=11 // pred_fallthru
        _
      // Predicated region
      $region17: #{model_forward.16} parent=11 // pred_check
        %p189 = pneg %p91
      $region18: #{model_forward.16} parent=11 // pred_check_branch
        %191 = sbr.rel (%p189) target = $region20
      $region19: #{model_forward.16} parent=11 // pred_region
        _
      $region20: #{model_forward.16} parent=11 // pred_fallthru
        _
      // Predicated region
      $region21: #{model_forward.16} parent=11 // pred_check
        %p192 = pneg %p117
      $region22: #{model_forward.16} parent=11 // pred_check_branch
        %194 = sbr.rel (%p192) target = $region24
      $region23: #{model_forward.16} parent=11 // pred_region
        %s195 = smul.u32 3, %s21
        %p196 = scmp.lt.s32.totalorder %s195, 2
        %s197 = scalar_select %p196, %s195, 2
        %s198 = smul.addr %s197, 4
        %s199 = scalar_lea.vmem %s3, %s198
        %s200 = smul.u32 3, %s21
      $region24: #{model_forward.16} parent=11 // pred_fallthru
        _
      // Predicated region
      $region25: #{model_forward.16} parent=11 // pred_check
        %p201 = pneg %p143
      $region26: #{model_forward.16} parent=11 // pred_check_branch
        %203 = sbr.rel (%p201) target = $region28
      $region27: #{model_forward.16} parent=11 // pred_region
        %s204 = smul.u32 3, %s21
        %p205 = scmp.lt.s32.totalorder %s204, 2
        %s206 = scalar_select %p205, %s204, 2
        %s207 = scalar_lea.vmem %s4, %s206
        %s208 = smul.u32 3, %s21
      $region28: #{model_forward.16} parent=11 // pred_fallthru
        _
    $region12: #{model_forward.16} parent=5 // pred_fallthru
      _
    %p209 = scmp.lt.s32.totalorder %s11, 2
    // Predicated region
    $region29: #{model_forward.16} parent=5 // pred_check
      %p210 = pneg %p209
    $region30: #{model_forward.16} parent=5 // pred_check_branch
      %212 = sbr.rel (%p210) target = $region32
    $region31: #{model_forward.16} parent=5 // pred_region
      // Predicated region
      $region33: #{model_forward.16} parent=31 // pred_check
        %p213 = pneg %p43
      $region34: #{model_forward.16} parent=31 // pred_check_branch
        %215 = sbr.rel (%p213) target = $region36
      $region35: #{model_forward.16} parent=31 // pred_region
        %p216 = scmp.lt.s32.totalorder %s18, 1
        %s217 = scalar_select %p216, %s18, 1
        %s218 = smul.addr %s217, 4
        %s219 = scalar_lea.vmem %s0, %s218
      $region36: #{model_forward.16} parent=31 // pred_fallthru
        _
    $region32: #{model_forward.16} parent=5 // pred_fallthru
      _
    %p220 = scmp.le.s32.totalorder 1, %s11
    %p221 = scmp.lt.s32.totalorder %s11, 3
    %p222 = pnand %p220, %p221
    %p223 = pneg %p222
    // Predicated region
    $region37: #{model_forward.16} parent=5 // pred_check
      _
    $region38: #{model_forward.16} parent=5 // pred_check_branch
      %225 = sbr.rel (%p222) target = $region40
    $region39: #{model_forward.16} parent=5 // pred_region
      %s226 = ssub.s32 %s11, 1
      %p227 = scmp.lt.s32.totalorder %s20, 1
      %s228 = scalar_select %p227, %s20, 1
      %s229 = smul.addr %s228, 4
      %s230 = scalar_lea.vmem %s0, %s229
      %p231 = pneg %p49
      %p232 = pneg %p46
      %p233 = pneg %p70
      %p234 = pneg %p67
      %p235 = pneg %p91
      %p236 = pneg %p88
      %s237 = smul.u32 3, %s21
      %p238 = scmp.lt.s32.totalorder %s237, 2
      %s239 = scalar_select %p238, %s237, 2
      %s240 = smul.addr %s239, 4
      %s241 = scalar_lea.vmem %s3, %s240
      %p242 = pneg %p117
      %p243 = pneg %p114
      %s244 = smul.u32 3, %s21
      %p245 = scmp.lt.s32.totalorder %s244, 2
      %s246 = scalar_select %p245, %s244, 2
      %s247 = scalar_lea.vmem %s4, %s246
      %p248 = pneg %p143
      %p249 = pneg %p140
      %p250 = pneg %p171
      %p251 = pneg %p168
      %s252 = smul.u32 3, %s21
      %p253 = scmp.lt.s32.totalorder %s20, 1
      %s254 = scalar_select %p253, %s20, 1
      %p255 = scmp.lt.s32.totalorder %s252, 2
      %s256 = scalar_select %p255, %s252, 2
      %s257 = smul.addr %s254, 3
      %s258 = sadd.s32 %s256, %s257
      %s259 = smul.addr %s258, 4
      %s260 = scalar_lea.vmem %s5, %s259
      %p261 = scmp.lt.s32.totalorder %s20, 1
      %s262 = scalar_select %p261, %s20, 1
      %s263 = smul.addr %s262, 4
      %s264 = scalar_lea.vmem %s0, %s263
      %s265 = smul.u32 3, %s21
      %p266 = scmp.lt.s32.totalorder %s265, 2
      %s267 = scalar_select %p266, %s265, 2
      %s268 = smul.addr %s267, 4
      %s269 = scalar_lea.vmem %s3, %s268
      %s270 = smul.u32 3, %s21
      %s271 = smul.u32 3, %s21
      %p272 = scmp.lt.s32.totalorder %s271, 2
      %s273 = scalar_select %p272, %s271, 2
      %s274 = scalar_lea.vmem %s4, %s273
      %s275 = smul.u32 3, %s21
      %s276 = smul.u32 3, %s21
      %p277 = scmp.lt.s32.totalorder %s20, 1
      %s278 = scalar_select %p277, %s20, 1
      %p279 = scmp.lt.s32.totalorder %s276, 2
      %s280 = scalar_select %p279, %s276, 2
      %s281 = smul.addr %s278, 3
      %s282 = sadd.s32 %s280, %s281
      %s283 = smul.addr %s282, 4
      %s284 = scalar_lea.vmem %s5, %s283
      %s285 = smul.u32 3, %s21
      %p286 = scmp.eq.s32.totalorder %s21, 0
      // Predicated region
      $region41: #{model_forward.16} parent=39 // pred_check
        %p287 = pneg %p286
      $region42: #{model_forward.16} parent=39 // pred_check_branch
        %289 = sbr.rel (%p287) target = $region44
      $region43: #{model_forward.16} parent=39 // pred_region
        %v290 = vld [vmem:[%s264] sm:$0xf]
        %v291 = vunpack.c.l.bf16 %v290
        %292 = vadd.xlane.f32.xlu0 %v291
        %v293 = vpop.xlane.xlu0 %292
        %v294 = vrcp.pop 128.0
        %v295 = vmul.f32 128.0, %v294
        %v296 = vsub.f32 1.0, %v295
        %v297 = vmul.f32 %v294, %v296
        %v298 = vadd.f32 %v294, %v297
        %vm299 = vweird.f32 %v294
        %v300 = vsel %vm299, %v294, %v298
        %v301 = vmul.f32 %v293, %v300
        %v302 = vsub.f32 %v291, %v301
        %v303 = vmul.f32 %v302, %v302
        %304 = vadd.xlane.f32.xlu0 %v303
        %v305 = vpop.xlane.xlu0 %304
        %v306 = vmul.f32 %v305, %v300
        %v307 = vadd.f32 %v306, 1e-05
        %v308 = vrsqrt.pop %v307
        %v309 = vmul.f32 %v308, %v307
        %v310 = vmul.f32 %v309, %v308
        %v311 = vmul.f32 0.5, %v310
        %v312 = vsub.f32 1.5, %v311
        %v313 = vmul.f32 %v308, %v312
        %vm314 = vweird.f32 %v307
        %vm315 = vweird.f32 %v308
        %vm316 = vmor %vm314, %vm315
        %v317 = vsel %vm316, %v308, %v313
        %v318 = vmul.f32 %v302, %v317
        %v319 = vld [vmem:[%s1] sm:$0x1]
        %v321 = vperm.slane %v319, 0
        %v323 = vmul.f32 %v318, %v321
        %v324 = vld [vmem:[%s2] sm:$0x1]
        %v326 = vperm.slane %v324, 0
        %v328 = vadd.f32 %v323, %v326
        %v329 = vpack.c.bf16 %v328, %v328
        %330 = vst [vmem:[#allocation2] sm:$0xf] %v329
      $region44: #{model_forward.16} parent=39 // pred_fallthru
        _
      %v331 = vld [vmem:[#allocation2] sm:$0xf]
      %v332 = vld [vmem:[%s269] sm:$0xff]
      %v333 = vld [vmem:[%s269 + $0x8] sm:$0xf]
      %v334 = vld [vmem:[%s269 + $0xc] sm:$0xff]
      %v335 = vld [vmem:[%s269 + $0x14] sm:$0xf]
      %v336 = vld [vmem:[%s269 + $0x18] sm:$0xff]
      %v337 = vld [vmem:[%s269 + $0x20] sm:$0xf]
      %v338 = vld [vmem:[%s269 + $0x24] sm:$0xff]
      %v339 = vld [vmem:[%s269 + $0x2c] sm:$0xf]
      %v340 = vld [vmem:[%s269 + $0x30] sm:$0xff]
      %v341 = vld [vmem:[%s269 + $0x38] sm:$0xf]
      %v342 = vld [vmem:[%s269 + $0x3c] sm:$0xff]
      %v343 = vld [vmem:[%s269 + $0x44] sm:$0xf]
      %v344 = vld [vmem:[%s269 + $0x48] sm:$0xff]
      %v345 = vld [vmem:[%s269 + $0x50] sm:$0xf]
      %v346 = vld [vmem:[%s269 + $0x54] sm:$0xff]
      %v347 = vld [vmem:[%s269 + $0x5c] sm:$0xf]
      %v348 = vld [vmem:[%s269 + $0x60] sm:$0xff]
      %v349 = vld [vmem:[%s269 + $0x68] sm:$0xf]
      %v350 = vld [vmem:[%s269 + $0x6c] sm:$0xff]
      %v351 = vld [vmem:[%s269 + $0x74] sm:$0xf]
      %v352 = vld [vmem:[%s269 + $0x78] sm:$0xff]
      %v353 = vld [vmem:[%s269 + $0x80] sm:$0xf]
      %v354 = vld [vmem:[%s269 + $0x84] sm:$0xff]
      %v355 = vld [vmem:[%s269 + $0x8c] sm:$0xf]
      %v356 = vld [vmem:[%s269 + $0x90] sm:$0xff]
      %v357 = vld [vmem:[%s269 + $0x98] sm:$0xf]
      %v358 = vld [vmem:[%s269 + $0x9c] sm:$0xff]
      %v359 = vld [vmem:[%s269 + $0xa4] sm:$0xf]
      %v360 = vld [vmem:[%s269 + $0xa8] sm:$0xff]
      %v361 = vld [vmem:[%s269 + $0xb0] sm:$0xf]
      %v362 = vld [vmem:[%s269 + $0xb4] sm:$0xff]
      %v363 = vld [vmem:[%s269 + $0xbc] sm:$0xf]
      %v364 = vld [vmem:[%s274] sm:$0x7]
      %v366 = vperm.slane %v364, 0
      %v367 = vperm.slane %v364, 1
      %v368 = vperm.slane %v364, 2
      %v404 = vunpack.c.l.b16 %v332
      %v405 = vunpack.c.h.b16 %v332
      %v406 = vunpack.c.l.b16 %v333
      %v407 = vunpack.c.l.b16 %v334
      %v408 = vunpack.c.h.b16 %v334
      %v409 = vunpack.c.l.b16 %v335
      %v410 = vunpack.c.l.b16 %v336
      %v411 = vunpack.c.h.b16 %v336
      %v412 = vunpack.c.l.b16 %v337
      %v413 = vunpack.c.l.b16 %v338
      %v414 = vunpack.c.h.b16 %v338
      %v415 = vunpack.c.l.b16 %v339
      %v416 = vunpack.c.l.b16 %v340
      %v417 = vunpack.c.h.b16 %v340
      %v418 = vunpack.c.l.b16 %v341
      %v419 = vunpack.c.l.b16 %v342
      %v420 = vunpack.c.h.b16 %v342
      %v421 = vunpack.c.l.b16 %v343
      %v422 = vunpack.c.l.b16 %v344
      %v423 = vunpack.c.h.b16 %v344
      %v424 = vunpack.c.l.b16 %v345
      %v425 = vunpack.c.l.b16 %v346
      %v426 = vunpack.c.h.b16 %v346
      %v427 = vunpack.c.l.b16 %v347
      %v428 = vunpack.c.l.b16 %v348
      %v429 = vunpack.c.h.b16 %v348
      %v430 = vunpack.c.l.b16 %v349
      %v431 = vunpack.c.l.b16 %v350
      %v432 = vunpack.c.h.b16 %v350
      %v433 = vunpack.c.l.b16 %v351
      %v434 = vunpack.c.l.b16 %v352
      %v435 = vunpack.c.h.b16 %v352
      %v436 = vunpack.c.l.b16 %v353
      %v437 = vunpack.c.l.b16 %v354
      %v438 = vunpack.c.h.b16 %v354
      %v439 = vunpack.c.l.b16 %v355
      %v440 = vunpack.c.l.b16 %v356
      %v441 = vunpack.c.h.b16 %v356
      %v442 = vunpack.c.l.b16 %v357
      %v443 = vunpack.c.l.b16 %v358
      %v444 = vunpack.c.h.b16 %v358
      %v445 = vunpack.c.l.b16 %v359
      %v446 = vunpack.c.l.b16 %v360
      %v447 = vunpack.c.h.b16 %v360
      %v448 = vunpack.c.l.b16 %v361
      %v449 = vunpack.c.l.b16 %v362
      %v450 = vunpack.c.h.b16 %v362
      %v451 = vunpack.c.l.b16 %v363
      %v452 = vpack.c.b16 %v407, %v404
      %v453 = vpack.c.b16 %v408, %v405
      %v454 = vpack.c.b16 %v409, %v406
      %v455 = vpack.c.b16 %v413, %v410
      %v456 = vpack.c.b16 %v414, %v411
      %v457 = vpack.c.b16 %v415, %v412
      %v458 = vpack.c.b16 %v419, %v416
      %v459 = vpack.c.b16 %v420, %v417
      %v460 = vpack.c.b16 %v421, %v418
      %v461 = vpack.c.b16 %v425, %v422
      %v462 = vpack.c.b16 %v426, %v423
      %v463 = vpack.c.b16 %v427, %v424
      %v464 = vpack.c.b16 %v431, %v428
      %v465 = vpack.c.b16 %v432, %v429
      %v466 = vpack.c.b16 %v433, %v430
      %v467 = vpack.c.b16 %v437, %v434
      %v468 = vpack.c.b16 %v438, %v435
      %v469 = vpack.c.b16 %v439, %v436
      %v470 = vpack.c.b16 %v443, %v440
      %v471 = vpack.c.b16 %v444, %v441
      %v472 = vpack.c.b16 %v445, %v442
      %v473 = vpack.c.b16 %v449, %v446
      %v474 = vpack.c.b16 %v450, %v447
      %v475 = vpack.c.b16 %v451, %v448
      %500 = vmatpush.bf16.msra.mxu0 %v473
      %501 = vmatpush.bf16.msra.mxu0 %v470
      %502 = vmatpush.bf16.msra.mxu0 %v467
      %503 = vmatpush.bf16.msra.mxu0 %v464
      %504 = vmatpush.bf16.msra.mxu0 %v461
      %505 = vmatpush.bf16.msra.mxu0 %v458
      %506 = vmatpush.bf16.msra.mxu0 %v455
      %507 = vmatpush.bf16.msra.mxu0 %v452
      %508 = vmatmul.bf16.gmra.mxu0 %v331
      %v509 = vpop.f32.mrf.mxu0
      %v510 = vadd.f32 %v366, %v509
      %v511 = vpop.f32.mrf.mxu0
      %512 = vdwg.mxu0
      %513 = vmatpush.bf16.msra.mxu0 %v474
      %514 = vmatpush.bf16.msra.mxu0 %v471
      %515 = vmatpush.bf16.msra.mxu0 %v468
      %516 = vmatpush.bf16.msra.mxu0 %v465
      %517 = vmatpush.bf16.msra.mxu0 %v462
      %518 = vmatpush.bf16.msra.mxu0 %v459
      %519 = vmatpush.bf16.msra.mxu0 %v456
      %520 = vmatpush.bf16.msra.mxu0 %v453
      %521 = vmatmul.bf16.gmra.mxu0 %v331
      %v522 = vpop.f32.mrf.mxu0
      %v523 = vadd.f32 %v367, %v522
      %v524 = vpop.f32.mrf.mxu0
      %525 = vdwg.mxu0
      %526 = vmatpush.bf16.msra.mxu0 %v475
      %527 = vmatpush.bf16.msra.mxu0 %v472
      %528 = vmatpush.bf16.msra.mxu0 %v469
      %529 = vmatpush.bf16.msra.mxu0 %v466
      %530 = vmatpush.bf16.msra.mxu0 %v463
      %531 = vmatpush.bf16.msra.mxu0 %v460
      %532 = vmatpush.bf16.msra.mxu0 %v457
      %533 = vmatpush.bf16.msra.mxu0 %v454
      %534 = vmatmul.bf16.gmra.mxu0 %v331
      %v535 = vpop.f32.mrf.mxu0
      %v536 = vadd.f32 %v368, %v535
      %v537 = vpop.f32.mrf.mxu0
      %538 = vdwg.mxu0
      %v539 = vpack.c.bf16 %v523, %v510
      %v540 = vpack.c.bf16 %v536, %v536
      %541 = vst [vmem:[%s284] sm:$0xff] %v539
      %542 = vst [vmem:[%s284 + $0x8] sm:$0xf] %v540
      %s543 = smul.u32 3, %s21
      %p544 = scmp.lt.s32.totalorder %s20, 1
      %s545 = scalar_select %p544, %s20, 1
      %p546 = scmp.lt.s32.totalorder %s543, 2
      %s547 = scalar_select %p546, %s543, 2
      %s548 = smul.addr %s545, 3
      %s549 = sadd.s32 %s547, %s548
      %s550 = smul.addr %s549, 4
      %s551 = scalar_lea.vmem %s5, %s550
      // Predicated region
      $region45: #{model_forward.16} parent=39 // pred_check
        %p552 = pneg %p168
      $region46: #{model_forward.16} parent=39 // pred_check_branch
        %554 = sbr.rel (%p552) target = $region48
      $region47: #{model_forward.16} parent=39 // pred_region
        %s555 = smul.u32 3, %s21
      $region48: #{model_forward.16} parent=39 // pred_fallthru
        _
    $region40: #{model_forward.16} parent=5 // pred_fallthru
      _
    %p556 = scmp.le.s32.totalorder 2, %s11
    // Predicated region
    $region49: #{model_forward.16} parent=5 // pred_check
      %p557 = pneg %p556
    $region50: #{model_forward.16} parent=5 // pred_check_branch
      %559 = sbr.rel (%p557) target = $region52
    $region51: #{model_forward.16} parent=5 // pred_region
      %s560 = ssub.s32 %s11, 2
      // Predicated region
      $region53: #{model_forward.16} parent=51 // pred_check
        %p561 = pneg %p174
      $region54: #{model_forward.16} parent=51 // pred_check_branch
        %563 = sbr.rel (%p561) target = $region56
      $region55: #{model_forward.16} parent=51 // pred_region
        %s564 = smul.u32 3, %s23
        %p565 = scmp.lt.s32.totalorder %s22, 1
        %s566 = scalar_select %p565, %s22, 1
        %p567 = scmp.lt.s32.totalorder %s564, 2
        %s568 = scalar_select %p567, %s564, 2
        %s569 = smul.addr %s566, 3
        %s570 = sadd.s32 %s568, %s569
        %s571 = smul.addr %s570, 4
        %s572 = scalar_lea.vmem %s5, %s571
      $region56: #{model_forward.16} parent=51 // pred_fallthru
        _
    $region52: #{model_forward.16} parent=5 // pred_fallthru
      _
  $region6: #{model_forward.16} parent=0 // loop_footer
    %s15 = sadd.s32 1, %s11
  $region7: #{model_forward.16} parent=0 // loop_footer_branch
    %10 = sbr.rel target = $region3
  $region8: #{model_forward.16} parent=0 // loop_exit
    _

// kernel: model_forward.19
$region0: #{model_forward.19}
  #allocation0 [shape = 'u32[]', space=smem, size = 0x4, offset = 0x4, fixed_abs, tag = 'smem constant byte address 0x4 - core index']
  #allocation1 [shape = 'u32[72,128]{1,0:T(1,128)}', space=vmem, size = 0x9000, scoped, tag = 'internal scratch']
  #allocation2 [shape = 'bf16[8,128]{1,0:T(8,128)(2,1)}', space=vmem, size = 0x800, scoped, tag = 'scratch operand']
  %s0 = inlined_call_operand.vmem [shape: bf16[16,128], index: 0, kind: input, shape index: {}]
  %s1 = inlined_call_operand.vmem [shape: f32[1,128], index: 1, kind: input, shape index: {}]
  %s2 = inlined_call_operand.vmem [shape: f32[1,128], index: 2, kind: input, shape index: {}]
  %s3 = inlined_call_operand.hbm [shape: bf16[128,512], index: 3, kind: input, shape index: {}]
  %s4 = inlined_call_operand.vmem [shape: f32[1,512], index: 4, kind: input, shape index: {}]
  %s5 = inlined_call_operand.vmem [shape: bf16[16,512], index: 5, kind: output, shape index: {}]
  %s6 = sld [smem:[#allocation0]]
  $region61: #{model_forward.19} parent=0
    _
  %s8 = ssub.s32 1, %s6
  %s9 = scalar_select 0, %s8, %s6
  $region1: #{model_forward.19} parent=0
    #allocation3 [shape = 'u8[131072]{0}', space=vmem, size = 0x20000, scoped, tag = 'input window, operand 3, single buffered']
    #allocation4 [shape = 's32[2]{0}', space=sflag, size = 0x8, scoped, tag = 'scoped memory for model_forward.19']
    %10 = vsyncpa [#allocation4], 0
    loop: start=0, step=1, limit=4
    $region2: #{model_forward.19} parent=1 // loop_pre_header
      _
    $region3: #{model_forward.19} parent=1 // loop_header
      %s12 = sphi 0, %s16
      %p13 = scmp.ge.s32.totalorder %s12, 4
      %s19 = sphi 0, %s31
      %s20 = sphi 0, %s27
      %s21 = sphi 0, %s19
      %s22 = sphi 0, %s20
      %s23 = sphi 0, %s21
      %s24 = sphi 0, %s22
      %s34 = sphi 0, %s36
      %s37 = sphi 0, %s34
      %s38 = sphi 0, %s37
      %s54 = sphi 0, %s38
      %s58 = sphi 0, %s58
      %s60 = sphi 0, %s58
      %s61 = sphi 0, %s60
      %s75 = sphi 0, %s61
      %s79 = sphi 0, %s79
      %s81 = sphi 0, %s79
      %s82 = sphi 0, %s81
      %s96 = sphi 0, %s82
      %s102 = sphi 0, %s104
      %s105 = sphi 0, %s102
      %s106 = sphi 0, %s105
      %s122 = sphi 0, %s106
      %s128 = sphi 0, %s130
      %s131 = sphi 0, %s128
      %s132 = sphi 0, %s131
      %s148 = sphi 0, %s132
      %s156 = sphi 0, %s158
      %s159 = sphi 0, %s156
      %s160 = sphi 0, %s159
      %s176 = sphi 0, %s160
    $region4: #{model_forward.19} parent=1 // loop_header_branch
      %15 = sbr.rel (%p13) target = $region8
    $region5: #{model_forward.19} parent=1 // loop_body
      %s17 = ssub.s32 %s12, 1
      %s18 = ssub.s32 %s12, 2
      %s25 = sadd.s32 1, %s20
      %p26 = scmp.ge.s32.totalorder %s25, 1
      %s27 = scalar_select %p26, 0, %s25
      %s28 = sadd.s32 1, %s19
      %s29 = scalar_select %p26, %s28, %s19
      %p30 = scmp.ge.s32.totalorder %s29, 2
      %s31 = scalar_select %p30, 0, %s29
      %s32 = ssub.s32 %s19, %s31
      %p33 = scmp.eq.s32.totalorder %s32, 0
      %s35 = sadd.s32 %s34, 1
      %s36 = scalar_select %p33, %s34, %s35
      %p39 = pneg %p33
      %p40 = scmp.eq.s32.totalorder %s12, 1
      %p41 = por %p39, %p40
      %p42 = scmp.ne.s32.totalorder %s34, %s37
      %p43 = scmp.eq.s32.totalorder %s12, 0
      %p44 = por %p42, %p43
      %p45 = scmp.ne.s32.totalorder %s34, %s37
      %p46 = scmp.eq.s32.totalorder %s17, 1
      %p47 = por %p45, %p46
      %p48 = scmp.ne.s32.totalorder %s37, %s38
      %p49 = scmp.eq.s32.totalorder %s17, 0
      %p50 = por %p48, %p49
      %p51 = scmp.ne.s32.totalorder %s37, %s38
      %p52 = scmp.eq.s32.totalorder %s18, 1
      %p53 = por %p51, %p52
      %p55 = scmp.ne.s32.totalorder %s38, %s54
      %p56 = scmp.eq.s32.totalorder %s18, 0
      %p57 = por %p55, %p56
      %s59 = sadd.s32 %s58, 1
      %p62 = scmp.eq.s32.totalorder %s12, 1
      %p63 = scmp.ne.s32.totalorder %s58, %s60
      %p64 = scmp.eq.s32.totalorder %s12, 0
      %p65 = por %p63, %p64
      %p66 = scmp.ne.s32.totalorder %s58, %s60
      %p67 = scmp.eq.s32.totalorder %s17, 1
      %p68 = por %p66, %p67
      %p69 = scmp.ne.s32.totalorder %s60, %s61
      %p70 = scmp.eq.s32.totalorder %s17, 0
      %p71 = por %p69, %p70
      %p72 = scmp.ne.s32.totalorder %s60, %s61
      %p73 = scmp.eq.s32.totalorder %s18, 1
      %p74 = por %p72, %p73
      %p76 = scmp.ne.s32.totalorder %s61, %s75
      %p77 = scmp.eq.s32.totalorder %s18, 0
      %p78 = por %p76, %p77
      %s80 = sadd.s32 %s79, 1
      %p83 = scmp.eq.s32.totalorder %s12, 1
      %p84 = scmp.ne.s32.totalorder %s79, %s81
      %p85 = scmp.eq.s32.totalorder %s12, 0
      %p86 = por %p84, %p85
      %p87 = scmp.ne.s32.totalorder %s79, %s81
      %p88 = scmp.eq.s32.totalorder %s17, 1
      %p89 = por %p87, %p88
      %p90 = scmp.ne.s32.totalorder %s81, %s82
      %p91 = scmp.eq.s32.totalorder %s17, 0
      %p92 = por %p90, %p91
      %p93 = scmp.ne.s32.totalorder %s81, %s82
      %p94 = scmp.eq.s32.totalorder %s18, 1
      %p95 = por %p93, %p94
      %p97 = scmp.ne.s32.totalorder %s82, %s96
      %p98 = scmp.eq.s32.totalorder %s18, 0
      %p99 = por %p97, %p98
      %s100 = ssub.s32 %s20, %s27
      %p101 = scmp.eq.s32.totalorder %s100, 0
      %s103 = sadd.s32 %s102, 1
      %s104 = scalar_select %p101, %s102, %s103
      %p107 = pneg %p101
      %p108 = scmp.eq.s32.totalorder %s12, 1
      %p109 = por %p107, %p108
      %p110 = scmp.ne.s32.totalorder %s102, %s105
      %p111 = scmp.eq.s32.totalorder %s12, 0
      %p112 = por %p110, %p111
      %p113 = scmp.ne.s32.totalorder %s102, %s105
      %p114 = scmp.eq.s32.totalorder %s17, 1
      %p115 = por %p113, %p114
      %p116 = scmp.ne.s32.totalorder %s105, %s106
      %p117 = scmp.eq.s32.totalorder %s17, 0
      %p118 = por %p116, %p117
      %p119 = scmp.ne.s32.totalorder %s105, %s106
      %p120 = scmp.eq.s32.totalorder %s18, 1
      %p121 = por %p119, %p120
      %p123 = scmp.ne.s32.totalorder %s106, %s122
      %p124 = scmp.eq.s32.totalorder %s18, 0
      %p125 = por %p123, %p124
      %s126 = ssub.s32 %s20, %s27
      %p127 = scmp.eq.s32.totalorder %s126, 0
      %s129 = sadd.s32 %s128, 1
      %s130 = scalar_select %p127, %s128, %s129
      %p133 = pneg %p127
      %p134 = scmp.eq.s32.totalorder %s12, 1
      %p135 = por %p133, %p134
      %p136 = scmp.ne.s32.totalorder %s128, %s131
      %p137 = scmp.eq.s32.totalorder %s12, 0
      %p138 = por %p136, %p137
      %p139 = scmp.ne.s32.totalorder %s128, %s131
      %p140 = scmp.eq.s32.totalorder %s17, 1
      %p141 = por %p139, %p140
      %p142 = scmp.ne.s32.totalorder %s131, %s132
      %p143 = scmp.eq.s32.totalorder %s17, 0
      %p144 = por %p142, %p143
      %p145 = scmp.ne.s32.totalorder %s131, %s132
      %p146 = scmp.eq.s32.totalorder %s18, 1
      %p147 = por %p145, %p146
      %p149 = scmp.ne.s32.totalorder %s132, %s148
      %p150 = scmp.eq.s32.totalorder %s18, 0
      %p151 = por %p149, %p150
      %s152 = ssub.s32 %s19, %s31
      %s153 = ssub.s32 %s20, %s27
      %s154 = sor.u32 %s152, %s153
      %p155 = scmp.eq.s32.totalorder %s154, 0
      %s157 = sadd.s32 %s156, 1
      %s158 = scalar_select %p155, %s156, %s157
      %p161 = pneg %p155
      %p162 = scmp.eq.s32.totalorder %s12, 1
      %p163 = por %p161, %p162
      %p164 = scmp.ne.s32.totalorder %s156, %s159
      %p165 = scmp.eq.s32.totalorder %s12, 0
      %p166 = por %p164, %p165
      %p167 = scmp.ne.s32.totalorder %s156, %s159
      %p168 = scmp.eq.s32.totalorder %s17, 1
      %p169 = por %p167, %p168
      %p170 = scmp.ne.s32.totalorder %s159, %s160
      %p171 = scmp.eq.s32.totalorder %s17, 0
      %p172 = por %p170, %p171
      %p173 = scmp.ne.s32.totalorder %s159, %s160
      %p174 = scmp.eq.s32.totalorder %s18, 1
      %p175 = por %p173, %p174
      %p177 = scmp.ne.s32.totalorder %s160, %s176
      %p178 = scmp.eq.s32.totalorder %s18, 0
      %p179 = por %p177, %p178
      %p180 = scmp.le.s32.totalorder 1, %s12
      %p181 = scmp.lt.s32.totalorder %s12, 3
      %p182 = pnand %p180, %p181
      %p183 = pneg %p182
      // Predicated region
      $region9: #{model_forward.19} parent=5 // pred_check
        _
      $region10: #{model_forward.19} parent=5 // pred_check_branch
        %185 = sbr.rel (%p182) target = $region12
      $region11: #{model_forward.19} parent=5 // pred_region
        %s186 = ssub.s32 %s12, 1
        // Predicated region
        $region13: #{model_forward.19} parent=11 // pred_check
          %p187 = pneg %p71
        $region14: #{model_forward.19} parent=11 // pred_check_branch
          %189 = sbr.rel (%p187) target = $region16
        $region15: #{model_forward.19} parent=11 // pred_region
          _
        $region16: #{model_forward.19} parent=11 // pred_fallthru
          _
        // Predicated region
        $region17: #{model_forward.19} parent=11 // pred_check
          %p190 = pneg %p92
        $region18: #{model_forward.19} parent=11 // pred_check_branch
          %192 = sbr.rel (%p190) target = $region20
        $region19: #{model_forward.19} parent=11 // pred_region
          _
        $region20: #{model_forward.19} parent=11 // pred_fallthru
          _
        // Predicated region
        $region21: #{model_forward.19} parent=11 // pred_check
          %p193 = pneg %p118
        $region22: #{model_forward.19} parent=11 // pred_check_branch
          %195 = sbr.rel (%p193) target = $region24
        $region23: #{model_forward.19} parent=11 // pred_region
          %s196 = smul.u32 4, %s22
          %198 = vsyncadd [#allocation4], 0
          %s199 = smul.addr %s196, 4
          %s200 = scalar_lea.hbm %s3, %s199
          %s201 = sshll.u32 %s200, 4
          %s202 = int_to_ptr.hbm [resolvable:$true] %s201
          %s203 = sshll.u32 [#allocation3], 4
          %s204 = int_to_ptr.vmem [resolvable:$true] %s203
          %209 = dma.hbm_to_vmem [thread:$0]  %s202, 4096, %s204, [#allocation4], 256, 256, 16
        $region24: #{model_forward.19} parent=11 // pred_fallthru
          _
        // Predicated region
        $region25: #{model_forward.19} parent=11 // pred_check
          %p210 = pneg %p144
        $region26: #{model_forward.19} parent=11 // pred_check_branch
          %212 = sbr.rel (%p210) target = $region28
        $region27: #{model_forward.19} parent=11 // pred_region
          %s213 = smul.u32 4, %s22
          %p214 = scmp.lt.s32.totalorder %s213, 3
          %s215 = scalar_select %p214, %s213, 3
          %s216 = scalar_lea.vmem %s4, %s215
          %s217 = smul.u32 4, %s22
        $region28: #{model_forward.19} parent=11 // pred_fallthru
          _
      $region12: #{model_forward.19} parent=5 // pred_fallthru
        _
      %p218 = scmp.lt.s32.totalorder %s12, 2
      // Predicated region
      $region29: #{model_forward.19} parent=5 // pred_check
        %p219 = pneg %p218
      $region30: #{model_forward.19} parent=5 // pred_check_branch
        %221 = sbr.rel (%p219) target = $region32
      $region31: #{model_forward.19} parent=5 // pred_region
        // Predicated region
        $region33: #{model_forward.19} parent=31 // pred_check
          %p222 = pneg %p44
        $region34: #{model_forward.19} parent=31 // pred_check_branch
          %224 = sbr.rel (%p222) target = $region36
        $region35: #{model_forward.19} parent=31 // pred_region
          %p225 = scmp.lt.s32.totalorder %s19, 1
          %s226 = scalar_select %p225, %s19, 1
          %s227 = smul.addr %s226, 4
          %s228 = scalar_lea.vmem %s0, %s227
        $region36: #{model_forward.19} parent=31 // pred_fallthru
          _
      $region32: #{model_forward.19} parent=5 // pred_fallthru
        _
      %p229 = scmp.le.s32.totalorder 1, %s12
      %p230 = scmp.lt.s32.totalorder %s12, 3
      %p231 = pnand %p229, %p230
      %p232 = pneg %p231
      // Predicated region
      $region37: #{model_forward.19} parent=5 // pred_check
        _
      $region38: #{model_forward.19} parent=5 // pred_check_branch
        %234 = sbr.rel (%p231) target = $region40
      $region39: #{model_forward.19} parent=5 // pred_region
        %s235 = ssub.s32 %s12, 1
        // Predicated region
        $region41: #{model_forward.19} parent=39 // pred_check
          %p236 = pneg %p118
        $region42: #{model_forward.19} parent=39 // pred_check_branch
          %238 = sbr.rel (%p236) target = $region44
        $region43: #{model_forward.19} parent=39 // pred_region
          %240 = dma.done [#allocation4], 4096
        $region44: #{model_forward.19} parent=39 // pred_fallthru
          _
        %p241 = scmp.lt.s32.totalorder %s21, 1
        %s242 = scalar_select %p241, %s21, 1
        %s243 = smul.addr %s242, 4
        %s244 = scalar_lea.vmem %s0, %s243
        %p245 = pneg %p50
        %p246 = pneg %p47
        %p247 = pneg %p71
        %p248 = pneg %p68
        %p249 = pneg %p92
        %p250 = pneg %p89
        %p251 = pneg %p118
        %p252 = pneg %p115
        %s253 = smul.u32 4, %s22
        %p254 = scmp.lt.s32.totalorder %s253, 3
        %s255 = scalar_select %p254, %s253, 3
        %s256 = scalar_lea.vmem %s4, %s255
        %p257 = pneg %p144
        %p258 = pneg %p141
        %p259 = pneg %p172
        %p260 = pneg %p169
        %s261 = smul.u32 4, %s22
        %p262 = scmp.lt.s32.totalorder %s21, 1
        %s263 = scalar_select %p262, %s21, 1
        %p264 = scmp.lt.s32.totalorder %s261, 3
        %s265 = scalar_select %p264, %s261, 3
        %s266 = smul.addr %s263, 4
        %s267 = sadd.s32 %s265, %s266
        %s268 = smul.addr %s267, 4
        %s269 = scalar_lea.vmem %s5, %s268
        %p270 = scmp.lt.s32.totalorder %s21, 1
        %s271 = scalar_select %p270, %s21, 1
        %s272 = smul.addr %s271, 4
        %s273 = scalar_lea.vmem %s0, %s272
        %s274 = smul.u32 4, %s22
        %s275 = smul.u32 4, %s22
        %p276 = scmp.lt.s32.totalorder %s275, 3
        %s277 = scalar_select %p276, %s275, 3
        %s278 = scalar_lea.vmem %s4, %s277
        %s279 = smul.u32 4, %s22
        %s280 = smul.u32 4, %s22
        %p281 = scmp.lt.s32.totalorder %s21, 1
        %s282 = scalar_select %p281, %s21, 1
        %p283 = scmp.lt.s32.totalorder %s280, 3
        %s284 = scalar_select %p283, %s280, 3
        %s285 = smul.addr %s282, 4
        %s286 = sadd.s32 %s284, %s285
        %s287 = smul.addr %s286, 4
        %s288 = scalar_lea.vmem %s5, %s287
        %s289 = smul.u32 4, %s22
        %p290 = scmp.eq.s32.totalorder %s22, 0
        // Predicated region
        $region45: #{model_forward.19} parent=39 // pred_check
          %p291 = pneg %p290
        $region46: #{model_forward.19} parent=39 // pred_check_branch
          %293 = sbr.rel (%p291) target = $region48
        $region47: #{model_forward.19} parent=39 // pred_region
          %v294 = vld [vmem:[%s273] sm:$0xf]
          %v295 = vunpack.c.l.bf16 %v294
          %296 = vadd.xlane.f32.xlu0 %v295
          %v297 = vpop.xlane.xlu0 %296
          %v298 = vrcp.pop 128.0
          %v299 = vmul.f32 128.0, %v298
          %v300 = vsub.f32 1.0, %v299
          %v301 = vmul.f32 %v298, %v300
          %v302 = vadd.f32 %v298, %v301
          %vm303 = vweird.f32 %v298
          %v304 = vsel %vm303, %v298, %v302
          %v305 = vmul.f32 %v297, %v304
          %v306 = vsub.f32 %v295, %v305
          %v307 = vmul.f32 %v306, %v306
          %308 = vadd.xlane.f32.xlu0 %v307
          %v309 = vpop.xlane.xlu0 %308
          %v310 = vmul.f32 %v309, %v304
          %v311 = vadd.f32 %v310, 1e-05
          %v312 = vrsqrt.pop %v311
          %v313 = vmul.f32 %v312, %v311
          %v314 = vmul.f32 %v313, %v312
          %v315 = vmul.f32 0.5, %v314
          %v316 = vsub.f32 1.5, %v315
          %v317 = vmul.f32 %v312, %v316
          %vm318 = vweird.f32 %v311
          %vm319 = vweird.f32 %v312
          %vm320 = vmor %vm318, %vm319
          %v321 = vsel %vm320, %v312, %v317
          %v322 = vmul.f32 %v306, %v321
          %v323 = vld [vmem:[%s1] sm:$0x1]
          %v325 = vperm.slane %v323, 0
          %v327 = vmul.f32 %v322, %v325
          %v328 = vld [vmem:[%s2] sm:$0x1]
          %v330 = vperm.slane %v328, 0
          %v332 = vadd.f32 %v327, %v330
          %v333 = vpack.c.bf16 %v332, %v332
          %334 = vst [vmem:[#allocation2] sm:$0xf] %v333
        $region48: #{model_forward.19} parent=39 // pred_fallthru
          _
        %v335 = vld [vmem:[#allocation2] sm:$0xf]
        %v336 = vld [vmem:[#allocation3] sm:$0xff]
        %v337 = vld [vmem:[#allocation3 + $0x8] sm:$0xff]
        %v338 = vld [vmem:[#allocation3 + $0x10] sm:$0xff]
        %v339 = vld [vmem:[#allocation3 + $0x18] sm:$0xff]
        %v340 = vld [vmem:[#allocation3 + $0x20] sm:$0xff]
        %v341 = vld [vmem:[#allocation3 + $0x28] sm:$0xff]
        %v342 = vld [vmem:[#allocation3 + $0x30] sm:$0xff]
        %v343 = vld [vmem:[#allocation3 + $0x38] sm:$0xff]
        %v344 = vld [vmem:[#allocation3 + $0x40] sm:$0xff]
        %v345 = vld [vmem:[#allocation3 + $0x48] sm:$0xff]
        %v346 = vld [vmem:[#allocation3 + $0x50] sm:$0xff]
        %v347 = vld [vmem:[#allocation3 + $0x58] sm:$0xff]
        %v348 = vld [vmem:[#allocation3 + $0x60] sm:$0xff]
        %v349 = vld [vmem:[#allocation3 + $0x68] sm:$0xff]
        %v350 = vld [vmem:[#allocation3 + $0x70] sm:$0xff]
        %v351 = vld [vmem:[#allocation3 + $0x78] sm:$0xff]
        %v352 = vld [vmem:[#allocation3 + $0x80] sm:$0xff]
        %v353 = vld [vmem:[#allocation3 + $0x88] sm:$0xff]
        %v354 = vld [vmem:[#allocation3 + $0x90] sm:$0xff]
        %v355 = vld [vmem:[#allocation3 + $0x98] sm:$0xff]
        %v356 = vld [vmem:[#allocation3 + $0xa0] sm:$0xff]
        %v357 = vld [vmem:[#allocation3 + $0xa8] sm:$0xff]
        %v358 = vld [vmem:[#allocation3 + $0xb0] sm:$0xff]
        %v359 = vld [vmem:[#allocation3 + $0xb8] sm:$0xff]
        %v360 = vld [vmem:[#allocation3 + $0xc0] sm:$0xff]
        %v361 = vld [vmem:[#allocation3 + $0xc8] sm:$0xff]
        %v362 = vld [vmem:[#allocation3 + $0xd0] sm:$0xff]
        %v363 = vld [vmem:[#allocation3 + $0xd8] sm:$0xff]
        %v364 = vld [vmem:[#allocation3 + $0xe0] sm:$0xff]
        %v365 = vld [vmem:[#allocation3 + $0xe8] sm:$0xff]
        %v366 = vld [vmem:[#allocation3 + $0xf0] sm:$0xff]
        %v367 = vld [vmem:[#allocation3 + $0xf8] sm:$0xff]
        %v368 = vld [vmem:[%s278] sm:$0xf]
        %v370 = vperm.slane %v368, 0
        %v371 = vperm.slane %v368, 1
        %v372 = vperm.slane %v368, 2
        %v373 = vperm.slane %v368, 3
        %v410 = vunpack.c.l.b16 %v336
        %v411 = vunpack.c.h.b16 %v336
        %v412 = vunpack.c.l.b16 %v337
        %v413 = vunpack.c.h.b16 %v337
        %v414 = vunpack.c.l.b16 %v338
        %v415 = vunpack.c.h.b16 %v338
        %v416 = vunpack.c.l.b16 %v339
        %v417 = vunpack.c.h.b16 %v339
        %v418 = vunpack.c.l.b16 %v340
        %v419 = vunpack.c.h.b16 %v340
        %v420 = vunpack.c.l.b16 %v341
        %v421 = vunpack.c.h.b16 %v341
        %v422 = vunpack.c.l.b16 %v342
        %v423 = vunpack.c.h.b16 %v342
        %v424 = vunpack.c.l.b16 %v343
        %v425 = vunpack.c.h.b16 %v343
        %v426 = vunpack.c.l.b16 %v344
        %v427 = vunpack.c.h.b16 %v344
        %v428 = vunpack.c.l.b16 %v345
        %v429 = vunpack.c.h.b16 %v345
        %v430 = vunpack.c.l.b16 %v346
        %v431 = vunpack.c.h.b16 %v346
        %v432 = vunpack.c.l.b16 %v347
        %v433 = vunpack.c.h.b16 %v347
        %v434 = vunpack.c.l.b16 %v348
        %v435 = vunpack.c.h.b16 %v348
        %v436 = vunpack.c.l.b16 %v349
        %v437 = vunpack.c.h.b16 %v349
        %v438 = vunpack.c.l.b16 %v350
        %v439 = vunpack.c.h.b16 %v350
        %v440 = vunpack.c.l.b16 %v351
        %v441 = vunpack.c.h.b16 %v351
        %v442 = vunpack.c.l.b16 %v352
        %v443 = vunpack.c.h.b16 %v352
        %v444 = vunpack.c.l.b16 %v353
        %v445 = vunpack.c.h.b16 %v353
        %v446 = vunpack.c.l.b16 %v354
        %v447 = vunpack.c.h.b16 %v354
        %v448 = vunpack.c.l.b16 %v355
        %v449 = vunpack.c.h.b16 %v355
        %v450 = vunpack.c.l.b16 %v356
        %v451 = vunpack.c.h.b16 %v356
        %v452 = vunpack.c.l.b16 %v357
        %v453 = vunpack.c.h.b16 %v357
        %v454 = vunpack.c.l.b16 %v358
        %v455 = vunpack.c.h.b16 %v358
        %v456 = vunpack.c.l.b16 %v359
        %v457 = vunpack.c.h.b16 %v359
        %v458 = vunpack.c.l.b16 %v360
        %v459 = vunpack.c.h.b16 %v360
        %v460 = vunpack.c.l.b16 %v361
        %v461 = vunpack.c.h.b16 %v361
        %v462 = vunpack.c.l.b16 %v362
        %v463 = vunpack.c.h.b16 %v362
        %v464 = vunpack.c.l.b16 %v363
        %v465 = vunpack.c.h.b16 %v363
        %v466 = vunpack.c.l.b16 %v364
        %v467 = vunpack.c.h.b16 %v364
        %v468 = vunpack.c.l.b16 %v365
        %v469 = vunpack.c.h.b16 %v365
        %v470 = vunpack.c.l.b16 %v366
        %v471 = vunpack.c.h.b16 %v366
        %v472 = vunpack.c.l.b16 %v367
        %v473 = vunpack.c.h.b16 %v367
        %v474 = vpack.c.b16 %v414, %v410
        %v475 = vpack.c.b16 %v415, %v411
        %v476 = vpack.c.b16 %v416, %v412
        %v477 = vpack.c.b16 %v417, %v413
        %v478 = vpack.c.b16 %v422, %v418
        %v479 = vpack.c.b16 %v423, %v419
        %v480 = vpack.c.b16 %v424, %v420
        %v481 = vpack.c.b16 %v425, %v421
        %v482 = vpack.c.b16 %v430, %v426
        %v483 = vpack.c.b16 %v431, %v427
        %v484 = vpack.c.b16 %v432, %v428
        %v485 = vpack.c.b16 %v433, %v429
        %v486 = vpack.c.b16 %v438, %v434
        %v487 = vpack.c.b16 %v439, %v435
        %v488 = vpack.c.b16 %v440, %v436
        %v489 = vpack.c.b16 %v441, %v437
        %v490 = vpack.c.b16 %v446, %v442
        %v491 = vpack.c.b16 %v447, %v443
        %v492 = vpack.c.b16 %v448, %v444
        %v493 = vpack.c.b16 %v449, %v445
        %v494 = vpack.c.b16 %v454, %v450
        %v495 = vpack.c.b16 %v455, %v451
        %v496 = vpack.c.b16 %v456, %v452
        %v497 = vpack.c.b16 %v457, %v453
        %v498 = vpack.c.b16 %v462, %v458
        %v499 = vpack.c.b16 %v463, %v459
        %v500 = vpack.c.b16 %v464, %v460
        %v501 = vpack.c.b16 %v465, %v461
        %v502 = vpack.c.b16 %v470, %v466
        %v503 = vpack.c.b16 %v471, %v467
        %v504 = vpack.c.b16 %v472, %v468
        %v505 = vpack.c.b16 %v473, %v469
        %538 = vmatpush.bf16.msra.mxu0 %v502
        %539 = vmatpush.bf16.msra.mxu0 %v498
        %540 = vmatpush.bf16.msra.mxu0 %v494
        %541 = vmatpush.bf16.msra.mxu0 %v490
        %542 = vmatpush.bf16.msra.mxu0 %v486
        %543 = vmatpush.bf16.msra.mxu0 %v482
        %544 = vmatpush.bf16.msra.mxu0 %v478
        %545 = vmatpush.bf16.msra.mxu0 %v474
        %546 = vmatmul.bf16.gmra.mxu0 %v335
        %v547 = vpop.f32.mrf.mxu0
        %v548 = vadd.f32 %v370, %v547
        %v549 = vpop.f32.mrf.mxu0
        %550 = vdwg.mxu0
        %551 = vmatpush.bf16.msra.mxu0 %v503
        %552 = vmatpush.bf16.msra.mxu0 %v499
        %553 = vmatpush.bf16.msra.mxu0 %v495
        %554 = vmatpush.bf16.msra.mxu0 %v491
        %555 = vmatpush.bf16.msra.mxu0 %v487
        %556 = vmatpush.bf16.msra.mxu0 %v483
        %557 = vmatpush.bf16.msra.mxu0 %v479
        %558 = vmatpush.bf16.msra.mxu0 %v475
        %559 = vmatmul.bf16.gmra.mxu0 %v335
        %v560 = vpop.f32.mrf.mxu0
        %v561 = vadd.f32 %v371, %v560
        %v562 = vpop.f32.mrf.mxu0
        %563 = vdwg.mxu0
        %564 = vmatpush.bf16.msra.mxu0 %v504
        %565 = vmatpush.bf16.msra.mxu0 %v500
        %566 = vmatpush.bf16.msra.mxu0 %v496
        %567 = vmatpush.bf16.msra.mxu0 %v492
        %568 = vmatpush.bf16.msra.mxu0 %v488
        %569 = vmatpush.bf16.msra.mxu0 %v484
        %570 = vmatpush.bf16.msra.mxu0 %v480
        %571 = vmatpush.bf16.msra.mxu0 %v476
        %572 = vmatmul.bf16.gmra.mxu0 %v335
        %v573 = vpop.f32.mrf.mxu0
        %v574 = vadd.f32 %v372, %v573
        %v575 = vpop.f32.mrf.mxu0
        %576 = vdwg.mxu0
        %577 = vmatpush.bf16.msra.mxu0 %v505
        %578 = vmatpush.bf16.msra.mxu0 %v501
        %579 = vmatpush.bf16.msra.mxu0 %v497
        %580 = vmatpush.bf16.msra.mxu0 %v493
        %581 = vmatpush.bf16.msra.mxu0 %v489
        %582 = vmatpush.bf16.msra.mxu0 %v485
        %583 = vmatpush.bf16.msra.mxu0 %v481
        %584 = vmatpush.bf16.msra.mxu0 %v477
        %585 = vmatmul.bf16.gmra.mxu0 %v335
        %v586 = vpop.f32.mrf.mxu0
        %v587 = vadd.f32 %v373, %v586
        %v588 = vpop.f32.mrf.mxu0
        %589 = vdwg.mxu0
        %v590 = vmul.f32 %v548, 0.5
        %v591 = vmul.f32 %v561, 0.5
        %v592 = vmul.f32 %v574, 0.5
        %v593 = vmul.f32 %v587, 0.5
        %v594 = vmul.f32 %v548, 0.044715
        %v595 = vmul.f32 %v561, 0.044715
        %v596 = vmul.f32 %v574, 0.044715
        %v597 = vmul.f32 %v587, 0.044715
        %v598 = vmul.f32 %v594, %v548
        %v599 = vmul.f32 %v595, %v561
        %v600 = vmul.f32 %v596, %v574
        %v601 = vmul.f32 %v597, %v587
        %v602 = vmul.f32 %v598, %v548
        %v603 = vmul.f32 %v599, %v561
        %v604 = vmul.f32 %v600, %v574
        %v605 = vmul.f32 %v601, %v587
        %v606 = vadd.f32 %v548, %v602
        %v607 = vadd.f32 %v561, %v603
        %v608 = vadd.f32 %v574, %v604
        %v609 = vadd.f32 %v587, %v605
        %v610 = vmul.f32 %v606, 0.7978846
        %v611 = vmul.f32 %v607, 0.7978846
        %v612 = vmul.f32 %v608, 0.7978846
        %v613 = vmul.f32 %v609, 0.7978846
        %v614 = vtanh.pop %v610
        %v615 = vtanh.pop %v611
        %v616 = vtanh.pop %v612
        %v617 = vtanh.pop %v613
        %v618 = vadd.f32 %v614, 1.0
        %v619 = vadd.f32 %v615, 1.0
        %v620 = vadd.f32 %v616, 1.0
        %v621 = vadd.f32 %v617, 1.0
        %v622 = vmul.f32 %v590, %v618
        %v623 = vmul.f32 %v591, %v619
        %v624 = vmul.f32 %v592, %v620
        %v625 = vmul.f32 %v593, %v621
        %v626 = vpack.c.bf16 %v623, %v622
        %v627 = vpack.c.bf16 %v625, %v624
        %628 = vst [vmem:[%s288] sm:$0xff] %v626
        %629 = vst [vmem:[%s288 + $0x8] sm:$0xff] %v627
        %s630 = smul.u32 4, %s22
        %p631 = scmp.lt.s32.totalorder %s21, 1
        %s632 = scalar_select %p631, %s21, 1
        %p633 = scmp.lt.s32.totalorder %s630, 3
        %s634 = scalar_select %p633, %s630, 3
        %s635 = smul.addr %s632, 4
        %s636 = sadd.s32 %s634, %s635
        %s637 = smul.addr %s636, 4
        %s638 = scalar_lea.vmem %s5, %s637
        // Predicated region
        $region49: #{model_forward.19} parent=39 // pred_check
          %p639 = pneg %p169
        $region50: #{model_forward.19} parent=39 // pred_check_branch
          %641 = sbr.rel (%p639) target = $region52
        $region51: #{model_forward.19} parent=39 // pred_region
          %s642 = smul.u32 4, %s22
        $region52: #{model_forward.19} parent=39 // pred_fallthru
          _
      $region40: #{model_forward.19} parent=5 // pred_fallthru
        _
      %p643 = scmp.le.s32.totalorder 2, %s12
      // Predicated region
      $region53: #{model_forward.19} parent=5 // pred_check
        %p644 = pneg %p643
      $region54: #{model_forward.19} parent=5 // pred_check_branch
        %646 = sbr.rel (%p644) target = $region56
      $region55: #{model_forward.19} parent=5 // pred_region
        %s647 = ssub.s32 %s12, 2
        // Predicated region
        $region57: #{model_forward.19} parent=55 // pred_check
          %p648 = pneg %p175
        $region58: #{model_forward.19} parent=55 // pred_check_branch
          %650 = sbr.rel (%p648) target = $region60
        $region59: #{model_forward.19} parent=55 // pred_region
          %s651 = smul.u32 4, %s24
          %p652 = scmp.lt.s32.totalorder %s23, 1
          %s653 = scalar_select %p652, %s23, 1
          %p654 = scmp.lt.s32.totalorder %s651, 3
          %s655 = scalar_select %p654, %s651, 3
          %s656 = smul.addr %s653, 4
          %s657 = sadd.s32 %s655, %s656
          %s658 = smul.addr %s657, 4
          %s659 = scalar_lea.vmem %s5, %s658
        $region60: #{model_forward.19} parent=55 // pred_fallthru
          _
      $region56: #{model_forward.19} parent=5 // pred_fallthru
        _
    $region6: #{model_forward.19} parent=1 // loop_footer
      %s16 = sadd.s32 1, %s12
    $region7: #{model_forward.19} parent=1 // loop_footer_branch
      %11 = sbr.rel target = $region3
    $region8: #{model_forward.19} parent=1 // loop_exit
      _
    %660 = vsyncpa [#allocation4], 1
    %s661 = scalar_lea.sflag [#allocation4], 1
    %662 = vsyncpa %s661, 1

// kernel: model_forward.21
$region0: #{model_forward.21}
  #allocation0 [shape = 'u32[]', space=smem, size = 0x4, offset = 0x4, fixed_abs, tag = 'smem constant byte address 0x4 - core index']
  #allocation1 [shape = 'u32[72,128]{1,0:T(1,128)}', space=vmem, size = 0x9000, scoped, tag = 'internal scratch']
  #allocation2 [shape = 'bf16[8,128]{1,0:T(8,128)(2,1)}', space=vmem, size = 0x800, scoped, tag = 'scratch operand']
  #allocation3 [shape = 'f32[8,1]{1,0:T(8,128)}', space=vmem, size = 0x1000, scoped, tag = 'scratch operand']
  #allocation4 [shape = 'f32[8,1]{1,0:T(8,128)}', space=vmem, size = 0x1000, scoped, tag = 'scratch operand']
  #allocation5 [shape = 'f32[8,1]{1,0:T(8,128)}', space=vmem, size = 0x1000, scoped, tag = 'scratch operand']
  %s0 = inlined_call_operand.vmem [shape: bf16[16,128], index: 0, kind: input, shape index: {}]
  %s1 = inlined_call_operand.vmem [shape: f32[1,128], index: 1, kind: input, shape index: {}]
  %s2 = inlined_call_operand.vmem [shape: f32[1,128], index: 2, kind: input, shape index: {}]
  %s3 = inlined_call_operand.hbm [shape: bf16[128,256], index: 3, kind: input, shape index: {}]
  %s4 = inlined_call_operand.vmem [shape: s32[16,1], index: 4, kind: input, shape index: {}]
  %s5 = inlined_call_operand.hbm [shape: f32[16,256], index: 5, kind: output, shape index: {0}]
  %s6 = inlined_call_operand.vmem [shape: f32[16,1], index: 6, kind: output, shape index: {1}]
  %7 = xla_tuple %s5, %s6
  %s8 = sld [smem:[#allocation0]]
  $region73: #{model_forward.21} parent=0
    _
  %s10 = ssub.s32 1, %s8
  %s11 = scalar_select 0, %s10, %s8
  $region1: #{model_forward.21} parent=0
    #allocation6 [shape = 'u8[65536]{0}', space=vmem, size = 0x10000, scoped, tag = 'input window, operand 3, single buffered']
    #allocation7 [shape = 's32[2]{0}', space=sflag, size = 0x8, scoped, tag = 'scoped memory for model_forward.21']
    #allocation8 [shape = 's32[2]{0}', space=sflag, size = 0x8, scoped, tag = 'scoped memory for model_forward.21']
    #allocation9 [shape = 'u8[16384]{0}', space=vmem, size = 0x4000, scoped, tag = 'output window, operand 0']
    %12 = vsyncpa [#allocation7], 0
    %13 = vsyncpa [#allocation8], 0
    %s14 = scalar_lea.sflag [#allocation8], 1
    %15 = vsyncpa %s14, 0
    loop: start=0, step=1, limit=4
    $region2: #{model_forward.21} parent=1 // loop_pre_header
      _
    $region3: #{model_forward.21} parent=1 // loop_header
      %s17 = sphi 0, %s21
      %p18 = scmp.ge.s32.totalorder %s17, 4
      %s24 = sphi 0, %s36
      %s25 = sphi 0, %s32
      %s26 = sphi 0, %s24
      %s27 = sphi 0, %s25
      %s28 = sphi 0, %s26
      %s29 = sphi 0, %s27
      %s39 = sphi 0, %s41
      %s42 = sphi 0, %s39
      %s43 = sphi 0, %s42
      %s59 = sphi 0, %s43
      %s63 = sphi 0, %s63
      %s65 = sphi 0, %s63
      %s66 = sphi 0, %s65
      %s80 = sphi 0, %s66
      %s84 = sphi 0, %s84
      %s86 = sphi 0, %s84
      %s87 = sphi 0, %s86
      %s101 = sphi 0, %s87
      %s107 = sphi 0, %s109
      %s110 = sphi 0, %s107
      %s111 = sphi 0, %s110
      %s127 = sphi 0, %s111
      %s133 = sphi 0, %s135
      %s136 = sphi 0, %s133
      %s137 = sphi 0, %s136
      %s153 = sphi 0, %s137
      %s161 = sphi 0, %s163
      %s164 = sphi 0, %s161
      %s165 = sphi 0, %s164
      %s181 = sphi 0, %s165
      %s187 = sphi 0, %s189
      %s190 = sphi 0, %s187
      %s191 = sphi 0, %s190
      %s207 = sphi 0, %s191
    $region4: #{model_forward.21} parent=1 // loop_header_branch
      %20 = sbr.rel (%p18) target = $region8
    $region5: #{model_forward.21} parent=1 // loop_body
      %s22 = ssub.s32 %s17, 1
      %s23 = ssub.s32 %s17, 2
      %s30 = sadd.s32 1, %s25
      %p31 = scmp.ge.s32.totalorder %s30, 1
      %s32 = scalar_select %p31, 0, %s30
      %s33 = sadd.s32 1, %s24
      %s34 = scalar_select %p31, %s33, %s24
      %p35 = scmp.ge.s32.totalorder %s34, 2
      %s36 = scalar_select %p35, 0, %s34
      %s37 = ssub.s32 %s24, %s36
      %p38 = scmp.eq.s32.totalorder %s37, 0
      %s40 = sadd.s32 %s39, 1
      %s41 = scalar_select %p38, %s39, %s40
      %p44 = pneg %p38
      %p45 = scmp.eq.s32.totalorder %s17, 1
      %p46 = por %p44, %p45
      %p47 = scmp.ne.s32.totalorder %s39, %s42
      %p48 = scmp.eq.s32.totalorder %s17, 0
      %p49 = por %p47, %p48
      %p50 = scmp.ne.s32.totalorder %s39, %s42
      %p51 = scmp.eq.s32.totalorder %s22, 1
      %p52 = por %p50, %p51
      %p53 = scmp.ne.s32.totalorder %s42, %s43
      %p54 = scmp.eq.s32.totalorder %s22, 0
      %p55 = por %p53, %p54
      %p56 = scmp.ne.s32.totalorder %s42, %s43
      %p57 = scmp.eq.s32.totalorder %s23, 1
      %p58 = por %p56, %p57
      %p60 = scmp.ne.s32.totalorder %s43, %s59
      %p61 = scmp.eq.s32.totalorder %s23, 0
      %p62 = por %p60, %p61
      %s64 = sadd.s32 %s63, 1
      %p67 = scmp.eq.s32.totalorder %s17, 1
      %p68 = scmp.ne.s32.totalorder %s63, %s65
      %p69 = scmp.eq.s32.totalorder %s17, 0
      %p70 = por %p68, %p69
      %p71 = scmp.ne.s32.totalorder %s63, %s65
      %p72 = scmp.eq.s32.totalorder %s22, 1
      %p73 = por %p71, %p72
      %p74 = scmp.ne.s32.totalorder %s65, %s66
      %p75 = scmp.eq.s32.totalorder %s22, 0
      %p76 = por %p74, %p75
      %p77 = scmp.ne.s32.totalorder %s65, %s66
      %p78 = scmp.eq.s32.totalorder %s23, 1
      %p79 = por %p77, %p78
      %p81 = scmp.ne.s32.totalorder %s66, %s80
      %p82 = scmp.eq.s32.totalorder %s23, 0
      %p83 = por %p81, %p82
      %s85 = sadd.s32 %s84, 1
      %p88 = scmp.eq.s32.totalorder %s17, 1
      %p89 = scmp.ne.s32.totalorder %s84, %s86
      %p90 = scmp.eq.s32.totalorder %s17, 0
      %p91 = por %p89, %p90
      %p92 = scmp.ne.s32.totalorder %s84, %s86
      %p93 = scmp.eq.s32.totalorder %s22, 1
      %p94 = por %p92, %p93
      %p95 = scmp.ne.s32.totalorder %s86, %s87
      %p96 = scmp.eq.s32.totalorder %s22, 0
      %p97 = por %p95, %p96
      %p98 = scmp.ne.s32.totalorder %s86, %s87
      %p99 = scmp.eq.s32.totalorder %s23, 1
      %p100 = por %p98, %p99
      %p102 = scmp.ne.s32.totalorder %s87, %s101
      %p103 = scmp.eq.s32.totalorder %s23, 0
      %p104 = por %p102, %p103
      %s105 = ssub.s32 %s25, %s32
      %p106 = scmp.eq.s32.totalorder %s105, 0
      %s108 = sadd.s32 %s107, 1
      %s109 = scalar_select %p106, %s107, %s108
      %p112 = pneg %p106
      %p113 = scmp.eq.s32.totalorder %s17, 1
      %p114 = por %p112, %p113
      %p115 = scmp.ne.s32.totalorder %s107, %s110
      %p116 = scmp.eq.s32.totalorder %s17, 0
      %p117 = por %p115, %p116
      %p118 = scmp.ne.s32.totalorder %s107, %s110
      %p119 = scmp.eq.s32.totalorder %s22, 1
      %p120 = por %p118, %p119
      %p121 = scmp.ne.s32.totalorder %s110, %s111
      %p122 = scmp.eq.s32.totalorder %s22, 0
      %p123 = por %p121, %p122
      %p124 = scmp.ne.s32.totalorder %s110, %s111
      %p125 = scmp.eq.s32.totalorder %s23, 1
      %p126 = por %p124, %p125
      %p128 = scmp.ne.s32.totalorder %s111, %s127
      %p129 = scmp.eq.s32.totalorder %s23, 0
      %p130 = por %p128, %p129
      %s131 = ssub.s32 %s24, %s36
      %p132 = scmp.eq.s32.totalorder %s131, 0
      %s134 = sadd.s32 %s133, 1
      %s135 = scalar_select %p132, %s133, %s134
      %p138 = pneg %p132
      %p139 = scmp.eq.s32.totalorder %s17, 1
      %p140 = por %p138, %p139
      %p141 = scmp.ne.s32.totalorder %s133, %s136
      %p142 = scmp.eq.s32.totalorder %s17, 0
      %p143 = por %p141, %p142
      %p144 = scmp.ne.s32.totalorder %s133, %s136
      %p145 = scmp.eq.s32.totalorder %s22, 1
      %p146 = por %p144, %p145
      %p147 = scmp.ne.s32.totalorder %s136, %s137
      %p148 = scmp.eq.s32.totalorder %s22, 0
      %p149 = por %p147, %p148
      %p150 = scmp.ne.s32.totalorder %s136, %s137
      %p151 = scmp.eq.s32.totalorder %s23, 1
      %p152 = por %p150, %p151
      %p154 = scmp.ne.s32.totalorder %s137, %s153
      %p155 = scmp.eq.s32.totalorder %s23, 0
      %p156 = por %p154, %p155
      %s157 = ssub.s32 %s24, %s36
      %s158 = ssub.s32 %s25, %s32
      %s159 = sor.u32 %s157, %s158
      %p160 = scmp.eq.s32.totalorder %s159, 0
      %s162 = sadd.s32 %s161, 1
      %s163 = scalar_select %p160, %s161, %s162
      %p166 = pneg %p160
      %p167 = scmp.eq.s32.totalorder %s17, 1
      %p168 = por %p166, %p167
      %p169 = scmp.ne.s32.totalorder %s161, %s164
      %p170 = scmp.eq.s32.totalorder %s17, 0
      %p171 = por %p169, %p170
      %p172 = scmp.ne.s32.totalorder %s161, %s164
      %p173 = scmp.eq.s32.totalorder %s22, 1
      %p174 = por %p172, %p173
      %p175 = scmp.ne.s32.totalorder %s164, %s165
      %p176 = scmp.eq.s32.totalorder %s22, 0
      %p177 = por %p175, %p176
      %p178 = scmp.ne.s32.totalorder %s164, %s165
      %p179 = scmp.eq.s32.totalorder %s23, 1
      %p180 = por %p178, %p179
      %p182 = scmp.ne.s32.totalorder %s165, %s181
      %p183 = scmp.eq.s32.totalorder %s23, 0
      %p184 = por %p182, %p183
      %s185 = ssub.s32 %s24, %s36
      %p186 = scmp.eq.s32.totalorder %s185, 0
      %s188 = sadd.s32 %s187, 1
      %s189 = scalar_select %p186, %s187, %s188
      %p192 = pneg %p186
      %p193 = scmp.eq.s32.totalorder %s17, 1
      %p194 = por %p192, %p193
      %p195 = scmp.ne.s32.totalorder %s187, %s190
      %p196 = scmp.eq.s32.totalorder %s17, 0
      %p197 = por %p195, %p196
      %p198 = scmp.ne.s32.totalorder %s187, %s190
      %p199 = scmp.eq.s32.totalorder %s22, 1
      %p200 = por %p198, %p199
      %p201 = scmp.ne.s32.totalorder %s190, %s191
      %p202 = scmp.eq.s32.totalorder %s22, 0
      %p203 = por %p201, %p202
      %p204 = scmp.ne.s32.totalorder %s190, %s191
      %p205 = scmp.eq.s32.totalorder %s23, 1
      %p206 = por %p204, %p205
      %p208 = scmp.ne.s32.totalorder %s191, %s207
      %p209 = scmp.eq.s32.totalorder %s23, 0
      %p210 = por %p208, %p209
      %p211 = scmp.le.s32.totalorder 1, %s17
      %p212 = scmp.lt.s32.totalorder %s17, 3
      %p213 = pnand %p211, %p212
      %p214 = pneg %p213
      // Predicated region
      $region9: #{model_forward.21} parent=5 // pred_check
        _
      $region10: #{model_forward.21} parent=5 // pred_check_branch
        %216 = sbr.rel (%p213) target = $region12
      $region11: #{model_forward.21} parent=5 // pred_region
        %s217 = ssub.s32 %s17, 1
        // Predicated region
        $region13: #{model_forward.21} parent=11 // pred_check
          %p218 = pneg %p76
        $region14: #{model_forward.21} parent=11 // pred_check_branch
          %220 = sbr.rel (%p218) target = $region16
        $region15: #{model_forward.21} parent=11 // pred_region
          _
        $region16: #{model_forward.21} parent=11 // pred_fallthru
          _
        // Predicated region
        $region17: #{model_forward.21} parent=11 // pred_check
          %p221 = pneg %p97
        $region18: #{model_forward.21} parent=11 // pred_check_branch
          %223 = sbr.rel (%p221) target = $region20
        $region19: #{model_forward.21} parent=11 // pred_region
          _
        $region20: #{model_forward.21} parent=11 // pred_fallthru
          _
        // Predicated region
        $region21: #{model_forward.21} parent=11 // pred_check
          %p224 = pneg %p123
        $region22: #{model_forward.21} parent=11 // pred_check_branch
          %226 = sbr.rel (%p224) target = $region24
        $region23: #{model_forward.21} parent=11 // pred_region
          %s227 = smul.u32 2, %s27
          %229 = vsyncadd [#allocation7], 0
          %s230 = smul.addr %s227, 4
          %s231 = scalar_lea.hbm %s3, %s230
          %s232 = sshll.u32 %s231, 4
          %s233 = int_to_ptr.hbm [resolvable:$true] %s232
          %s234 = sshll.u32 [#allocation6], 4
          %s235 = int_to_ptr.vmem [resolvable:$true] %s234
          %240 = dma.hbm_to_vmem [thread:$0]  %s233, 2048, %s235, [#allocation7], 128, 128, 8
        $region24: #{model_forward.21} parent=11 // pred_fallthru
          _
      $region12: #{model_forward.21} parent=5 // pred_fallthru
        _
      %p241 = scmp.lt.s32.totalorder %s17, 2
      // Predicated region
      $region25: #{model_forward.21} parent=5 // pred_check
        %p242 = pneg %p241
      $region26: #{model_forward.21} parent=5 // pred_check_branch
        %244 = sbr.rel (%p242) target = $region28
      $region27: #{model_forward.21} parent=5 // pred_region
        // Predicated region
        $region29: #{model_forward.21} parent=27 // pred_check
          %p245 = pneg %p49
        $region30: #{model_forward.21} parent=27 // pred_check_branch
          %247 = sbr.rel (%p245) target = $region32
        $region31: #{model_forward.21} parent=27 // pred_region
          %p248 = scmp.lt.s32.totalorder %s24, 1
          %s249 = scalar_select %p248, %s24, 1
          %s250 = smul.addr %s249, 4
          %s251 = scalar_lea.vmem %s0, %s250
        $region32: #{model_forward.21} parent=27 // pred_fallthru
          _
        // Predicated region
        $region33: #{model_forward.21} parent=27 // pred_check
          %p252 = pneg %p143
        $region34: #{model_forward.21} parent=27 // pred_check_branch
          %254 = sbr.rel (%p252) target = $region36
        $region35: #{model_forward.21} parent=27 // pred_region
          %p255 = scmp.lt.s32.totalorder %s24, 1
          %s256 = scalar_select %p255, %s24, 1
          %s257 = smul.addr %s256, 8
          %s258 = scalar_lea.vmem %s4, %s257
        $region36: #{model_forward.21} parent=27 // pred_fallthru
          _
      $region28: #{model_forward.21} parent=5 // pred_fallthru
        _
      %p259 = scmp.le.s32.totalorder 1, %s17
      %p260 = scmp.lt.s32.totalorder %s17, 3
      %p261 = pnand %p259, %p260
      %p262 = pneg %p261
      // Predicated region
      $region37: #{model_forward.21} parent=5 // pred_check
        _
      $region38: #{model_forward.21} parent=5 // pred_check_branch
        %264 = sbr.rel (%p261) target = $region40
      $region39: #{model_forward.21} parent=5 // pred_region
        %s265 = ssub.s32 %s17, 1
        // Predicated region
        $region41: #{model_forward.21} parent=39 // pred_check
          %p266 = pneg %p123
        $region42: #{model_forward.21} parent=39 // pred_check_branch
          %268 = sbr.rel (%p266) target = $region44
        $region43: #{model_forward.21} parent=39 // pred_region
          %270 = dma.done [#allocation7], 2048
        $region44: #{model_forward.21} parent=39 // pred_fallthru
          _
        %p271 = scmp.lt.s32.totalorder %s26, 1
        %s272 = scalar_select %p271, %s26, 1
        %s273 = smul.addr %s272, 4
        %s274 = scalar_lea.vmem %s0, %s273
        %p275 = pneg %p55
        %p276 = pneg %p52
        %p277 = pneg %p76
        %p278 = pneg %p73
        %p279 = pneg %p97
        %p280 = pneg %p94
        %p281 = pneg %p123
        %p282 = pneg %p120
        %p283 = scmp.lt.s32.totalorder %s26, 1
        %s284 = scalar_select %p283, %s26, 1
        %s285 = smul.addr %s284, 8
        %s286 = scalar_lea.vmem %s4, %s285
        %p287 = pneg %p149
        %p288 = pneg %p146
        %p289 = pneg %p177
        %p290 = pneg %p174
        %s291 = sand.u32 %s164, 1
        %s292 = scalar_lea.sflag [#allocation8], %s291
        %s293 = sand.u32 %s164, 1
        %s294 = smul.addr %s293, 16
        %s295 = scalar_lea.vmem [#allocation9], %s294
        %p296 = pneg %p203
        %p297 = pneg %p200
        %p298 = scmp.lt.s32.totalorder %s26, 1
        %s299 = scalar_select %p298, %s26, 1
        %s300 = smul.addr %s299, 8
        %s301 = scalar_lea.vmem %s6, %s300
        %p302 = scmp.lt.s32.totalorder %s26, 1
        %s303 = scalar_select %p302, %s26, 1
        %s304 = smul.addr %s303, 4
        %s305 = scalar_lea.vmem %s0, %s304
        %s306 = smul.u32 2, %s27
        %p307 = scmp.lt.s32.totalorder %s26, 1
        %s308 = scalar_select %p307, %s26, 1
        %s309 = smul.addr %s308, 8
        %s310 = scalar_lea.vmem %s4, %s309
        %s311 = smul.u32 2, %s27
        %p312 = scmp.lt.s32.totalorder %s26, 1
        %s313 = scalar_select %p312, %s26, 1
        %s314 = smul.addr %s313, 8
        %s315 = scalar_lea.vmem %s6, %s314
        %p316 = scmp.eq.s32.totalorder %s27, 0
        // Predicated region
        $region45: #{model_forward.21} parent=39 // pred_check
          %p317 = pneg %p316
        $region46: #{model_forward.21} parent=39 // pred_check_branch
          %319 = sbr.rel (%p317) target = $region48
        $region47: #{model_forward.21} parent=39 // pred_region
          %v320 = vld [vmem:[%s305] sm:$0xf]
          %v321 = vunpack.c.l.bf16 %v320
          %322 = vadd.xlane.f32.xlu0 %v321
          %v323 = vpop.xlane.xlu0 %322
          %v324 = vrcp.pop 128.0
          %v325 = vmul.f32 128.0, %v324
          %v326 = vsub.f32 1.0, %v325
          %v327 = vmul.f32 %v324, %v326
          %v328 = vadd.f32 %v324, %v327
          %vm329 = vweird.f32 %v324
          %v330 = vsel %vm329, %v324, %v328
          %v331 = vmul.f32 %v323, %v330
          %v332 = vsub.f32 %v321, %v331
          %v333 = vmul.f32 %v332, %v332
          %334 = vadd.xlane.f32.xlu0 %v333
          %v335 = vpop.xlane.xlu0 %334
          %v336 = vmul.f32 %v335, %v330
          %v337 = vadd.f32 %v336, 1e-05
          %v338 = vrsqrt.pop %v337
          %v339 = vmul.f32 %v338, %v337
          %v340 = vmul.f32 %v339, %v338
          %v341 = vmul.f32 0.5, %v340
          %v342 = vsub.f32 1.5, %v341
          %v343 = vmul.f32 %v338, %v342
          %vm344 = vweird.f32 %v337
          %vm345 = vweird.f32 %v338
          %vm346 = vmor %vm344, %vm345
          %v347 = vsel %vm346, %v338, %v343
          %v348 = vmul.f32 %v332, %v347
          %v349 = vld [vmem:[%s1] sm:$0x1]
          %v351 = vperm.slane %v349, 0
          %v353 = vmul.f32 %v348, %v351
          %v354 = vld [vmem:[%s2] sm:$0x1]
          %v356 = vperm.slane %v354, 0
          %v358 = vadd.f32 %v353, %v356
          %v359 = vpack.c.bf16 %v358, %v358
          %360 = vst [vmem:[#allocation2] sm:$0xf] %v359
          %vm361 = vcmask 7168
          %362 = vst.msk [vmem:[#allocation3] sm:$0xff] %vm361, -1e+30
          %363 = vst.msk [vmem:[#allocation4] sm:$0xff] %vm361, 0.0
          %364 = vst.msk [vmem:[#allocation5] sm:$0xff] %vm361, 0.0
        $region48: #{model_forward.21} parent=39 // pred_fallthru
          _
        %v365 = vld [vmem:[#allocation2] sm:$0xf]
        %v366 = vld [vmem:[#allocation6] sm:$0xff]
        %v367 = vld [vmem:[#allocation6 + $0x8] sm:$0xff]
        %v368 = vld [vmem:[#allocation6 + $0x10] sm:$0xff]
        %v369 = vld [vmem:[#allocation6 + $0x18] sm:$0xff]
        %v370 = vld [vmem:[#allocation6 + $0x20] sm:$0xff]
        %v371 = vld [vmem:[#allocation6 + $0x28] sm:$0xff]
        %v372 = vld [vmem:[#allocation6 + $0x30] sm:$0xff]
        %v373 = vld [vmem:[#allocation6 + $0x38] sm:$0xff]
        %v374 = vld [vmem:[#allocation6 + $0x40] sm:$0xff]
        %v375 = vld [vmem:[#allocation6 + $0x48] sm:$0xff]
        %v376 = vld [vmem:[#allocation6 + $0x50] sm:$0xff]
        %v377 = vld [vmem:[#allocation6 + $0x58] sm:$0xff]
        %v378 = vld [vmem:[#allocation6 + $0x60] sm:$0xff]
        %v379 = vld [vmem:[#allocation6 + $0x68] sm:$0xff]
        %v380 = vld [vmem:[#allocation6 + $0x70] sm:$0xff]
        %v381 = vld [vmem:[#allocation6 + $0x78] sm:$0xff]
        %v398 = vunpack.c.l.b16 %v366
        %v399 = vunpack.c.h.b16 %v366
        %v400 = vunpack.c.l.b16 %v367
        %v401 = vunpack.c.h.b16 %v367
        %v402 = vunpack.c.l.b16 %v368
        %v403 = vunpack.c.h.b16 %v368
        %v404 = vunpack.c.l.b16 %v369
        %v405 = vunpack.c.h.b16 %v369
        %v406 = vunpack.c.l.b16 %v370
        %v407 = vunpack.c.h.b16 %v370
        %v408 = vunpack.c.l.b16 %v371
        %v409 = vunpack.c.h.b16 %v371
        %v410 = vunpack.c.l.b16 %v372
        %v411 = vunpack.c.h.b16 %v372
        %v412 = vunpack.c.l.b16 %v373
        %v413 = vunpack.c.h.b16 %v373
        %v414 = vunpack.c.l.b16 %v374
        %v415 = vunpack.c.h.b16 %v374
        %v416 = vunpack.c.l.b16 %v375
        %v417 = vunpack.c.h.b16 %v375
        %v418 = vunpack.c.l.b16 %v376
        %v419 = vunpack.c.h.b16 %v376
        %v420 = vunpack.c.l.b16 %v377
        %v421 = vunpack.c.h.b16 %v377
        %v422 = vunpack.c.l.b16 %v378
        %v423 = vunpack.c.h.b16 %v378
        %v424 = vunpack.c.l.b16 %v379
        %v425 = vunpack.c.h.b16 %v379
        %v426 = vunpack.c.l.b16 %v380
        %v427 = vunpack.c.h.b16 %v380
        %v428 = vunpack.c.l.b16 %v381
        %v429 = vunpack.c.h.b16 %v381
        %v430 = vpack.c.b16 %v400, %v398
        %v431 = vpack.c.b16 %v401, %v399
        %v432 = vpack.c.b16 %v404, %v402
        %v433 = vpack.c.b16 %v405, %v403
        %v434 = vpack.c.b16 %v408, %v406
        %v435 = vpack.c.b16 %v409, %v407
        %v436 = vpack.c.b16 %v412, %v410
        %v437 = vpack.c.b16 %v413, %v411
        %v438 = vpack.c.b16 %v416, %v414
        %v439 = vpack.c.b16 %v417, %v415
        %v440 = vpack.c.b16 %v420, %v418
        %v441 = vpack.c.b16 %v421, %v419
        %v442 = vpack.c.b16 %v424, %v422
        %v443 = vpack.c.b16 %v425, %v423
        %v444 = vpack.c.b16 %v428, %v426
        %v445 = vpack.c.b16 %v429, %v427
        %462 = vmatpush.bf16.msra.mxu0 %v444
        %463 = vmatpush.bf16.msra.mxu0 %v442
        %464 = vmatpush.bf16.msra.mxu0 %v440
        %465 = vmatpush.bf16.msra.mxu0 %v438
        %466 = vmatpush.bf16.msra.mxu0 %v436
        %467 = vmatpush.bf16.msra.mxu0 %v434
        %468 = vmatpush.bf16.msra.mxu0 %v432
        %469 = vmatpush.bf16.msra.mxu0 %v430
        %470 = vmatmul.bf16.gmra.mxu0 %v365
        %v471 = vpop.f32.mrf.mxu0
        %v472 = vadd.f32 0.0, %v471
        %v473 = vpop.f32.mrf.mxu0
        %474 = vdwg.mxu0
        %475 = vmatpush.bf16.msra.mxu0 %v445
        %476 = vmatpush.bf16.msra.mxu0 %v443
        %477 = vmatpush.bf16.msra.mxu0 %v441
        %478 = vmatpush.bf16.msra.mxu0 %v439
        %479 = vmatpush.bf16.msra.mxu0 %v437
        %480 = vmatpush.bf16.msra.mxu0 %v435
        %481 = vmatpush.bf16.msra.mxu0 %v433
        %482 = vmatpush.bf16.msra.mxu0 %v431
        %483 = vmatmul.bf16.gmra.mxu0 %v365
        %v484 = vpop.f32.mrf.mxu0
        %v485 = vadd.f32 0.0, %v484
        %v486 = vpop.f32.mrf.mxu0
        %487 = vdwg.mxu0
        %488 = vst [vmem:[%s295] sm:$0xff] %v472
        %489 = vst [vmem:[%s295 + $0x8] sm:$0xff] %v485
        %v490 = vlaneseq
        %v491 = vand.u32 %v490, 127
        %v492 = vadd.s32 %v491, 128
        %s493 = smul.u32 %s27, 256
        %v494 = vstv %s493
        %v495 = vadd.s32 %v491, %v494
        %v496 = vadd.s32 %v492, %v494
        %vm497 = vcmp.lt.s32.totalorder %v495, 256
        %vm498 = vcmp.lt.s32.totalorder %v496, 256
        %v499 = vsel %vm497, %v472, -1e+30
        %v500 = vsel %vm498, %v485, -1e+30
        %v501 = vld [vmem:[#allocation3] sm:$0xff]
        %v502 = vmax.f32 %v499, %v500
        %503 = vmax.xlane.f32.xlu0 %v502
        %v504 = vpop.xlane.xlu0 %503
        %v505 = vmax.f32 %v501, %v504
        %v506 = vsub.f32 %v501, %v505
        %v507 = vmul.f32 %v506, 1.442695
        %v508 = vpow.pop %v507
        %v509 = vld [vmem:[#allocation4] sm:$0xff]
        %v510 = vmul.f32 %v509, %v508
        %512 = vset.pattern.permute.xlu0 0
        %513 = vperm.xlu0 %512, %v505
        %v514 = vpop.permute.xlu0 %513
        %v516 = vsub.f32 %v499, %v514
        %v517 = vsub.f32 %v500, %v514
        %v518 = vmul.f32 %v516, 1.442695
        %v519 = vpow.pop %v518
        %v520 = vmul.f32 %v517, 1.442695
        %v521 = vpow.pop %v520
        %v522 = vadd.f32 %v519, %v521
        %523 = vadd.xlane.f32.xlu0 %v522
        %v524 = vpop.xlane.xlu0 %523
        %v525 = vadd.f32 %v510, %v524
        %vm526 = vcmask 7168
        %527 = vst.msk [vmem:[#allocation4] sm:$0xff] %vm526, %v525
        %528 = vst.msk [vmem:[#allocation3] sm:$0xff] %vm526, %v505
        %v529 = vld [vmem:[%s310] sm:$0xff]
        %v530 = vld [vmem:[#allocation5] sm:$0xff]
        %531 = vset.pattern.permute.xlu0 0
        %532 = vperm.xlu0 %531, %v529
        %v533 = vpop.permute.xlu0 %532
        %vm534 = vcmp.eq.s32.totalorder %v495, %v533
        %vm535 = vcmp.eq.s32.totalorder %v496, %v533
        %v536 = vsel %vm534, %v472, 0.0
        %v537 = vsel %vm535, %v485, 0.0
        %v538 = vadd.f32 %v536, %v537
        %539 = vadd.xlane.f32.xlu0 %v538
        %v540 = vpop.xlane.xlu0 %539
        %v541 = vadd.f32 %v530, %v540
        %542 = vst.msk [vmem:[#allocation5] sm:$0xff] %vm526, %v541
        // Predicated region
        $region49: #{model_forward.21} parent=39 // pred_check
          %p543 = pneg %p316
        $region50: #{model_forward.21} parent=39 // pred_check_branch
          %545 = sbr.rel (%p543) target = $region52
        $region51: #{model_forward.21} parent=39 // pred_region
          %v546 = vld [vmem:[#allocation3] sm:$0xff]
          %v547 = vld [vmem:[#allocation4] sm:$0xff]
          %v548 = vlog2.pop %v547
          %v549 = vmul.f32 %v548, 0.6931472
          %v550 = vadd.f32 %v546, %v549
          %v551 = vld [vmem:[#allocation5] sm:$0xff]
          %v552 = vsub.f32 %v550, %v551
          %553 = vst.msk [vmem:[%s315] sm:$0xff] %vm526, %v552
        $region52: #{model_forward.21} parent=39 // pred_fallthru
          _
        %s554 = sand.u32 %s164, 1
        %s555 = scalar_lea.sflag [#allocation8], %s554
        %s556 = sand.u32 %s164, 1
        %s557 = smul.addr %s556, 16
        %s558 = scalar_lea.vmem [#allocation9], %s557
        %p559 = scmp.lt.s32.totalorder %s26, 1
        %s560 = scalar_select %p559, %s26, 1
        %s561 = smul.addr %s560, 8
        %s562 = scalar_lea.vmem %s6, %s561
        // Predicated region
        $region53: #{model_forward.21} parent=39 // pred_check
          %p563 = pneg %p174
        $region54: #{model_forward.21} parent=39 // pred_check_branch
          %565 = sbr.rel (%p563) target = $region56
        $region55: #{model_forward.21} parent=39 // pred_region
          %s566 = smul.u32 2, %s27
          %568 = vsyncadd %s555, 0
          %s569 = smul.addr %s26, 2
          %s570 = sadd.s32 %s566, %s569
          %s571 = smul.addr %s570, 8
          %s572 = scalar_lea.hbm %s5, %s571
          %s574 = sshll.u32 %s558, 4
          %s575 = int_to_ptr.vmem [resolvable:$true] %s574
          %s576 = sshll.u32 %s572, 4
          %s577 = int_to_ptr.hbm [resolvable:$true] %s576
          %579 = dma.vmem_to_hbm [thread:$0]  %s575, 256, %s577, %s555
        $region56: #{model_forward.21} parent=39 // pred_fallthru
          _
        // Predicated region
        $region57: #{model_forward.21} parent=39 // pred_check
          %p580 = pneg %p200
        $region58: #{model_forward.21} parent=39 // pred_check_branch
          %582 = sbr.rel (%p580) target = $region60
        $region59: #{model_forward.21} parent=39 // pred_region
          _
        $region60: #{model_forward.21} parent=39 // pred_fallthru
          _
      $region40: #{model_forward.21} parent=5 // pred_fallthru
        _
      %p583 = scmp.le.s32.totalorder 2, %s17
      // Predicated region
      $region61: #{model_forward.21} parent=5 // pred_check
        %p584 = pneg %p583
      $region62: #{model_forward.21} parent=5 // pred_check_branch
        %586 = sbr.rel (%p584) target = $region64
      $region63: #{model_forward.21} parent=5 // pred_region
        %s587 = ssub.s32 %s17, 2
        // Predicated region
        $region65: #{model_forward.21} parent=63 // pred_check
          %p588 = pneg %p180
        $region66: #{model_forward.21} parent=63 // pred_check_branch
          %590 = sbr.rel (%p588) target = $region68
        $region67: #{model_forward.21} parent=63 // pred_region
          %s591 = sand.u32 %s165, 1
          %s592 = scalar_lea.sflag [#allocation8], %s591
          %s593 = sand.u32 %s165, 1
          %s594 = smul.addr %s593, 16
          %s595 = scalar_lea.vmem [#allocation9], %s594
          %597 = dma.done %s592, 256
        $region68: #{model_forward.21} parent=63 // pred_fallthru
          _
        // Predicated region
        $region69: #{model_forward.21} parent=63 // pred_check
          %p598 = pneg %p206
        $region70: #{model_forward.21} parent=63 // pred_check_branch
          %600 = sbr.rel (%p598) target = $region72
        $region71: #{model_forward.21} parent=63 // pred_region
          %p601 = scmp.lt.s32.totalorder %s28, 1
          %s602 = scalar_select %p601, %s28, 1
          %s603 = smul.addr %s602, 8
          %s604 = scalar_lea.vmem %s6, %s603
        $region72: #{model_forward.21} parent=63 // pred_fallthru
          _
      $region64: #{model_forward.21} parent=5 // pred_fallthru
        _
    $region6: #{model_forward.21} parent=1 // loop_footer
      %s21 = sadd.s32 1, %s17
    $region7: #{model_forward.21} parent=1 // loop_footer_branch
      %16 = sbr.rel target = $region3
    $region8: #{model_forward.21} parent=1 // loop_exit
      _
    %605 = vsyncpa [#allocation7], 1
    %s606 = scalar_lea.sflag [#allocation7], 1
    %607 = vsyncpa %s606, 1
    %608 = vsyncpa [#allocation8], 1
    %s609 = scalar_lea.sflag [#allocation8], 1
    %610 = vsyncpa %s609, 1

</llo_original>
